<compile_context>
chip_gen: v6e
topology: v6e:2x2x1
jax: 0.10.0
libtpu: 0.0.40
codegen_flags: <defaults>
</compile_context>

<pallas_src>
import functools

import jax
import jax.numpy as jnp
from jax.experimental import pallas as pl
from jax.experimental.pallas import tpu as pltpu


# ---------------------------------------------------------------------------
# Pallas kernels: fused matmul + affine (+ residual) (+ relu)
# ---------------------------------------------------------------------------
def _mm_kernel(a_ref, b_ref, s_ref, c_ref, o_ref, *, relu):
    acc = jnp.dot(a_ref[...], b_ref[...], preferred_element_type=jnp.float32)
    acc = acc * s_ref[...] + c_ref[...]
    if relu:
        acc = jnp.maximum(acc, 0.0)
    o_ref[...] = acc.astype(o_ref.dtype)


def _mm_res_kernel(a_ref, b_ref, s_ref, c_ref, r_ref, o_ref, *, relu):
    acc = jnp.dot(a_ref[...], b_ref[...], preferred_element_type=jnp.float32)
    acc = acc * s_ref[...] + c_ref[...] + r_ref[...]
    if relu:
        acc = jnp.maximum(acc, 0.0)
    o_ref[...] = acc.astype(o_ref.dtype)


def matmul_affine(a, b, scale, bias, res=None, relu=False, tm_max=512):
    """o = maybe_relu((a @ b) * scale + bias [+ res]) via a tiled Pallas kernel.

    a: (M, K)  -> cast to bf16, tiled over M.
    b: (K, N)  -> bf16, resident in VMEM across the whole grid.
    scale/bias: (N,) f32 epilogue.  res: (M, N) f32 or None.
    No K/N padding: full-dim blocks are exempt from the (8,128) rule.
    """
    M, K = a.shape
    Kb, N = b.shape
    assert K == Kb

    a = a.astype(jnp.bfloat16)
    b = b.astype(jnp.bfloat16)
    scale = jnp.asarray(scale, jnp.float32).reshape(1, N)
    bias = jnp.asarray(bias, jnp.float32).reshape(1, N)
    if res is not None:
        res = res.astype(jnp.float32)

    # Tiny-M safety (bottleneck layers at toy sizes): pad rows up to 8.
    M0 = M
    if M < 8:
        a = jnp.pad(a, ((0, 8 - M), (0, 0)))
        if res is not None:
            res = jnp.pad(res, ((0, 8 - M), (0, 0)))
        M = 8

    # M tile: multiple of 8 when tiling, otherwise the full (exempt) dim.
    tm = M if M <= tm_max else tm_max
    grid = (pl.cdiv(M, tm),)

    in_specs = [
        pl.BlockSpec((tm, K), lambda i: (i, 0)),   # A: streamed over M
        pl.BlockSpec((K, N), lambda i: (0, 0)),    # B: resident
        pl.BlockSpec((1, N), lambda i: (0, 0)),    # scale: resident
        pl.BlockSpec((1, N), lambda i: (0, 0)),    # bias: resident
    ]
    args = [a, b, scale, bias]
    if res is None:
        kernel = functools.partial(_mm_kernel, relu=relu)
    else:
        kernel = functools.partial(_mm_res_kernel, relu=relu)
        in_specs.append(pl.BlockSpec((tm, N), lambda i: (i, 0)))
        args.append(res)

    bytes_accessed = (M * K * 2 + K * N * 2 + 2 * N * 4 + M * N * 4
                      + (M * N * 4 if res is not None else 0))
    cost = pl.CostEstimate(flops=2 * M * K * N, transcendentals=0,
                           bytes_accessed=bytes_accessed)

    out = pl.pallas_call(
        kernel,
        grid=grid,
        in_specs=in_specs,
        out_specs=pl.BlockSpec((tm, N), lambda i: (i, 0)),
        out_shape=jax.ShapeDtypeStruct((M, N), jnp.float32),
        compiler_params=pltpu.CompilerParams(
            dimension_semantics=("parallel",)),   # M blocks are independent
        cost_estimate=cost,
    )(*args)
    return out if M0 == M else out[:M0]


# ---------------------------------------------------------------------------
# Conv building blocks (im2col glue in JAX; matmuls in the Pallas kernel)
# ---------------------------------------------------------------------------
def conv2d(x, w_mat, scale, bias, k, stride, pad, relu=False, res=None):
    """x: (N,H,W,Cin) NHWC; w_mat: (k*k*Cin, Cout) precomputed bf16 matrix."""
    N, H, W, C = x.shape
    _, O = w_mat.shape
    Ho = (H + 2 * pad - k) // stride + 1
    Wo = (W + 2 * pad - k) // stride + 1

    xb = x.astype(jnp.bfloat16)          # halve im2col HBM traffic
    if pad:
        xb = jnp.pad(xb, ((0, 0), (pad, pad), (pad, pad), (0, 0)))

    if k == 1 and stride == 1:
        patches = xb.reshape(N * Ho * Wo, C)
    else:
        cols = []
        for dy in range(k):
            for dx in range(k):
                cols.append(xb[:, dy:dy + stride * (Ho - 1) + 1:stride,
                               dx:dx + stride * (Wo - 1) + 1:stride, :])
        patches = jnp.concatenate(cols, axis=-1).reshape(N * Ho * Wo, k * k * C)

    res_flat = None if res is None else res.reshape(N * Ho * Wo, O)
    out = matmul_affine(patches, w_mat, scale, bias, res=res_flat, relu=relu)
    return out.reshape(N, Ho, Wo, O)


def upconv_forward(x, w_mat, scale4, bias4, relu=True):
    """ConvTranspose2d(k=3, stride=2, pad=1, out_pad=1) via sub-pixel phases.

    x: (N,H,W,Cin); w_mat: (4*Cin, 4*Cout) phase-packed bf16 matrix
    (columns = [ee|eo|oe|oo] output phases, rows = the 2x2 input taps).
    Output: (N, 2H, 2W, Cout).  No zero-dilated tensor is ever built.
    """
    N, H, W, C = x.shape
    Cout = bias4.shape[0] // 4

    xb = x.astype(jnp.bfloat16)
    xp = jnp.pad(xb, ((0, 0), (0, 1), (0, 1), (0, 0)))   # bottom/right halo
    t0 = xb                                              # x[m,   n  ]
    t1 = xp[:, :H, 1:W + 1, :]                           # x[m,   n+1]
    t2 = xp[:, 1:H + 1, :W, :]                           # x[m+1, n  ]
    t3 = xp[:, 1:H + 1, 1:W + 1, :]                      # x[m+1, n+1]
    patches = jnp.concatenate([t0, t1, t2, t3], axis=-1).reshape(N * H * W, 4 * C)

    out = matmul_affine(patches, w_mat, scale4, bias4, relu=relu)
    out = out.reshape(N, H, W, 2, 2, Cout)
    out = jnp.transpose(out, (0, 1, 3, 2, 4, 5)).reshape(N, 2 * H, 2 * W, Cout)
    return out


def block_forward(p, x):
    """Detector.Block: relu(BN2(c2(relu(BN1(c1(x))))) + skip(x))."""
    h = conv2d(x, p['c1_w'], p['c1_s'], p['c1_b'], k=3, stride=2, pad=1, relu=True)
    skip = conv2d(x, p['skip_w'], p['skip_s'], p['skip_b'], k=1, stride=2, pad=0,
                  relu=False)
    # residual add + final relu fused into the Pallas matmul epilogue
    return conv2d(h, p['c2_w'], p['c2_s'], p['c2_b'], k=3, stride=1, pad=1,
                  relu=True, res=skip)


# ---------------------------------------------------------------------------
# Parameter preparation (done once, outside the per-call forward)
# ---------------------------------------------------------------------------
def _fold_bn(gamma, beta, mean, var, conv_bias, eps=1e-5):
    """Fold eval-mode BatchNorm (after a conv with bias) into scale/bias."""
    scale = gamma * jax.lax.rsqrt(var + eps)
    bias = scale * (conv_bias - mean) + beta
    return scale.astype(jnp.float32), bias.astype(jnp.float32)


def _conv_w_matrix(w):
    """(O, I, kH, kW) PyTorch OIHW -> (kH*kW*I, O) bf16 matmul weight."""
    O, I, kH, kW = w.shape
    return jnp.transpose(w, (2, 3, 1, 0)).reshape(kH * kW * I, O).astype(jnp.bfloat16)


def _upconv_w_matrix(w):
    """(Cin, Cout, 3, 3) ConvTranspose2d weight -> (4*Cin, 4*Cout) phase matrix.

    Row blocks = taps [x[m,n], x[m,n+1], x[m+1,n], x[m+1,n+1]];
    column blocks = output phases [even/even, even/odd, odd/even, odd/odd].
    """
    Cin, Cout, _, _ = w.shape
    Wk = lambda kh, kw: w[:, :, kh, kw]                  # (Cin, Cout)
    Z = jnp.zeros((Cin, Cout), w.dtype)
    row0 = jnp.concatenate([Wk(1, 1), Wk(1, 2), Wk(2, 1), Wk(2, 2)], axis=1)
    row1 = jnp.concatenate([Z,        Wk(1, 0), Z,        Wk(2, 0)], axis=1)
    row2 = jnp.concatenate([Z,        Z,        Wk(0, 1), Wk(0, 2)], axis=1)
    row3 = jnp.concatenate([Z,        Z,        Z,        Wk(0, 0)], axis=1)
    return jnp.concatenate([row0, row1, row2, row3], axis=0).astype(jnp.bfloat16)


# ---------------------------------------------------------------------------
# Detector forward
# ---------------------------------------------------------------------------
INPUT_MEAN = jnp.array([0.3521554, 0.30068502, 0.28527516], jnp.float32)
INPUT_STD = jnp.array([0.18182722, 0.18656468, 0.15938024], jnp.float32)

LAYERS = (16, 16, 32, 32)
N_INPUT_CHANNELS = 3
N_OUTPUT_CHANNELS = 1
KERNEL_SIZE = 3


def init_detector_params(key, layers=LAYERS, n_input=N_INPUT_CHANNELS,
                         n_output=N_OUTPUT_CHANNELS, k=KERNEL_SIZE):
    """Deterministic synthetic parameters, shapes matching Detector.__init__."""
    def nrm(kk, shape, s=0.1):
        return jax.random.normal(kk, shape, jnp.float32) * s

    keys = iter(jax.random.split(key, 256))
    params = {}
    c = n_input
    skip_sizes = [n_input] + list(layers[:-1])
    for i, l in enumerate(layers):
        params['conv%d' % i] = {
            'c1_w': nrm(next(keys), (l, c, k, k)),
            'c1_b': nrm(next(keys), (l,)),
            'c2_w': nrm(next(keys), (l, l, k, k)),
            'c2_b': nrm(next(keys), (l,)),
            'b1_gamma': 1.0 + nrm(next(keys), (l,), 0.05),
            'b1_beta': nrm(next(keys), (l,), 0.05),
            'b1_mean': jnp.zeros((l,), jnp.float32),
            'b1_var': jnp.ones((l,), jnp.float32),
            'b2_gamma': 1.0 + nrm(next(keys), (l,), 0.05),
            'b2_beta': nrm(next(keys), (l,), 0.05),
            'b2_mean': jnp.zeros((l,), jnp.float32),
            'b2_var': jnp.ones((l,), jnp.float32),
            'skip_w': nrm(next(keys), (l, c, 1, 1)),
            'skip_b': nrm(next(keys), (l,)),
        }
        c = l
    for i, l in list(enumerate(layers))[::-1]:
        params['upconv%d' % i] = {
            'w': nrm(next(keys), (c, l, k, k)),   # ConvTranspose2d: (in, out, kH, kW)
            'b': nrm(next(keys), (l,)),
        }
        c = l + skip_sizes[i]                     # use_skip=True
    params['cls_w'] = nrm(next(keys), (n_output, c, 1, 1))
    params['cls_b'] = nrm(next(keys), (n_output,))
    return params


def prepare_params(params, n_conv=len(LAYERS)):
    """Precompute bf16 weight matrices and folded BN scale/bias (once)."""
    prep = {}
    for i in range(n_conv):
        p = params['conv%d' % i]
        s1, b1 = _fold_bn(p['b1_gamma'], p['b1_beta'], p['b1_mean'], p['b1_var'],
                          p['c1_b'])
        s2, b2 = _fold_bn(p['b2_gamma'], p['b2_beta'], p['b2_mean'], p['b2_var'],
                          p['c2_b'])
        prep['conv%d' % i] = {
            'c1_w': _conv_w_matrix(p['c1_w']), 'c1_s': s1, 'c1_b': b1,
            'c2_w': _conv_w_matrix(p['c2_w']), 'c2_s': s2, 'c2_b': b2,
            'skip_w': _conv_w_matrix(p['skip_w']),
            'skip_s': jnp.ones_like(p['skip_b']),
            'skip_b': p['skip_b'].astype(jnp.float32),
        }
    for i in range(n_conv):
        u = params['upconv%d' % i]
        cout = u['b'].shape[0]
        prep['upconv%d' % i] = {
            'w': _upconv_w_matrix(u['w']),
            's': jnp.ones((4 * cout,), jnp.float32),
            'b': jnp.tile(u['b'].astype(jnp.float32), 4),
        }
    prep['cls_w'] = _conv_w_matrix(params['cls_w'])
    prep['cls_s'] = jnp.ones_like(params['cls_b'])
    prep['cls_b'] = params['cls_b'].astype(jnp.float32)
    return prep


def detector_forward(prep, x_nchw, n_conv=len(LAYERS)):
    # NCHW in (PyTorch convention) -> NHWC internal -> NCHW out
    x = jnp.transpose(x_nchw, (0, 2, 3, 1)).astype(jnp.float32)
    z = (x - INPUT_MEAN) / INPUT_STD
    up_act = []
    for i in range(n_conv):
        up_act.append(z)
        z = block_forward(prep['conv%d' % i], z)
    for i in reversed(range(n_conv)):
        up = prep['upconv%d' % i]
        z = upconv_forward(z, up['w'], up['s'], up['b'], relu=True)
        H, W = up_act[i].shape[1], up_act[i].shape[2]
        z = z[:, :H, :W, :]                           # crop like z[:, :, :H, :W]
        z = jnp.concatenate([z, up_act[i]], axis=-1)  # channel concat (use_skip)
    out = conv2d(z, prep['cls_w'], prep['cls_s'], prep['cls_b'],
                 k=1, stride=1, pad=0, relu=False)
    return jnp.transpose(out, (0, 3, 1, 2))


if __name__ == "__main__":
    key = jax.random.PRNGKey(0)
    kx, kp = jax.random.split(key)
    x = jax.random.uniform(kx, (2, 3, 16, 16), jnp.float32)   # NCHW, like PyTorch
    params = init_detector_params(kp)
    prep = prepare_params(params)

    fwd = jax.jit(detector_forward)
    out = jax.block_until_ready(fwd(prep, x))

    assert out.shape == (2, 1, 16, 16), out.shape
    assert bool(jnp.all(jnp.isfinite(out)))
    print("KERNEL_OK")
</pallas_src>

<mosaic_0001>
module attributes {stable_mosaic.version = 11 : i64} {
  func.func @_mm_kernel(%arg0: i32, %arg1: memref<128x27xbf16, #tpu.memory_space<vmem>>, %arg2: memref<27x16xbf16, #tpu.memory_space<vmem>>, %arg3: memref<1x16xf32, #tpu.memory_space<vmem>>, %arg4: memref<1x16xf32, #tpu.memory_space<vmem>>, %arg5: memref<128x16xf32, #tpu.memory_space<vmem>>) attributes {dimension_semantics = [#tpu.dimension_semantics<parallel>], iteration_bounds = array<i64: 1>, scalar_prefetch = 0 : i64, scratch_operands = 0 : i64, tpu.core_type = #tpu.core_type<tc>, window_params = [{transform_indices = @transform_0, window_bounds = array<i64: 128, 27>}, {pipeline_mode = #tpu.pipeline_mode<synchronous>, transform_indices = @transform_1, window_bounds = array<i64: 27, 16>}, {pipeline_mode = #tpu.pipeline_mode<synchronous>, transform_indices = @transform_2, window_bounds = array<i64: 1, 16>}, {pipeline_mode = #tpu.pipeline_mode<synchronous>, transform_indices = @transform_3, window_bounds = array<i64: 1, 16>}, {transform_indices = @transform_4, window_bounds = array<i64: 128, 16>}]} {
    %c0 = arith.constant 0 : index
    %c0_0 = arith.constant 0 : index
    %0 = vector.load %arg1[%c0, %c0_0] : memref<128x27xbf16, #tpu.memory_space<vmem>>, vector<128x27xbf16>
    %c0_1 = arith.constant 0 : index
    %c0_2 = arith.constant 0 : index
    %1 = vector.load %arg2[%c0_1, %c0_2] : memref<27x16xbf16, #tpu.memory_space<vmem>>, vector<27x16xbf16>
    %cst = arith.constant dense<0.000000e+00> : vector<128x16xf32>
    %2 = tpu.matmul %0, %1, %cst {dimension_numbers = #tpu.dot_dimension_numbers<[1], [0], [0], [1], [0, 0, 1, 1], [], []>} : vector<128x27xbf16>, vector<27x16xbf16>, vector<128x16xf32> -> vector<128x16xf32>
    %c0_3 = arith.constant 0 : index
    %c0_4 = arith.constant 0 : index
    %3 = vector.load %arg3[%c0_3, %c0_4] : memref<1x16xf32, #tpu.memory_space<vmem>>, vector<1x16xf32>
    %4 = vector.broadcast %3 : vector<1x16xf32> to vector<128x16xf32>
    %5 = arith.mulf %2, %4 : vector<128x16xf32>
    %c0_5 = arith.constant 0 : index
    %c0_6 = arith.constant 0 : index
    %6 = vector.load %arg4[%c0_5, %c0_6] : memref<1x16xf32, #tpu.memory_space<vmem>>, vector<1x16xf32>
    %7 = vector.broadcast %6 : vector<1x16xf32> to vector<128x16xf32>
    %8 = arith.addf %5, %7 : vector<128x16xf32>
    %cst_7 = arith.constant 0.000000e+00 : f32
    %9 = vector.broadcast %cst_7 : f32 to vector<128x16xf32>
    %10 = arith.maximumf %8, %9 : vector<128x16xf32>
    %c0_8 = arith.constant 0 : index
    %c0_9 = arith.constant 0 : index
    %11 = vector.load %arg5[%c0_8, %c0_9] : memref<128x16xf32, #tpu.memory_space<vmem>>, vector<128x16xf32>
    tpu.vector_store %arg5[%c0_8, %c0_9], %10 {strides = array<i32>} : memref<128x16xf32, #tpu.memory_space<vmem>>, vector<128x16xf32>,
    return
  }
  func.func @transform_0(%arg0: i32) -> (i32, i32) {
    %c0_i32 = arith.constant 0 : i32
    %c0_i32_0 = arith.constant 0 : i32
    return %arg0, %c0_i32 : i32, i32
  }
  func.func @transform_1(%arg0: i32) -> (i32, i32) {
    %c0_i32 = arith.constant 0 : i32
    %c0_i32_0 = arith.constant 0 : i32
    %c0_i32_1 = arith.constant 0 : i32
    return %c0_i32, %c0_i32_0 : i32, i32
  }
  func.func @transform_2(%arg0: i32) -> (i32, i32) {
    %c0_i32 = arith.constant 0 : i32
    %c0_i32_0 = arith.constant 0 : i32
    %c0_i32_1 = arith.constant 0 : i32
    return %c0_i32, %c0_i32_0 : i32, i32
  }
  func.func @transform_3(%arg0: i32) -> (i32, i32) {
    %c0_i32 = arith.constant 0 : i32
    %c0_i32_0 = arith.constant 0 : i32
    %c0_i32_1 = arith.constant 0 : i32
    return %c0_i32, %c0_i32_0 : i32, i32
  }
  func.func @transform_4(%arg0: i32) -> (i32, i32) {
    %c0_i32 = arith.constant 0 : i32
    %c0_i32_0 = arith.constant 0 : i32
    return %arg0, %c0_i32 : i32, i32
  }
}

module attributes {stable_mosaic.version = 11 : i64} {
  func.func @_mm_kernel(%arg0: i32, %arg1: memref<128x3xbf16, #tpu.memory_space<vmem>>, %arg2: memref<3x16xbf16, #tpu.memory_space<vmem>>, %arg3: memref<1x16xf32, #tpu.memory_space<vmem>>, %arg4: memref<1x16xf32, #tpu.memory_space<vmem>>, %arg5: memref<128x16xf32, #tpu.memory_space<vmem>>) attributes {dimension_semantics = [#tpu.dimension_semantics<parallel>], iteration_bounds = array<i64: 1>, scalar_prefetch = 0 : i64, scratch_operands = 0 : i64, tpu.core_type = #tpu.core_type<tc>, window_params = [{transform_indices = @transform_0, window_bounds = array<i64: 128, 3>}, {pipeline_mode = #tpu.pipeline_mode<synchronous>, transform_indices = @transform_1, window_bounds = array<i64: 3, 16>}, {pipeline_mode = #tpu.pipeline_mode<synchronous>, transform_indices = @transform_2, window_bounds = array<i64: 1, 16>}, {pipeline_mode = #tpu.pipeline_mode<synchronous>, transform_indices = @transform_3, window_bounds = array<i64: 1, 16>}, {transform_indices = @transform_4, window_bounds = array<i64: 128, 16>}]} {
    %c0 = arith.constant 0 : index
    %c0_0 = arith.constant 0 : index
    %0 = vector.load %arg1[%c0, %c0_0] : memref<128x3xbf16, #tpu.memory_space<vmem>>, vector<128x3xbf16>
    %c0_1 = arith.constant 0 : index
    %c0_2 = arith.constant 0 : index
    %1 = vector.load %arg2[%c0_1, %c0_2] : memref<3x16xbf16, #tpu.memory_space<vmem>>, vector<3x16xbf16>
    %cst = arith.constant dense<0.000000e+00> : vector<128x16xf32>
    %2 = tpu.matmul %0, %1, %cst {dimension_numbers = #tpu.dot_dimension_numbers<[1], [0], [0], [1], [0, 0, 1, 1], [], []>} : vector<128x3xbf16>, vector<3x16xbf16>, vector<128x16xf32> -> vector<128x16xf32>
    %c0_3 = arith.constant 0 : index
    %c0_4 = arith.constant 0 : index
    %3 = vector.load %arg3[%c0_3, %c0_4] : memref<1x16xf32, #tpu.memory_space<vmem>>, vector<1x16xf32>
    %4 = vector.broadcast %3 : vector<1x16xf32> to vector<128x16xf32>
    %5 = arith.mulf %2, %4 : vector<128x16xf32>
    %c0_5 = arith.constant 0 : index
    %c0_6 = arith.constant 0 : index
    %6 = vector.load %arg4[%c0_5, %c0_6] : memref<1x16xf32, #tpu.memory_space<vmem>>, vector<1x16xf32>
    %7 = vector.broadcast %6 : vector<1x16xf32> to vector<128x16xf32>
    %8 = arith.addf %5, %7 : vector<128x16xf32>
    %c0_7 = arith.constant 0 : index
    %c0_8 = arith.constant 0 : index
    %9 = vector.load %arg5[%c0_7, %c0_8] : memref<128x16xf32, #tpu.memory_space<vmem>>, vector<128x16xf32>
    tpu.vector_store %arg5[%c0_7, %c0_8], %8 {strides = array<i32>} : memref<128x16xf32, #tpu.memory_space<vmem>>, vector<128x16xf32>,
    return
  }
  func.func @transform_0(%arg0: i32) -> (i32, i32) {
    %c0_i32 = arith.constant 0 : i32
    %c0_i32_0 = arith.constant 0 : i32
    return %arg0, %c0_i32 : i32, i32
  }
  func.func @transform_1(%arg0: i32) -> (i32, i32) {
    %c0_i32 = arith.constant 0 : i32
    %c0_i32_0 = arith.constant 0 : i32
    %c0_i32_1 = arith.constant 0 : i32
    return %c0_i32, %c0_i32_0 : i32, i32
  }
  func.func @transform_2(%arg0: i32) -> (i32, i32) {
    %c0_i32 = arith.constant 0 : i32
    %c0_i32_0 = arith.constant 0 : i32
    %c0_i32_1 = arith.constant 0 : i32
    return %c0_i32, %c0_i32_0 : i32, i32
  }
  func.func @transform_3(%arg0: i32) -> (i32, i32) {
    %c0_i32 = arith.constant 0 : i32
    %c0_i32_0 = arith.constant 0 : i32
    %c0_i32_1 = arith.constant 0 : i32
    return %c0_i32, %c0_i32_0 : i32, i32
  }
  func.func @transform_4(%arg0: i32) -> (i32, i32) {
    %c0_i32 = arith.constant 0 : i32
    %c0_i32_0 = arith.constant 0 : i32
    return %arg0, %c0_i32 : i32, i32
  }
}

module attributes {stable_mosaic.version = 11 : i64} {
  func.func @_mm_res_kernel(%arg0: i32, %arg1: memref<128x144xbf16, #tpu.memory_space<vmem>>, %arg2: memref<144x16xbf16, #tpu.memory_space<vmem>>, %arg3: memref<1x16xf32, #tpu.memory_space<vmem>>, %arg4: memref<1x16xf32, #tpu.memory_space<vmem>>, %arg5: memref<128x16xf32, #tpu.memory_space<vmem>>, %arg6: memref<128x16xf32, #tpu.memory_space<vmem>>) attributes {dimension_semantics = [#tpu.dimension_semantics<parallel>], iteration_bounds = array<i64: 1>, scalar_prefetch = 0 : i64, scratch_operands = 0 : i64, tpu.core_type = #tpu.core_type<tc>, window_params = [{transform_indices = @transform_0, window_bounds = array<i64: 128, 144>}, {pipeline_mode = #tpu.pipeline_mode<synchronous>, transform_indices = @transform_1, window_bounds = array<i64: 144, 16>}, {pipeline_mode = #tpu.pipeline_mode<synchronous>, transform_indices = @transform_2, window_bounds = array<i64: 1, 16>}, {pipeline_mode = #tpu.pipeline_mode<synchronous>, transform_indices = @transform_3, window_bounds = array<i64: 1, 16>}, {transform_indices = @transform_4, window_bounds = array<i64: 128, 16>}, {transform_indices = @transform_5, window_bounds = array<i64: 128, 16>}]} {
    %c0 = arith.constant 0 : index
    %c0_0 = arith.constant 0 : index
    %0 = vector.load %arg1[%c0, %c0_0] : memref<128x144xbf16, #tpu.memory_space<vmem>>, vector<128x144xbf16>
    %c0_1 = arith.constant 0 : index
    %c0_2 = arith.constant 0 : index
    %1 = vector.load %arg2[%c0_1, %c0_2] : memref<144x16xbf16, #tpu.memory_space<vmem>>, vector<144x16xbf16>
    %cst = arith.constant dense<0.000000e+00> : vector<128x16xf32>
    %2 = tpu.matmul %0, %1, %cst {dimension_numbers = #tpu.dot_dimension_numbers<[1], [0], [0], [1], [0, 0, 1, 1], [], []>} : vector<128x144xbf16>, vector<144x16xbf16>, vector<128x16xf32> -> vector<128x16xf32>
    %c0_3 = arith.constant 0 : index
    %c0_4 = arith.constant 0 : index
    %3 = vector.load %arg3[%c0_3, %c0_4] : memref<1x16xf32, #tpu.memory_space<vmem>>, vector<1x16xf32>
    %4 = vector.broadcast %3 : vector<1x16xf32> to vector<128x16xf32>
    %5 = arith.mulf %2, %4 : vector<128x16xf32>
    %c0_5 = arith.constant 0 : index
    %c0_6 = arith.constant 0 : index
    %6 = vector.load %arg4[%c0_5, %c0_6] : memref<1x16xf32, #tpu.memory_space<vmem>>, vector<1x16xf32>
    %7 = vector.broadcast %6 : vector<1x16xf32> to vector<128x16xf32>
    %8 = arith.addf %5, %7 : vector<128x16xf32>
    %c0_7 = arith.constant 0 : index
    %c0_8 = arith.constant 0 : index
    %9 = vector.load %arg5[%c0_7, %c0_8] : memref<128x16xf32, #tpu.memory_space<vmem>>, vector<128x16xf32>
    %10 = arith.addf %8, %9 : vector<128x16xf32>
    %cst_9 = arith.constant 0.000000e+00 : f32
    %11 = vector.broadcast %cst_9 : f32 to vector<128x16xf32>
    %12 = arith.maximumf %10, %11 : vector<128x16xf32>
    %c0_10 = arith.constant 0 : index
    %c0_11 = arith.constant 0 : index
    %13 = vector.load %arg6[%c0_10, %c0_11] : memref<128x16xf32, #tpu.memory_space<vmem>>, vector<128x16xf32>
    tpu.vector_store %arg6[%c0_10, %c0_11], %12 {strides = array<i32>} : memref<128x16xf32, #tpu.memory_space<vmem>>, vector<128x16xf32>,
    return
  }
  func.func @transform_0(%arg0: i32) -> (i32, i32) {
    %c0_i32 = arith.constant 0 : i32
    %c0_i32_0 = arith.constant 0 : i32
    return %arg0, %c0_i32 : i32, i32
  }
  func.func @transform_1(%arg0: i32) -> (i32, i32) {
    %c0_i32 = arith.constant 0 : i32
    %c0_i32_0 = arith.constant 0 : i32
    %c0_i32_1 = arith.constant 0 : i32
    return %c0_i32, %c0_i32_0 : i32, i32
  }
  func.func @transform_2(%arg0: i32) -> (i32, i32) {
    %c0_i32 = arith.constant 0 : i32
    %c0_i32_0 = arith.constant 0 : i32
    %c0_i32_1 = arith.constant 0 : i32
    return %c0_i32, %c0_i32_0 : i32, i32
  }
  func.func @transform_3(%arg0: i32) -> (i32, i32) {
    %c0_i32 = arith.constant 0 : i32
    %c0_i32_0 = arith.constant 0 : i32
    %c0_i32_1 = arith.constant 0 : i32
    return %c0_i32, %c0_i32_0 : i32, i32
  }
  func.func @transform_4(%arg0: i32) -> (i32, i32) {
    %c0_i32 = arith.constant 0 : i32
    %c0_i32_0 = arith.constant 0 : i32
    return %arg0, %c0_i32 : i32, i32
  }
  func.func @transform_5(%arg0: i32) -> (i32, i32) {
    %c0_i32 = arith.constant 0 : i32
    %c0_i32_0 = arith.constant 0 : i32
    return %arg0, %c0_i32 : i32, i32
  }
}

module attributes {stable_mosaic.version = 11 : i64} {
  func.func @_mm_kernel(%arg0: i32, %arg1: memref<32x144xbf16, #tpu.memory_space<vmem>>, %arg2: memref<144x16xbf16, #tpu.memory_space<vmem>>, %arg3: memref<1x16xf32, #tpu.memory_space<vmem>>, %arg4: memref<1x16xf32, #tpu.memory_space<vmem>>, %arg5: memref<32x16xf32, #tpu.memory_space<vmem>>) attributes {dimension_semantics = [#tpu.dimension_semantics<parallel>], iteration_bounds = array<i64: 1>, scalar_prefetch = 0 : i64, scratch_operands = 0 : i64, tpu.core_type = #tpu.core_type<tc>, window_params = [{transform_indices = @transform_0, window_bounds = array<i64: 32, 144>}, {pipeline_mode = #tpu.pipeline_mode<synchronous>, transform_indices = @transform_1, window_bounds = array<i64: 144, 16>}, {pipeline_mode = #tpu.pipeline_mode<synchronous>, transform_indices = @transform_2, window_bounds = array<i64: 1, 16>}, {pipeline_mode = #tpu.pipeline_mode<synchronous>, transform_indices = @transform_3, window_bounds = array<i64: 1, 16>}, {transform_indices = @transform_4, window_bounds = array<i64: 32, 16>}]} {
    %c0 = arith.constant 0 : index
    %c0_0 = arith.constant 0 : index
    %0 = vector.load %arg1[%c0, %c0_0] : memref<32x144xbf16, #tpu.memory_space<vmem>>, vector<32x144xbf16>
    %c0_1 = arith.constant 0 : index
    %c0_2 = arith.constant 0 : index
    %1 = vector.load %arg2[%c0_1, %c0_2] : memref<144x16xbf16, #tpu.memory_space<vmem>>, vector<144x16xbf16>
    %cst = arith.constant dense<0.000000e+00> : vector<32x16xf32>
    %2 = tpu.matmul %0, %1, %cst {dimension_numbers = #tpu.dot_dimension_numbers<[1], [0], [0], [1], [0, 0, 1, 1], [], []>} : vector<32x144xbf16>, vector<144x16xbf16>, vector<32x16xf32> -> vector<32x16xf32>
    %c0_3 = arith.constant 0 : index
    %c0_4 = arith.constant 0 : index
    %3 = vector.load %arg3[%c0_3, %c0_4] : memref<1x16xf32, #tpu.memory_space<vmem>>, vector<1x16xf32>
    %4 = vector.broadcast %3 : vector<1x16xf32> to vector<32x16xf32>
    %5 = arith.mulf %2, %4 : vector<32x16xf32>
    %c0_5 = arith.constant 0 : index
    %c0_6 = arith.constant 0 : index
    %6 = vector.load %arg4[%c0_5, %c0_6] : memref<1x16xf32, #tpu.memory_space<vmem>>, vector<1x16xf32>
    %7 = vector.broadcast %6 : vector<1x16xf32> to vector<32x16xf32>
    %8 = arith.addf %5, %7 : vector<32x16xf32>
    %cst_7 = arith.constant 0.000000e+00 : f32
    %9 = vector.broadcast %cst_7 : f32 to vector<32x16xf32>
    %10 = arith.maximumf %8, %9 : vector<32x16xf32>
    %c0_8 = arith.constant 0 : index
    %c0_9 = arith.constant 0 : index
    %11 = vector.load %arg5[%c0_8, %c0_9] : memref<32x16xf32, #tpu.memory_space<vmem>>, vector<32x16xf32>
    tpu.vector_store %arg5[%c0_8, %c0_9], %10 {strides = array<i32>} : memref<32x16xf32, #tpu.memory_space<vmem>>, vector<32x16xf32>,
    return
  }
  func.func @transform_0(%arg0: i32) -> (i32, i32) {
    %c0_i32 = arith.constant 0 : i32
    %c0_i32_0 = arith.constant 0 : i32
    return %arg0, %c0_i32 : i32, i32
  }
  func.func @transform_1(%arg0: i32) -> (i32, i32) {
    %c0_i32 = arith.constant 0 : i32
    %c0_i32_0 = arith.constant 0 : i32
    %c0_i32_1 = arith.constant 0 : i32
    return %c0_i32, %c0_i32_0 : i32, i32
  }
  func.func @transform_2(%arg0: i32) -> (i32, i32) {
    %c0_i32 = arith.constant 0 : i32
    %c0_i32_0 = arith.constant 0 : i32
    %c0_i32_1 = arith.constant 0 : i32
    return %c0_i32, %c0_i32_0 : i32, i32
  }
  func.func @transform_3(%arg0: i32) -> (i32, i32) {
    %c0_i32 = arith.constant 0 : i32
    %c0_i32_0 = arith.constant 0 : i32
    %c0_i32_1 = arith.constant 0 : i32
    return %c0_i32, %c0_i32_0 : i32, i32
  }
  func.func @transform_4(%arg0: i32) -> (i32, i32) {
    %c0_i32 = arith.constant 0 : i32
    %c0_i32_0 = arith.constant 0 : i32
    return %arg0, %c0_i32 : i32, i32
  }
}

module attributes {stable_mosaic.version = 11 : i64} {
  func.func @_mm_kernel(%arg0: i32, %arg1: memref<32x16xbf16, #tpu.memory_space<vmem>>, %arg2: memref<16x16xbf16, #tpu.memory_space<vmem>>, %arg3: memref<1x16xf32, #tpu.memory_space<vmem>>, %arg4: memref<1x16xf32, #tpu.memory_space<vmem>>, %arg5: memref<32x16xf32, #tpu.memory_space<vmem>>) attributes {dimension_semantics = [#tpu.dimension_semantics<parallel>], iteration_bounds = array<i64: 1>, scalar_prefetch = 0 : i64, scratch_operands = 0 : i64, tpu.core_type = #tpu.core_type<tc>, window_params = [{transform_indices = @transform_0, window_bounds = array<i64: 32, 16>}, {pipeline_mode = #tpu.pipeline_mode<synchronous>, transform_indices = @transform_1, window_bounds = array<i64: 16, 16>}, {pipeline_mode = #tpu.pipeline_mode<synchronous>, transform_indices = @transform_2, window_bounds = array<i64: 1, 16>}, {pipeline_mode = #tpu.pipeline_mode<synchronous>, transform_indices = @transform_3, window_bounds = array<i64: 1, 16>}, {transform_indices = @transform_4, window_bounds = array<i64: 32, 16>}]} {
    %c0 = arith.constant 0 : index
    %c0_0 = arith.constant 0 : index
    %0 = vector.load %arg1[%c0, %c0_0] : memref<32x16xbf16, #tpu.memory_space<vmem>>, vector<32x16xbf16>
    %c0_1 = arith.constant 0 : index
    %c0_2 = arith.constant 0 : index
    %1 = vector.load %arg2[%c0_1, %c0_2] : memref<16x16xbf16, #tpu.memory_space<vmem>>, vector<16x16xbf16>
    %cst = arith.constant dense<0.000000e+00> : vector<32x16xf32>
    %2 = tpu.matmul %0, %1, %cst {dimension_numbers = #tpu.dot_dimension_numbers<[1], [0], [0], [1], [0, 0, 1, 1], [], []>} : vector<32x16xbf16>, vector<16x16xbf16>, vector<32x16xf32> -> vector<32x16xf32>
    %c0_3 = arith.constant 0 : index
    %c0_4 = arith.constant 0 : index
    %3 = vector.load %arg3[%c0_3, %c0_4] : memref<1x16xf32, #tpu.memory_space<vmem>>, vector<1x16xf32>
    %4 = vector.broadcast %3 : vector<1x16xf32> to vector<32x16xf32>
    %5 = arith.mulf %2, %4 : vector<32x16xf32>
    %c0_5 = arith.constant 0 : index
    %c0_6 = arith.constant 0 : index
    %6 = vector.load %arg4[%c0_5, %c0_6] : memref<1x16xf32, #tpu.memory_space<vmem>>, vector<1x16xf32>
    %7 = vector.broadcast %6 : vector<1x16xf32> to vector<32x16xf32>
    %8 = arith.addf %5, %7 : vector<32x16xf32>
    %c0_7 = arith.constant 0 : index
    %c0_8 = arith.constant 0 : index
    %9 = vector.load %arg5[%c0_7, %c0_8] : memref<32x16xf32, #tpu.memory_space<vmem>>, vector<32x16xf32>
    tpu.vector_store %arg5[%c0_7, %c0_8], %8 {strides = array<i32>} : memref<32x16xf32, #tpu.memory_space<vmem>>, vector<32x16xf32>,
    return
  }
  func.func @transform_0(%arg0: i32) -> (i32, i32) {
    %c0_i32 = arith.constant 0 : i32
    %c0_i32_0 = arith.constant 0 : i32
    return %arg0, %c0_i32 : i32, i32
  }
  func.func @transform_1(%arg0: i32) -> (i32, i32) {
    %c0_i32 = arith.constant 0 : i32
    %c0_i32_0 = arith.constant 0 : i32
    %c0_i32_1 = arith.constant 0 : i32
    return %c0_i32, %c0_i32_0 : i32, i32
  }
  func.func @transform_2(%arg0: i32) -> (i32, i32) {
    %c0_i32 = arith.constant 0 : i32
    %c0_i32_0 = arith.constant 0 : i32
    %c0_i32_1 = arith.constant 0 : i32
    return %c0_i32, %c0_i32_0 : i32, i32
  }
  func.func @transform_3(%arg0: i32) -> (i32, i32) {
    %c0_i32 = arith.constant 0 : i32
    %c0_i32_0 = arith.constant 0 : i32
    %c0_i32_1 = arith.constant 0 : i32
    return %c0_i32, %c0_i32_0 : i32, i32
  }
  func.func @transform_4(%arg0: i32) -> (i32, i32) {
    %c0_i32 = arith.constant 0 : i32
    %c0_i32_0 = arith.constant 0 : i32
    return %arg0, %c0_i32 : i32, i32
  }
}

module attributes {stable_mosaic.version = 11 : i64} {
  func.func @_mm_res_kernel(%arg0: i32, %arg1: memref<32x144xbf16, #tpu.memory_space<vmem>>, %arg2: memref<144x16xbf16, #tpu.memory_space<vmem>>, %arg3: memref<1x16xf32, #tpu.memory_space<vmem>>, %arg4: memref<1x16xf32, #tpu.memory_space<vmem>>, %arg5: memref<32x16xf32, #tpu.memory_space<vmem>>, %arg6: memref<32x16xf32, #tpu.memory_space<vmem>>) attributes {dimension_semantics = [#tpu.dimension_semantics<parallel>], iteration_bounds = array<i64: 1>, scalar_prefetch = 0 : i64, scratch_operands = 0 : i64, tpu.core_type = #tpu.core_type<tc>, window_params = [{transform_indices = @transform_0, window_bounds = array<i64: 32, 144>}, {pipeline_mode = #tpu.pipeline_mode<synchronous>, transform_indices = @transform_1, window_bounds = array<i64: 144, 16>}, {pipeline_mode = #tpu.pipeline_mode<synchronous>, transform_indices = @transform_2, window_bounds = array<i64: 1, 16>}, {pipeline_mode = #tpu.pipeline_mode<synchronous>, transform_indices = @transform_3, window_bounds = array<i64: 1, 16>}, {transform_indices = @transform_4, window_bounds = array<i64: 32, 16>}, {transform_indices = @transform_5, window_bounds = array<i64: 32, 16>}]} {
    %c0 = arith.constant 0 : index
    %c0_0 = arith.constant 0 : index
    %0 = vector.load %arg1[%c0, %c0_0] : memref<32x144xbf16, #tpu.memory_space<vmem>>, vector<32x144xbf16>
    %c0_1 = arith.constant 0 : index
    %c0_2 = arith.constant 0 : index
    %1 = vector.load %arg2[%c0_1, %c0_2] : memref<144x16xbf16, #tpu.memory_space<vmem>>, vector<144x16xbf16>
    %cst = arith.constant dense<0.000000e+00> : vector<32x16xf32>
    %2 = tpu.matmul %0, %1, %cst {dimension_numbers = #tpu.dot_dimension_numbers<[1], [0], [0], [1], [0, 0, 1, 1], [], []>} : vector<32x144xbf16>, vector<144x16xbf16>, vector<32x16xf32> -> vector<32x16xf32>
    %c0_3 = arith.constant 0 : index
    %c0_4 = arith.constant 0 : index
    %3 = vector.load %arg3[%c0_3, %c0_4] : memref<1x16xf32, #tpu.memory_space<vmem>>, vector<1x16xf32>
    %4 = vector.broadcast %3 : vector<1x16xf32> to vector<32x16xf32>
    %5 = arith.mulf %2, %4 : vector<32x16xf32>
    %c0_5 = arith.constant 0 : index
    %c0_6 = arith.constant 0 : index
    %6 = vector.load %arg4[%c0_5, %c0_6] : memref<1x16xf32, #tpu.memory_space<vmem>>, vector<1x16xf32>
    %7 = vector.broadcast %6 : vector<1x16xf32> to vector<32x16xf32>
    %8 = arith.addf %5, %7 : vector<32x16xf32>
    %c0_7 = arith.constant 0 : index
    %c0_8 = arith.constant 0 : index
    %9 = vector.load %arg5[%c0_7, %c0_8] : memref<32x16xf32, #tpu.memory_space<vmem>>, vector<32x16xf32>
    %10 = arith.addf %8, %9 : vector<32x16xf32>
    %cst_9 = arith.constant 0.000000e+00 : f32
    %11 = vector.broadcast %cst_9 : f32 to vector<32x16xf32>
    %12 = arith.maximumf %10, %11 : vector<32x16xf32>
    %c0_10 = arith.constant 0 : index
    %c0_11 = arith.constant 0 : index
    %13 = vector.load %arg6[%c0_10, %c0_11] : memref<32x16xf32, #tpu.memory_space<vmem>>, vector<32x16xf32>
    tpu.vector_store %arg6[%c0_10, %c0_11], %12 {strides = array<i32>} : memref<32x16xf32, #tpu.memory_space<vmem>>, vector<32x16xf32>,
    return
  }
  func.func @transform_0(%arg0: i32) -> (i32, i32) {
    %c0_i32 = arith.constant 0 : i32
    %c0_i32_0 = arith.constant 0 : i32
    return %arg0, %c0_i32 : i32, i32
  }
  func.func @transform_1(%arg0: i32) -> (i32, i32) {
    %c0_i32 = arith.constant 0 : i32
    %c0_i32_0 = arith.constant 0 : i32
    %c0_i32_1 = arith.constant 0 : i32
    return %c0_i32, %c0_i32_0 : i32, i32
  }
  func.func @transform_2(%arg0: i32) -> (i32, i32) {
    %c0_i32 = arith.constant 0 : i32
    %c0_i32_0 = arith.constant 0 : i32
    %c0_i32_1 = arith.constant 0 : i32
    return %c0_i32, %c0_i32_0 : i32, i32
  }
  func.func @transform_3(%arg0: i32) -> (i32, i32) {
    %c0_i32 = arith.constant 0 : i32
    %c0_i32_0 = arith.constant 0 : i32
    %c0_i32_1 = arith.constant 0 : i32
    return %c0_i32, %c0_i32_0 : i32, i32
  }
  func.func @transform_4(%arg0: i32) -> (i32, i32) {
    %c0_i32 = arith.constant 0 : i32
    %c0_i32_0 = arith.constant 0 : i32
    return %arg0, %c0_i32 : i32, i32
  }
  func.func @transform_5(%arg0: i32) -> (i32, i32) {
    %c0_i32 = arith.constant 0 : i32
    %c0_i32_0 = arith.constant 0 : i32
    return %arg0, %c0_i32 : i32, i32
  }
}

module attributes {stable_mosaic.version = 11 : i64} {
  func.func @_mm_kernel(%arg0: i32, %arg1: memref<8x144xbf16, #tpu.memory_space<vmem>>, %arg2: memref<144x32xbf16, #tpu.memory_space<vmem>>, %arg3: memref<1x32xf32, #tpu.memory_space<vmem>>, %arg4: memref<1x32xf32, #tpu.memory_space<vmem>>, %arg5: memref<8x32xf32, #tpu.memory_space<vmem>>) attributes {dimension_semantics = [#tpu.dimension_semantics<parallel>], iteration_bounds = array<i64: 1>, scalar_prefetch = 0 : i64, scratch_operands = 0 : i64, tpu.core_type = #tpu.core_type<tc>, window_params = [{transform_indices = @transform_0, window_bounds = array<i64: 8, 144>}, {pipeline_mode = #tpu.pipeline_mode<synchronous>, transform_indices = @transform_1, window_bounds = array<i64: 144, 32>}, {pipeline_mode = #tpu.pipeline_mode<synchronous>, transform_indices = @transform_2, window_bounds = array<i64: 1, 32>}, {pipeline_mode = #tpu.pipeline_mode<synchronous>, transform_indices = @transform_3, window_bounds = array<i64: 1, 32>}, {transform_indices = @transform_4, window_bounds = array<i64: 8, 32>}]} {
    %c0 = arith.constant 0 : index
    %c0_0 = arith.constant 0 : index
    %0 = vector.load %arg1[%c0, %c0_0] : memref<8x144xbf16, #tpu.memory_space<vmem>>, vector<8x144xbf16>
    %c0_1 = arith.constant 0 : index
    %c0_2 = arith.constant 0 : index
    %1 = vector.load %arg2[%c0_1, %c0_2] : memref<144x32xbf16, #tpu.memory_space<vmem>>, vector<144x32xbf16>
    %cst = arith.constant dense<0.000000e+00> : vector<8x32xf32>
    %2 = tpu.matmul %0, %1, %cst {dimension_numbers = #tpu.dot_dimension_numbers<[1], [0], [0], [1], [0, 0, 1, 1], [], []>} : vector<8x144xbf16>, vector<144x32xbf16>, vector<8x32xf32> -> vector<8x32xf32>
    %c0_3 = arith.constant 0 : index
    %c0_4 = arith.constant 0 : index
    %3 = vector.load %arg3[%c0_3, %c0_4] : memref<1x32xf32, #tpu.memory_space<vmem>>, vector<1x32xf32>
    %4 = vector.broadcast %3 : vector<1x32xf32> to vector<8x32xf32>
    %5 = arith.mulf %2, %4 : vector<8x32xf32>
    %c0_5 = arith.constant 0 : index
    %c0_6 = arith.constant 0 : index
    %6 = vector.load %arg4[%c0_5, %c0_6] : memref<1x32xf32, #tpu.memory_space<vmem>>, vector<1x32xf32>
    %7 = vector.broadcast %6 : vector<1x32xf32> to vector<8x32xf32>
    %8 = arith.addf %5, %7 : vector<8x32xf32>
    %cst_7 = arith.constant 0.000000e+00 : f32
    %9 = vector.broadcast %cst_7 : f32 to vector<8x32xf32>
    %10 = arith.maximumf %8, %9 : vector<8x32xf32>
    %c0_8 = arith.constant 0 : index
    %c0_9 = arith.constant 0 : index
    %11 = vector.load %arg5[%c0_8, %c0_9] : memref<8x32xf32, #tpu.memory_space<vmem>>, vector<8x32xf32>
    tpu.vector_store %arg5[%c0_8, %c0_9], %10 {strides = array<i32>} : memref<8x32xf32, #tpu.memory_space<vmem>>, vector<8x32xf32>,
    return
  }
  func.func @transform_0(%arg0: i32) -> (i32, i32) {
    %c0_i32 = arith.constant 0 : i32
    %c0_i32_0 = arith.constant 0 : i32
    return %arg0, %c0_i32 : i32, i32
  }
  func.func @transform_1(%arg0: i32) -> (i32, i32) {
    %c0_i32 = arith.constant 0 : i32
    %c0_i32_0 = arith.constant 0 : i32
    %c0_i32_1 = arith.constant 0 : i32
    return %c0_i32, %c0_i32_0 : i32, i32
  }
  func.func @transform_2(%arg0: i32) -> (i32, i32) {
    %c0_i32 = arith.constant 0 : i32
    %c0_i32_0 = arith.constant 0 : i32
    %c0_i32_1 = arith.constant 0 : i32
    return %c0_i32, %c0_i32_0 : i32, i32
  }
  func.func @transform_3(%arg0: i32) -> (i32, i32) {
    %c0_i32 = arith.constant 0 : i32
    %c0_i32_0 = arith.constant 0 : i32
    %c0_i32_1 = arith.constant 0 : i32
    return %c0_i32, %c0_i32_0 : i32, i32
  }
  func.func @transform_4(%arg0: i32) -> (i32, i32) {
    %c0_i32 = arith.constant 0 : i32
    %c0_i32_0 = arith.constant 0 : i32
    return %arg0, %c0_i32 : i32, i32
  }
}

module attributes {stable_mosaic.version = 11 : i64} {
  func.func @_mm_kernel(%arg0: i32, %arg1: memref<8x16xbf16, #tpu.memory_space<vmem>>, %arg2: memref<16x32xbf16, #tpu.memory_space<vmem>>, %arg3: memref<1x32xf32, #tpu.memory_space<vmem>>, %arg4: memref<1x32xf32, #tpu.memory_space<vmem>>, %arg5: memref<8x32xf32, #tpu.memory_space<vmem>>) attributes {dimension_semantics = [#tpu.dimension_semantics<parallel>], iteration_bounds = array<i64: 1>, scalar_prefetch = 0 : i64, scratch_operands = 0 : i64, tpu.core_type = #tpu.core_type<tc>, window_params = [{transform_indices = @transform_0, window_bounds = array<i64: 8, 16>}, {pipeline_mode = #tpu.pipeline_mode<synchronous>, transform_indices = @transform_1, window_bounds = array<i64: 16, 32>}, {pipeline_mode = #tpu.pipeline_mode<synchronous>, transform_indices = @transform_2, window_bounds = array<i64: 1, 32>}, {pipeline_mode = #tpu.pipeline_mode<synchronous>, transform_indices = @transform_3, window_bounds = array<i64: 1, 32>}, {transform_indices = @transform_4, window_bounds = array<i64: 8, 32>}]} {
    %c0 = arith.constant 0 : index
    %c0_0 = arith.constant 0 : index
    %0 = vector.load %arg1[%c0, %c0_0] : memref<8x16xbf16, #tpu.memory_space<vmem>>, vector<8x16xbf16>
    %c0_1 = arith.constant 0 : index
    %c0_2 = arith.constant 0 : index
    %1 = vector.load %arg2[%c0_1, %c0_2] : memref<16x32xbf16, #tpu.memory_space<vmem>>, vector<16x32xbf16>
    %cst = arith.constant dense<0.000000e+00> : vector<8x32xf32>
    %2 = tpu.matmul %0, %1, %cst {dimension_numbers = #tpu.dot_dimension_numbers<[1], [0], [0], [1], [0, 0, 1, 1], [], []>} : vector<8x16xbf16>, vector<16x32xbf16>, vector<8x32xf32> -> vector<8x32xf32>
    %c0_3 = arith.constant 0 : index
    %c0_4 = arith.constant 0 : index
    %3 = vector.load %arg3[%c0_3, %c0_4] : memref<1x32xf32, #tpu.memory_space<vmem>>, vector<1x32xf32>
    %4 = vector.broadcast %3 : vector<1x32xf32> to vector<8x32xf32>
    %5 = arith.mulf %2, %4 : vector<8x32xf32>
    %c0_5 = arith.constant 0 : index
    %c0_6 = arith.constant 0 : index
    %6 = vector.load %arg4[%c0_5, %c0_6] : memref<1x32xf32, #tpu.memory_space<vmem>>, vector<1x32xf32>
    %7 = vector.broadcast %6 : vector<1x32xf32> to vector<8x32xf32>
    %8 = arith.addf %5, %7 : vector<8x32xf32>
    %c0_7 = arith.constant 0 : index
    %c0_8 = arith.constant 0 : index
    %9 = vector.load %arg5[%c0_7, %c0_8] : memref<8x32xf32, #tpu.memory_space<vmem>>, vector<8x32xf32>
    tpu.vector_store %arg5[%c0_7, %c0_8], %8 {strides = array<i32>} : memref<8x32xf32, #tpu.memory_space<vmem>>, vector<8x32xf32>,
    return
  }
  func.func @transform_0(%arg0: i32) -> (i32, i32) {
    %c0_i32 = arith.constant 0 : i32
    %c0_i32_0 = arith.constant 0 : i32
    return %arg0, %c0_i32 : i32, i32
  }
  func.func @transform_1(%arg0: i32) -> (i32, i32) {
    %c0_i32 = arith.constant 0 : i32
    %c0_i32_0 = arith.constant 0 : i32
    %c0_i32_1 = arith.constant 0 : i32
    return %c0_i32, %c0_i32_0 : i32, i32
  }
  func.func @transform_2(%arg0: i32) -> (i32, i32) {
    %c0_i32 = arith.constant 0 : i32
    %c0_i32_0 = arith.constant 0 : i32
    %c0_i32_1 = arith.constant 0 : i32
    return %c0_i32, %c0_i32_0 : i32, i32
  }
  func.func @transform_3(%arg0: i32) -> (i32, i32) {
    %c0_i32 = arith.constant 0 : i32
    %c0_i32_0 = arith.constant 0 : i32
    %c0_i32_1 = arith.constant 0 : i32
    return %c0_i32, %c0_i32_0 : i32, i32
  }
  func.func @transform_4(%arg0: i32) -> (i32, i32) {
    %c0_i32 = arith.constant 0 : i32
    %c0_i32_0 = arith.constant 0 : i32
    return %arg0, %c0_i32 : i32, i32
  }
}

module attributes {stable_mosaic.version = 11 : i64} {
  func.func @_mm_res_kernel(%arg0: i32, %arg1: memref<8x288xbf16, #tpu.memory_space<vmem>>, %arg2: memref<288x32xbf16, #tpu.memory_space<vmem>>, %arg3: memref<1x32xf32, #tpu.memory_space<vmem>>, %arg4: memref<1x32xf32, #tpu.memory_space<vmem>>, %arg5: memref<8x32xf32, #tpu.memory_space<vmem>>, %arg6: memref<8x32xf32, #tpu.memory_space<vmem>>) attributes {dimension_semantics = [#tpu.dimension_semantics<parallel>], iteration_bounds = array<i64: 1>, scalar_prefetch = 0 : i64, scratch_operands = 0 : i64, tpu.core_type = #tpu.core_type<tc>, window_params = [{transform_indices = @transform_0, window_bounds = array<i64: 8, 288>}, {pipeline_mode = #tpu.pipeline_mode<synchronous>, transform_indices = @transform_1, window_bounds = array<i64: 288, 32>}, {pipeline_mode = #tpu.pipeline_mode<synchronous>, transform_indices = @transform_2, window_bounds = array<i64: 1, 32>}, {pipeline_mode = #tpu.pipeline_mode<synchronous>, transform_indices = @transform_3, window_bounds = array<i64: 1, 32>}, {transform_indices = @transform_4, window_bounds = array<i64: 8, 32>}, {transform_indices = @transform_5, window_bounds = array<i64: 8, 32>}]} {
    %c0 = arith.constant 0 : index
    %c0_0 = arith.constant 0 : index
    %0 = vector.load %arg1[%c0, %c0_0] : memref<8x288xbf16, #tpu.memory_space<vmem>>, vector<8x288xbf16>
    %c0_1 = arith.constant 0 : index
    %c0_2 = arith.constant 0 : index
    %1 = vector.load %arg2[%c0_1, %c0_2] : memref<288x32xbf16, #tpu.memory_space<vmem>>, vector<288x32xbf16>
    %cst = arith.constant dense<0.000000e+00> : vector<8x32xf32>
    %2 = tpu.matmul %0, %1, %cst {dimension_numbers = #tpu.dot_dimension_numbers<[1], [0], [0], [1], [0, 0, 1, 1], [], []>} : vector<8x288xbf16>, vector<288x32xbf16>, vector<8x32xf32> -> vector<8x32xf32>
    %c0_3 = arith.constant 0 : index
    %c0_4 = arith.constant 0 : index
    %3 = vector.load %arg3[%c0_3, %c0_4] : memref<1x32xf32, #tpu.memory_space<vmem>>, vector<1x32xf32>
    %4 = vector.broadcast %3 : vector<1x32xf32> to vector<8x32xf32>
    %5 = arith.mulf %2, %4 : vector<8x32xf32>
    %c0_5 = arith.constant 0 : index
    %c0_6 = arith.constant 0 : index
    %6 = vector.load %arg4[%c0_5, %c0_6] : memref<1x32xf32, #tpu.memory_space<vmem>>, vector<1x32xf32>
    %7 = vector.broadcast %6 : vector<1x32xf32> to vector<8x32xf32>
    %8 = arith.addf %5, %7 : vector<8x32xf32>
    %c0_7 = arith.constant 0 : index
    %c0_8 = arith.constant 0 : index
    %9 = vector.load %arg5[%c0_7, %c0_8] : memref<8x32xf32, #tpu.memory_space<vmem>>, vector<8x32xf32>
    %10 = arith.addf %8, %9 : vector<8x32xf32>
    %cst_9 = arith.constant 0.000000e+00 : f32
    %11 = vector.broadcast %cst_9 : f32 to vector<8x32xf32>
    %12 = arith.maximumf %10, %11 : vector<8x32xf32>
    %c0_10 = arith.constant 0 : index
    %c0_11 = arith.constant 0 : index
    %13 = vector.load %arg6[%c0_10, %c0_11] : memref<8x32xf32, #tpu.memory_space<vmem>>, vector<8x32xf32>
    tpu.vector_store %arg6[%c0_10, %c0_11], %12 {strides = array<i32>} : memref<8x32xf32, #tpu.memory_space<vmem>>, vector<8x32xf32>,
    return
  }
  func.func @transform_0(%arg0: i32) -> (i32, i32) {
    %c0_i32 = arith.constant 0 : i32
    %c0_i32_0 = arith.constant 0 : i32
    return %arg0, %c0_i32 : i32, i32
  }
  func.func @transform_1(%arg0: i32) -> (i32, i32) {
    %c0_i32 = arith.constant 0 : i32
    %c0_i32_0 = arith.constant 0 : i32
    %c0_i32_1 = arith.constant 0 : i32
    return %c0_i32, %c0_i32_0 : i32, i32
  }
  func.func @transform_2(%arg0: i32) -> (i32, i32) {
    %c0_i32 = arith.constant 0 : i32
    %c0_i32_0 = arith.constant 0 : i32
    %c0_i32_1 = arith.constant 0 : i32
    return %c0_i32, %c0_i32_0 : i32, i32
  }
  func.func @transform_3(%arg0: i32) -> (i32, i32) {
    %c0_i32 = arith.constant 0 : i32
    %c0_i32_0 = arith.constant 0 : i32
    %c0_i32_1 = arith.constant 0 : i32
    return %c0_i32, %c0_i32_0 : i32, i32
  }
  func.func @transform_4(%arg0: i32) -> (i32, i32) {
    %c0_i32 = arith.constant 0 : i32
    %c0_i32_0 = arith.constant 0 : i32
    return %arg0, %c0_i32 : i32, i32
  }
  func.func @transform_5(%arg0: i32) -> (i32, i32) {
    %c0_i32 = arith.constant 0 : i32
    %c0_i32_0 = arith.constant 0 : i32
    return %arg0, %c0_i32 : i32, i32
  }
}

module attributes {stable_mosaic.version = 11 : i64} {
  func.func @_mm_kernel(%arg0: i32, %arg1: memref<8x288xbf16, #tpu.memory_space<vmem>>, %arg2: memref<288x32xbf16, #tpu.memory_space<vmem>>, %arg3: memref<1x32xf32, #tpu.memory_space<vmem>>, %arg4: memref<1x32xf32, #tpu.memory_space<vmem>>, %arg5: memref<8x32xf32, #tpu.memory_space<vmem>>) attributes {dimension_semantics = [#tpu.dimension_semantics<parallel>], iteration_bounds = array<i64: 1>, scalar_prefetch = 0 : i64, scratch_operands = 0 : i64, tpu.core_type = #tpu.core_type<tc>, window_params = [{transform_indices = @transform_0, window_bounds = array<i64: 8, 288>}, {pipeline_mode = #tpu.pipeline_mode<synchronous>, transform_indices = @transform_1, window_bounds = array<i64: 288, 32>}, {pipeline_mode = #tpu.pipeline_mode<synchronous>, transform_indices = @transform_2, window_bounds = array<i64: 1, 32>}, {pipeline_mode = #tpu.pipeline_mode<synchronous>, transform_indices = @transform_3, window_bounds = array<i64: 1, 32>}, {transform_indices = @transform_4, window_bounds = array<i64: 8, 32>}]} {
    %c0 = arith.constant 0 : index
    %c0_0 = arith.constant 0 : index
    %0 = vector.load %arg1[%c0, %c0_0] : memref<8x288xbf16, #tpu.memory_space<vmem>>, vector<8x288xbf16>
    %c0_1 = arith.constant 0 : index
    %c0_2 = arith.constant 0 : index
    %1 = vector.load %arg2[%c0_1, %c0_2] : memref<288x32xbf16, #tpu.memory_space<vmem>>, vector<288x32xbf16>
    %cst = arith.constant dense<0.000000e+00> : vector<8x32xf32>
    %2 = tpu.matmul %0, %1, %cst {dimension_numbers = #tpu.dot_dimension_numbers<[1], [0], [0], [1], [0, 0, 1, 1], [], []>} : vector<8x288xbf16>, vector<288x32xbf16>, vector<8x32xf32> -> vector<8x32xf32>
    %c0_3 = arith.constant 0 : index
    %c0_4 = arith.constant 0 : index
    %3 = vector.load %arg3[%c0_3, %c0_4] : memref<1x32xf32, #tpu.memory_space<vmem>>, vector<1x32xf32>
    %4 = vector.broadcast %3 : vector<1x32xf32> to vector<8x32xf32>
    %5 = arith.mulf %2, %4 : vector<8x32xf32>
    %c0_5 = arith.constant 0 : index
    %c0_6 = arith.constant 0 : index
    %6 = vector.load %arg4[%c0_5, %c0_6] : memref<1x32xf32, #tpu.memory_space<vmem>>, vector<1x32xf32>
    %7 = vector.broadcast %6 : vector<1x32xf32> to vector<8x32xf32>
    %8 = arith.addf %5, %7 : vector<8x32xf32>
    %cst_7 = arith.constant 0.000000e+00 : f32
    %9 = vector.broadcast %cst_7 : f32 to vector<8x32xf32>
    %10 = arith.maximumf %8, %9 : vector<8x32xf32>
    %c0_8 = arith.constant 0 : index
    %c0_9 = arith.constant 0 : index
    %11 = vector.load %arg5[%c0_8, %c0_9] : memref<8x32xf32, #tpu.memory_space<vmem>>, vector<8x32xf32>
    tpu.vector_store %arg5[%c0_8, %c0_9], %10 {strides = array<i32>} : memref<8x32xf32, #tpu.memory_space<vmem>>, vector<8x32xf32>,
    return
  }
  func.func @transform_0(%arg0: i32) -> (i32, i32) {
    %c0_i32 = arith.constant 0 : i32
    %c0_i32_0 = arith.constant 0 : i32
    return %arg0, %c0_i32 : i32, i32
  }
  func.func @transform_1(%arg0: i32) -> (i32, i32) {
    %c0_i32 = arith.constant 0 : i32
    %c0_i32_0 = arith.constant 0 : i32
    %c0_i32_1 = arith.constant 0 : i32
    return %c0_i32, %c0_i32_0 : i32, i32
  }
  func.func @transform_2(%arg0: i32) -> (i32, i32) {
    %c0_i32 = arith.constant 0 : i32
    %c0_i32_0 = arith.constant 0 : i32
    %c0_i32_1 = arith.constant 0 : i32
    return %c0_i32, %c0_i32_0 : i32, i32
  }
  func.func @transform_3(%arg0: i32) -> (i32, i32) {
    %c0_i32 = arith.constant 0 : i32
    %c0_i32_0 = arith.constant 0 : i32
    %c0_i32_1 = arith.constant 0 : i32
    return %c0_i32, %c0_i32_0 : i32, i32
  }
  func.func @transform_4(%arg0: i32) -> (i32, i32) {
    %c0_i32 = arith.constant 0 : i32
    %c0_i32_0 = arith.constant 0 : i32
    return %arg0, %c0_i32 : i32, i32
  }
}

module attributes {stable_mosaic.version = 11 : i64} {
  func.func @_mm_kernel(%arg0: i32, %arg1: memref<8x32xbf16, #tpu.memory_space<vmem>>, %arg2: memref<32x32xbf16, #tpu.memory_space<vmem>>, %arg3: memref<1x32xf32, #tpu.memory_space<vmem>>, %arg4: memref<1x32xf32, #tpu.memory_space<vmem>>, %arg5: memref<8x32xf32, #tpu.memory_space<vmem>>) attributes {dimension_semantics = [#tpu.dimension_semantics<parallel>], iteration_bounds = array<i64: 1>, scalar_prefetch = 0 : i64, scratch_operands = 0 : i64, tpu.core_type = #tpu.core_type<tc>, window_params = [{transform_indices = @transform_0, window_bounds = array<i64: 8, 32>}, {pipeline_mode = #tpu.pipeline_mode<synchronous>, transform_indices = @transform_1, window_bounds = array<i64: 32, 32>}, {pipeline_mode = #tpu.pipeline_mode<synchronous>, transform_indices = @transform_2, window_bounds = array<i64: 1, 32>}, {pipeline_mode = #tpu.pipeline_mode<synchronous>, transform_indices = @transform_3, window_bounds = array<i64: 1, 32>}, {transform_indices = @transform_4, window_bounds = array<i64: 8, 32>}]} {
    %c0 = arith.constant 0 : index
    %c0_0 = arith.constant 0 : index
    %0 = vector.load %arg1[%c0, %c0_0] : memref<8x32xbf16, #tpu.memory_space<vmem>>, vector<8x32xbf16>
    %c0_1 = arith.constant 0 : index
    %c0_2 = arith.constant 0 : index
    %1 = vector.load %arg2[%c0_1, %c0_2] : memref<32x32xbf16, #tpu.memory_space<vmem>>, vector<32x32xbf16>
    %cst = arith.constant dense<0.000000e+00> : vector<8x32xf32>
    %2 = tpu.matmul %0, %1, %cst {dimension_numbers = #tpu.dot_dimension_numbers<[1], [0], [0], [1], [0, 0, 1, 1], [], []>} : vector<8x32xbf16>, vector<32x32xbf16>, vector<8x32xf32> -> vector<8x32xf32>
    %c0_3 = arith.constant 0 : index
    %c0_4 = arith.constant 0 : index
    %3 = vector.load %arg3[%c0_3, %c0_4] : memref<1x32xf32, #tpu.memory_space<vmem>>, vector<1x32xf32>
    %4 = vector.broadcast %3 : vector<1x32xf32> to vector<8x32xf32>
    %5 = arith.mulf %2, %4 : vector<8x32xf32>
    %c0_5 = arith.constant 0 : index
    %c0_6 = arith.constant 0 : index
    %6 = vector.load %arg4[%c0_5, %c0_6] : memref<1x32xf32, #tpu.memory_space<vmem>>, vector<1x32xf32>
    %7 = vector.broadcast %6 : vector<1x32xf32> to vector<8x32xf32>
    %8 = arith.addf %5, %7 : vector<8x32xf32>
    %c0_7 = arith.constant 0 : index
    %c0_8 = arith.constant 0 : index
    %9 = vector.load %arg5[%c0_7, %c0_8] : memref<8x32xf32, #tpu.memory_space<vmem>>, vector<8x32xf32>
    tpu.vector_store %arg5[%c0_7, %c0_8], %8 {strides = array<i32>} : memref<8x32xf32, #tpu.memory_space<vmem>>, vector<8x32xf32>,
    return
  }
  func.func @transform_0(%arg0: i32) -> (i32, i32) {
    %c0_i32 = arith.constant 0 : i32
    %c0_i32_0 = arith.constant 0 : i32
    return %arg0, %c0_i32 : i32, i32
  }
  func.func @transform_1(%arg0: i32) -> (i32, i32) {
    %c0_i32 = arith.constant 0 : i32
    %c0_i32_0 = arith.constant 0 : i32
    %c0_i32_1 = arith.constant 0 : i32
    return %c0_i32, %c0_i32_0 : i32, i32
  }
  func.func @transform_2(%arg0: i32) -> (i32, i32) {
    %c0_i32 = arith.constant 0 : i32
    %c0_i32_0 = arith.constant 0 : i32
    %c0_i32_1 = arith.constant 0 : i32
    return %c0_i32, %c0_i32_0 : i32, i32
  }
  func.func @transform_3(%arg0: i32) -> (i32, i32) {
    %c0_i32 = arith.constant 0 : i32
    %c0_i32_0 = arith.constant 0 : i32
    %c0_i32_1 = arith.constant 0 : i32
    return %c0_i32, %c0_i32_0 : i32, i32
  }
  func.func @transform_4(%arg0: i32) -> (i32, i32) {
    %c0_i32 = arith.constant 0 : i32
    %c0_i32_0 = arith.constant 0 : i32
    return %arg0, %c0_i32 : i32, i32
  }
}

module attributes {stable_mosaic.version = 11 : i64} {
  func.func @_mm_kernel(%arg0: i32, %arg1: memref<8x128xbf16, #tpu.memory_space<vmem>>, %arg2: memref<128x128xbf16, #tpu.memory_space<vmem>>, %arg3: memref<1x128xf32, #tpu.memory_space<vmem>>, %arg4: memref<1x128xf32, #tpu.memory_space<vmem>>, %arg5: memref<8x128xf32, #tpu.memory_space<vmem>>) attributes {dimension_semantics = [#tpu.dimension_semantics<parallel>], iteration_bounds = array<i64: 1>, scalar_prefetch = 0 : i64, scratch_operands = 0 : i64, tpu.core_type = #tpu.core_type<tc>, window_params = [{transform_indices = @transform_0, window_bounds = array<i64: 8, 128>}, {pipeline_mode = #tpu.pipeline_mode<synchronous>, transform_indices = @transform_1, window_bounds = array<i64: 128, 128>}, {pipeline_mode = #tpu.pipeline_mode<synchronous>, transform_indices = @transform_2, window_bounds = array<i64: 1, 128>}, {pipeline_mode = #tpu.pipeline_mode<synchronous>, transform_indices = @transform_3, window_bounds = array<i64: 1, 128>}, {transform_indices = @transform_4, window_bounds = array<i64: 8, 128>}]} {
    %c0 = arith.constant 0 : index
    %c0_0 = arith.constant 0 : index
    %0 = vector.load %arg1[%c0, %c0_0] : memref<8x128xbf16, #tpu.memory_space<vmem>>, vector<8x128xbf16>
    %c0_1 = arith.constant 0 : index
    %c0_2 = arith.constant 0 : index
    %1 = vector.load %arg2[%c0_1, %c0_2] : memref<128x128xbf16, #tpu.memory_space<vmem>>, vector<128x128xbf16>
    %cst = arith.constant dense<0.000000e+00> : vector<8x128xf32>
    %2 = tpu.matmul %0, %1, %cst {dimension_numbers = #tpu.dot_dimension_numbers<[1], [0], [0], [1], [0, 0, 1, 1], [], []>} : vector<8x128xbf16>, vector<128x128xbf16>, vector<8x128xf32> -> vector<8x128xf32>
    %c0_3 = arith.constant 0 : index
    %c0_4 = arith.constant 0 : index
    %3 = vector.load %arg3[%c0_3, %c0_4] : memref<1x128xf32, #tpu.memory_space<vmem>>, vector<1x128xf32>
    %4 = vector.broadcast %3 : vector<1x128xf32> to vector<8x128xf32>
    %5 = arith.mulf %2, %4 : vector<8x128xf32>
    %c0_5 = arith.constant 0 : index
    %c0_6 = arith.constant 0 : index
    %6 = vector.load %arg4[%c0_5, %c0_6] : memref<1x128xf32, #tpu.memory_space<vmem>>, vector<1x128xf32>
    %7 = vector.broadcast %6 : vector<1x128xf32> to vector<8x128xf32>
    %8 = arith.addf %5, %7 : vector<8x128xf32>
    %cst_7 = arith.constant 0.000000e+00 : f32
    %9 = vector.broadcast %cst_7 : f32 to vector<8x128xf32>
    %10 = arith.maximumf %8, %9 : vector<8x128xf32>
    %c0_8 = arith.constant 0 : index
    %c0_9 = arith.constant 0 : index
    %11 = vector.load %arg5[%c0_8, %c0_9] : memref<8x128xf32, #tpu.memory_space<vmem>>, vector<8x128xf32>
    tpu.vector_store %arg5[%c0_8, %c0_9], %10 {strides = array<i32>} : memref<8x128xf32, #tpu.memory_space<vmem>>, vector<8x128xf32>,
    return
  }
  func.func @transform_0(%arg0: i32) -> (i32, i32) {
    %c0_i32 = arith.constant 0 : i32
    %c0_i32_0 = arith.constant 0 : i32
    return %arg0, %c0_i32 : i32, i32
  }
  func.func @transform_1(%arg0: i32) -> (i32, i32) {
    %c0_i32 = arith.constant 0 : i32
    %c0_i32_0 = arith.constant 0 : i32
    %c0_i32_1 = arith.constant 0 : i32
    return %c0_i32, %c0_i32_0 : i32, i32
  }
  func.func @transform_2(%arg0: i32) -> (i32, i32) {
    %c0_i32 = arith.constant 0 : i32
    %c0_i32_0 = arith.constant 0 : i32
    %c0_i32_1 = arith.constant 0 : i32
    return %c0_i32, %c0_i32_0 : i32, i32
  }
  func.func @transform_3(%arg0: i32) -> (i32, i32) {
    %c0_i32 = arith.constant 0 : i32
    %c0_i32_0 = arith.constant 0 : i32
    %c0_i32_1 = arith.constant 0 : i32
    return %c0_i32, %c0_i32_0 : i32, i32
  }
  func.func @transform_4(%arg0: i32) -> (i32, i32) {
    %c0_i32 = arith.constant 0 : i32
    %c0_i32_0 = arith.constant 0 : i32
    return %arg0, %c0_i32 : i32, i32
  }
}

module attributes {stable_mosaic.version = 11 : i64} {
  func.func @_mm_kernel(%arg0: i32, %arg1: memref<8x256xbf16, #tpu.memory_space<vmem>>, %arg2: memref<256x128xbf16, #tpu.memory_space<vmem>>, %arg3: memref<1x128xf32, #tpu.memory_space<vmem>>, %arg4: memref<1x128xf32, #tpu.memory_space<vmem>>, %arg5: memref<8x128xf32, #tpu.memory_space<vmem>>) attributes {dimension_semantics = [#tpu.dimension_semantics<parallel>], iteration_bounds = array<i64: 1>, scalar_prefetch = 0 : i64, scratch_operands = 0 : i64, tpu.core_type = #tpu.core_type<tc>, window_params = [{transform_indices = @transform_0, window_bounds = array<i64: 8, 256>}, {pipeline_mode = #tpu.pipeline_mode<synchronous>, transform_indices = @transform_1, window_bounds = array<i64: 256, 128>}, {pipeline_mode = #tpu.pipeline_mode<synchronous>, transform_indices = @transform_2, window_bounds = array<i64: 1, 128>}, {pipeline_mode = #tpu.pipeline_mode<synchronous>, transform_indices = @transform_3, window_bounds = array<i64: 1, 128>}, {transform_indices = @transform_4, window_bounds = array<i64: 8, 128>}]} {
    %c0 = arith.constant 0 : index
    %c0_0 = arith.constant 0 : index
    %0 = vector.load %arg1[%c0, %c0_0] : memref<8x256xbf16, #tpu.memory_space<vmem>>, vector<8x256xbf16>
    %c0_1 = arith.constant 0 : index
    %c0_2 = arith.constant 0 : index
    %1 = vector.load %arg2[%c0_1, %c0_2] : memref<256x128xbf16, #tpu.memory_space<vmem>>, vector<256x128xbf16>
    %cst = arith.constant dense<0.000000e+00> : vector<8x128xf32>
    %2 = tpu.matmul %0, %1, %cst {dimension_numbers = #tpu.dot_dimension_numbers<[1], [0], [0], [1], [0, 0, 1, 1], [], []>} : vector<8x256xbf16>, vector<256x128xbf16>, vector<8x128xf32> -> vector<8x128xf32>
    %c0_3 = arith.constant 0 : index
    %c0_4 = arith.constant 0 : index
    %3 = vector.load %arg3[%c0_3, %c0_4] : memref<1x128xf32, #tpu.memory_space<vmem>>, vector<1x128xf32>
    %4 = vector.broadcast %3 : vector<1x128xf32> to vector<8x128xf32>
    %5 = arith.mulf %2, %4 : vector<8x128xf32>
    %c0_5 = arith.constant 0 : index
    %c0_6 = arith.constant 0 : index
    %6 = vector.load %arg4[%c0_5, %c0_6] : memref<1x128xf32, #tpu.memory_space<vmem>>, vector<1x128xf32>
    %7 = vector.broadcast %6 : vector<1x128xf32> to vector<8x128xf32>
    %8 = arith.addf %5, %7 : vector<8x128xf32>
    %cst_7 = arith.constant 0.000000e+00 : f32
    %9 = vector.broadcast %cst_7 : f32 to vector<8x128xf32>
    %10 = arith.maximumf %8, %9 : vector<8x128xf32>
    %c0_8 = arith.constant 0 : index
    %c0_9 = arith.constant 0 : index
    %11 = vector.load %arg5[%c0_8, %c0_9] : memref<8x128xf32, #tpu.memory_space<vmem>>, vector<8x128xf32>
    tpu.vector_store %arg5[%c0_8, %c0_9], %10 {strides = array<i32>} : memref<8x128xf32, #tpu.memory_space<vmem>>, vector<8x128xf32>,
    return
  }
  func.func @transform_0(%arg0: i32) -> (i32, i32) {
    %c0_i32 = arith.constant 0 : i32
    %c0_i32_0 = arith.constant 0 : i32
    return %arg0, %c0_i32 : i32, i32
  }
  func.func @transform_1(%arg0: i32) -> (i32, i32) {
    %c0_i32 = arith.constant 0 : i32
    %c0_i32_0 = arith.constant 0 : i32
    %c0_i32_1 = arith.constant 0 : i32
    return %c0_i32, %c0_i32_0 : i32, i32
  }
  func.func @transform_2(%arg0: i32) -> (i32, i32) {
    %c0_i32 = arith.constant 0 : i32
    %c0_i32_0 = arith.constant 0 : i32
    %c0_i32_1 = arith.constant 0 : i32
    return %c0_i32, %c0_i32_0 : i32, i32
  }
  func.func @transform_3(%arg0: i32) -> (i32, i32) {
    %c0_i32 = arith.constant 0 : i32
    %c0_i32_0 = arith.constant 0 : i32
    %c0_i32_1 = arith.constant 0 : i32
    return %c0_i32, %c0_i32_0 : i32, i32
  }
  func.func @transform_4(%arg0: i32) -> (i32, i32) {
    %c0_i32 = arith.constant 0 : i32
    %c0_i32_0 = arith.constant 0 : i32
    return %arg0, %c0_i32 : i32, i32
  }
}

module attributes {stable_mosaic.version = 11 : i64} {
  func.func @_mm_kernel(%arg0: i32, %arg1: memref<32x192xbf16, #tpu.memory_space<vmem>>, %arg2: memref<192x64xbf16, #tpu.memory_space<vmem>>, %arg3: memref<1x64xf32, #tpu.memory_space<vmem>>, %arg4: memref<1x64xf32, #tpu.memory_space<vmem>>, %arg5: memref<32x64xf32, #tpu.memory_space<vmem>>) attributes {dimension_semantics = [#tpu.dimension_semantics<parallel>], iteration_bounds = array<i64: 1>, scalar_prefetch = 0 : i64, scratch_operands = 0 : i64, tpu.core_type = #tpu.core_type<tc>, window_params = [{transform_indices = @transform_0, window_bounds = array<i64: 32, 192>}, {pipeline_mode = #tpu.pipeline_mode<synchronous>, transform_indices = @transform_1, window_bounds = array<i64: 192, 64>}, {pipeline_mode = #tpu.pipeline_mode<synchronous>, transform_indices = @transform_2, window_bounds = array<i64: 1, 64>}, {pipeline_mode = #tpu.pipeline_mode<synchronous>, transform_indices = @transform_3, window_bounds = array<i64: 1, 64>}, {transform_indices = @transform_4, window_bounds = array<i64: 32, 64>}]} {
    %c0 = arith.constant 0 : index
    %c0_0 = arith.constant 0 : index
    %0 = vector.load %arg1[%c0, %c0_0] : memref<32x192xbf16, #tpu.memory_space<vmem>>, vector<32x192xbf16>
    %c0_1 = arith.constant 0 : index
    %c0_2 = arith.constant 0 : index
    %1 = vector.load %arg2[%c0_1, %c0_2] : memref<192x64xbf16, #tpu.memory_space<vmem>>, vector<192x64xbf16>
    %cst = arith.constant dense<0.000000e+00> : vector<32x64xf32>
    %2 = tpu.matmul %0, %1, %cst {dimension_numbers = #tpu.dot_dimension_numbers<[1], [0], [0], [1], [0, 0, 1, 1], [], []>} : vector<32x192xbf16>, vector<192x64xbf16>, vector<32x64xf32> -> vector<32x64xf32>
    %c0_3 = arith.constant 0 : index
    %c0_4 = arith.constant 0 : index
    %3 = vector.load %arg3[%c0_3, %c0_4] : memref<1x64xf32, #tpu.memory_space<vmem>>, vector<1x64xf32>
    %4 = vector.broadcast %3 : vector<1x64xf32> to vector<32x64xf32>
    %5 = arith.mulf %2, %4 : vector<32x64xf32>
    %c0_5 = arith.constant 0 : index
    %c0_6 = arith.constant 0 : index
    %6 = vector.load %arg4[%c0_5, %c0_6] : memref<1x64xf32, #tpu.memory_space<vmem>>, vector<1x64xf32>
    %7 = vector.broadcast %6 : vector<1x64xf32> to vector<32x64xf32>
    %8 = arith.addf %5, %7 : vector<32x64xf32>
    %cst_7 = arith.constant 0.000000e+00 : f32
    %9 = vector.broadcast %cst_7 : f32 to vector<32x64xf32>
    %10 = arith.maximumf %8, %9 : vector<32x64xf32>
    %c0_8 = arith.constant 0 : index
    %c0_9 = arith.constant 0 : index
    %11 = vector.load %arg5[%c0_8, %c0_9] : memref<32x64xf32, #tpu.memory_space<vmem>>, vector<32x64xf32>
    tpu.vector_store %arg5[%c0_8, %c0_9], %10 {strides = array<i32>} : memref<32x64xf32, #tpu.memory_space<vmem>>, vector<32x64xf32>,
    return
  }
  func.func @transform_0(%arg0: i32) -> (i32, i32) {
    %c0_i32 = arith.constant 0 : i32
    %c0_i32_0 = arith.constant 0 : i32
    return %arg0, %c0_i32 : i32, i32
  }
  func.func @transform_1(%arg0: i32) -> (i32, i32) {
    %c0_i32 = arith.constant 0 : i32
    %c0_i32_0 = arith.constant 0 : i32
    %c0_i32_1 = arith.constant 0 : i32
    return %c0_i32, %c0_i32_0 : i32, i32
  }
  func.func @transform_2(%arg0: i32) -> (i32, i32) {
    %c0_i32 = arith.constant 0 : i32
    %c0_i32_0 = arith.constant 0 : i32
    %c0_i32_1 = arith.constant 0 : i32
    return %c0_i32, %c0_i32_0 : i32, i32
  }
  func.func @transform_3(%arg0: i32) -> (i32, i32) {
    %c0_i32 = arith.constant 0 : i32
    %c0_i32_0 = arith.constant 0 : i32
    %c0_i32_1 = arith.constant 0 : i32
    return %c0_i32, %c0_i32_0 : i32, i32
  }
  func.func @transform_4(%arg0: i32) -> (i32, i32) {
    %c0_i32 = arith.constant 0 : i32
    %c0_i32_0 = arith.constant 0 : i32
    return %arg0, %c0_i32 : i32, i32
  }
}

module attributes {stable_mosaic.version = 11 : i64} {
  func.func @_mm_kernel(%arg0: i32, %arg1: memref<128x128xbf16, #tpu.memory_space<vmem>>, %arg2: memref<128x64xbf16, #tpu.memory_space<vmem>>, %arg3: memref<1x64xf32, #tpu.memory_space<vmem>>, %arg4: memref<1x64xf32, #tpu.memory_space<vmem>>, %arg5: memref<128x64xf32, #tpu.memory_space<vmem>>) attributes {dimension_semantics = [#tpu.dimension_semantics<parallel>], iteration_bounds = array<i64: 1>, scalar_prefetch = 0 : i64, scratch_operands = 0 : i64, tpu.core_type = #tpu.core_type<tc>, window_params = [{transform_indices = @transform_0, window_bounds = array<i64: 128, 128>}, {pipeline_mode = #tpu.pipeline_mode<synchronous>, transform_indices = @transform_1, window_bounds = array<i64: 128, 64>}, {pipeline_mode = #tpu.pipeline_mode<synchronous>, transform_indices = @transform_2, window_bounds = array<i64: 1, 64>}, {pipeline_mode = #tpu.pipeline_mode<synchronous>, transform_indices = @transform_3, window_bounds = array<i64: 1, 64>}, {transform_indices = @transform_4, window_bounds = array<i64: 128, 64>}]} {
    %c0 = arith.constant 0 : index
    %c0_0 = arith.constant 0 : index
    %0 = vector.load %arg1[%c0, %c0_0] : memref<128x128xbf16, #tpu.memory_space<vmem>>, vector<128x128xbf16>
    %c0_1 = arith.constant 0 : index
    %c0_2 = arith.constant 0 : index
    %1 = vector.load %arg2[%c0_1, %c0_2] : memref<128x64xbf16, #tpu.memory_space<vmem>>, vector<128x64xbf16>
    %cst = arith.constant dense<0.000000e+00> : vector<128x64xf32>
    %2 = tpu.matmul %0, %1, %cst {dimension_numbers = #tpu.dot_dimension_numbers<[1], [0], [0], [1], [0, 0, 1, 1], [], []>} : vector<128x128xbf16>, vector<128x64xbf16>, vector<128x64xf32> -> vector<128x64xf32>
    %c0_3 = arith.constant 0 : index
    %c0_4 = arith.constant 0 : index
    %3 = vector.load %arg3[%c0_3, %c0_4] : memref<1x64xf32, #tpu.memory_space<vmem>>, vector<1x64xf32>
    %4 = vector.broadcast %3 : vector<1x64xf32> to vector<128x64xf32>
    %5 = arith.mulf %2, %4 : vector<128x64xf32>
    %c0_5 = arith.constant 0 : index
    %c0_6 = arith.constant 0 : index
    %6 = vector.load %arg4[%c0_5, %c0_6] : memref<1x64xf32, #tpu.memory_space<vmem>>, vector<1x64xf32>
    %7 = vector.broadcast %6 : vector<1x64xf32> to vector<128x64xf32>
    %8 = arith.addf %5, %7 : vector<128x64xf32>
    %cst_7 = arith.constant 0.000000e+00 : f32
    %9 = vector.broadcast %cst_7 : f32 to vector<128x64xf32>
    %10 = arith.maximumf %8, %9 : vector<128x64xf32>
    %c0_8 = arith.constant 0 : index
    %c0_9 = arith.constant 0 : index
    %11 = vector.load %arg5[%c0_8, %c0_9] : memref<128x64xf32, #tpu.memory_space<vmem>>, vector<128x64xf32>
    tpu.vector_store %arg5[%c0_8, %c0_9], %10 {strides = array<i32>} : memref<128x64xf32, #tpu.memory_space<vmem>>, vector<128x64xf32>,
    return
  }
  func.func @transform_0(%arg0: i32) -> (i32, i32) {
    %c0_i32 = arith.constant 0 : i32
    %c0_i32_0 = arith.constant 0 : i32
    return %arg0, %c0_i32 : i32, i32
  }
  func.func @transform_1(%arg0: i32) -> (i32, i32) {
    %c0_i32 = arith.constant 0 : i32
    %c0_i32_0 = arith.constant 0 : i32
    %c0_i32_1 = arith.constant 0 : i32
    return %c0_i32, %c0_i32_0 : i32, i32
  }
  func.func @transform_2(%arg0: i32) -> (i32, i32) {
    %c0_i32 = arith.constant 0 : i32
    %c0_i32_0 = arith.constant 0 : i32
    %c0_i32_1 = arith.constant 0 : i32
    return %c0_i32, %c0_i32_0 : i32, i32
  }
  func.func @transform_3(%arg0: i32) -> (i32, i32) {
    %c0_i32 = arith.constant 0 : i32
    %c0_i32_0 = arith.constant 0 : i32
    %c0_i32_1 = arith.constant 0 : i32
    return %c0_i32, %c0_i32_0 : i32, i32
  }
  func.func @transform_4(%arg0: i32) -> (i32, i32) {
    %c0_i32 = arith.constant 0 : i32
    %c0_i32_0 = arith.constant 0 : i32
    return %arg0, %c0_i32 : i32, i32
  }
}

module attributes {stable_mosaic.version = 11 : i64} {
  func.func @_mm_kernel(%arg0: i32, %arg1: memref<512x19xbf16, #tpu.memory_space<vmem>>, %arg2: memref<19x1xbf16, #tpu.memory_space<vmem>>, %arg3: memref<1x1xf32, #tpu.memory_space<vmem>>, %arg4: memref<1x1xf32, #tpu.memory_space<vmem>>, %arg5: memref<512x1xf32, #tpu.memory_space<vmem>>) attributes {dimension_semantics = [#tpu.dimension_semantics<parallel>], iteration_bounds = array<i64: 1>, scalar_prefetch = 0 : i64, scratch_operands = 0 : i64, tpu.core_type = #tpu.core_type<tc>, window_params = [{transform_indices = @transform_0, window_bounds = array<i64: 512, 19>}, {pipeline_mode = #tpu.pipeline_mode<synchronous>, transform_indices = @transform_1, window_bounds = array<i64: 19, 1>}, {pipeline_mode = #tpu.pipeline_mode<synchronous>, transform_indices = @transform_2, window_bounds = array<i64: 1, 1>}, {pipeline_mode = #tpu.pipeline_mode<synchronous>, transform_indices = @transform_3, window_bounds = array<i64: 1, 1>}, {transform_indices = @transform_4, window_bounds = array<i64: 512, 1>}]} {
    %c0 = arith.constant 0 : index
    %c0_0 = arith.constant 0 : index
    %0 = vector.load %arg1[%c0, %c0_0] : memref<512x19xbf16, #tpu.memory_space<vmem>>, vector<512x19xbf16>
    %c0_1 = arith.constant 0 : index
    %c0_2 = arith.constant 0 : index
    %1 = vector.load %arg2[%c0_1, %c0_2] : memref<19x1xbf16, #tpu.memory_space<vmem>>, vector<19x1xbf16>
    %cst = arith.constant dense<0.000000e+00> : vector<512x1xf32>
    %2 = tpu.matmul %0, %1, %cst {dimension_numbers = #tpu.dot_dimension_numbers<[1], [0], [0], [1], [0, 0, 1, 1], [], []>} : vector<512x19xbf16>, vector<19x1xbf16>, vector<512x1xf32> -> vector<512x1xf32>
    %c0_3 = arith.constant 0 : index
    %c0_4 = arith.constant 0 : index
    %3 = vector.load %arg3[%c0_3, %c0_4] : memref<1x1xf32, #tpu.memory_space<vmem>>, vector<1x1xf32>
    %4 = vector.broadcast %3 : vector<1x1xf32> to vector<512x1xf32>
    %5 = arith.mulf %2, %4 : vector<512x1xf32>
    %c0_5 = arith.constant 0 : index
    %c0_6 = arith.constant 0 : index
    %6 = vector.load %arg4[%c0_5, %c0_6] : memref<1x1xf32, #tpu.memory_space<vmem>>, vector<1x1xf32>
    %7 = vector.broadcast %6 : vector<1x1xf32> to vector<512x1xf32>
    %8 = arith.addf %5, %7 : vector<512x1xf32>
    %c0_7 = arith.constant 0 : index
    %c0_8 = arith.constant 0 : index
    %9 = vector.load %arg5[%c0_7, %c0_8] : memref<512x1xf32, #tpu.memory_space<vmem>>, vector<512x1xf32>
    tpu.vector_store %arg5[%c0_7, %c0_8], %8 {strides = array<i32>} : memref<512x1xf32, #tpu.memory_space<vmem>>, vector<512x1xf32>,
    return
  }
  func.func @transform_0(%arg0: i32) -> (i32, i32) {
    %c0_i32 = arith.constant 0 : i32
    %c0_i32_0 = arith.constant 0 : i32
    return %arg0, %c0_i32 : i32, i32
  }
  func.func @transform_1(%arg0: i32) -> (i32, i32) {
    %c0_i32 = arith.constant 0 : i32
    %c0_i32_0 = arith.constant 0 : i32
    %c0_i32_1 = arith.constant 0 : i32
    return %c0_i32, %c0_i32_0 : i32, i32
  }
  func.func @transform_2(%arg0: i32) -> (i32, i32) {
    %c0_i32 = arith.constant 0 : i32
    %c0_i32_0 = arith.constant 0 : i32
    %c0_i32_1 = arith.constant 0 : i32
    return %c0_i32, %c0_i32_0 : i32, i32
  }
  func.func @transform_3(%arg0: i32) -> (i32, i32) {
    %c0_i32 = arith.constant 0 : i32
    %c0_i32_0 = arith.constant 0 : i32
    %c0_i32_1 = arith.constant 0 : i32
    return %c0_i32, %c0_i32_0 : i32, i32
  }
  func.func @transform_4(%arg0: i32) -> (i32, i32) {
    %c0_i32 = arith.constant 0 : i32
    %c0_i32_0 = arith.constant 0 : i32
    return %arg0, %c0_i32 : i32, i32
  }
}

</mosaic_0001>

<llo_original>
// kernel: detector_forward.17
$region0: #{detector_forward.17}
  #allocation0 [shape = 'u32[]', space=smem, size = 0x4, offset = 0x4, fixed_abs, tag = 'smem constant byte address 0x4 - core index']
  #allocation1 [shape = 'u32[144,128]{1,0:T(1,128)}', space=vmem, size = 0x12000, scoped, tag = 'internal scratch']
  %s0 = inlined_call_operand.vmem [shape: bf16[128,27], index: 0, kind: input, shape index: {}]
  %s1 = inlined_call_operand.vmem [shape: bf16[27,16], index: 1, kind: input, shape index: {}]
  %s2 = inlined_call_operand.vmem [shape: f32[1,16], index: 2, kind: input, shape index: {}]
  %s3 = inlined_call_operand.vmem [shape: f32[1,16], index: 3, kind: input, shape index: {}]
  %s4 = inlined_call_operand.vmem [shape: f32[128,16], index: 4, kind: output, shape index: {}]
  %s5 = sld [smem:[#allocation0]]
  $region26: #{detector_forward.17} parent=0
    _
  %s7 = ssub.s32 1, %s5
  %s8 = scalar_select 0, %s7, %s5
  // Predicated region
  $region2: #{detector_forward.17} parent=0 // pred_check
    _
  $region3: #{detector_forward.17} parent=0 // pred_check_branch
    %10 = sbr.rel (0) target = $region5
  $region4: #{detector_forward.17} parent=0 // pred_region
    _
  $region5: #{detector_forward.17} parent=0 // pred_fallthru
    _
  // Predicated region
  $region6: #{detector_forward.17} parent=0 // pred_check
    _
  $region7: #{detector_forward.17} parent=0 // pred_check_branch
    %12 = sbr.rel (0) target = $region9
  $region8: #{detector_forward.17} parent=0 // pred_region
    _
  $region9: #{detector_forward.17} parent=0 // pred_fallthru
    _
  // Predicated region
  $region10: #{detector_forward.17} parent=0 // pred_check
    _
  $region11: #{detector_forward.17} parent=0 // pred_check_branch
    %14 = sbr.rel (0) target = $region13
  $region12: #{detector_forward.17} parent=0 // pred_region
    _
  $region13: #{detector_forward.17} parent=0 // pred_fallthru
    _
  // Predicated region
  $region14: #{detector_forward.17} parent=0 // pred_check
    _
  $region15: #{detector_forward.17} parent=0 // pred_check_branch
    %16 = sbr.rel (0) target = $region17
  $region16: #{detector_forward.17} parent=0 // pred_region
    _
  $region17: #{detector_forward.17} parent=0 // pred_fallthru
    _
  %v18 = vld [vmem:[%s0] sm:$0xf]
  %v19 = vld [vmem:[%s0 + $0x4] sm:$0xf]
  %v20 = vld [vmem:[%s0 + $0x8] sm:$0xf]
  %v21 = vld [vmem:[%s0 + $0xc] sm:$0xf]
  %v22 = vld [vmem:[%s0 + $0x10] sm:$0xf]
  %v23 = vld [vmem:[%s0 + $0x14] sm:$0xf]
  %v24 = vld [vmem:[%s0 + $0x18] sm:$0xf]
  %v25 = vld [vmem:[%s0 + $0x1c] sm:$0xf]
  %v26 = vld [vmem:[%s0 + $0x20] sm:$0xf]
  %v27 = vld [vmem:[%s0 + $0x24] sm:$0xf]
  %v28 = vld [vmem:[%s0 + $0x28] sm:$0xf]
  %v29 = vld [vmem:[%s0 + $0x2c] sm:$0xf]
  %v30 = vld [vmem:[%s0 + $0x30] sm:$0xf]
  %v31 = vld [vmem:[%s0 + $0x34] sm:$0xf]
  %v32 = vld [vmem:[%s0 + $0x38] sm:$0xf]
  %v33 = vld [vmem:[%s0 + $0x3c] sm:$0xf]
  %v34 = vld [vmem:[%s1] sm:$0xf]
  %v35 = vld [vmem:[%s1 + $0x4] sm:$0xf]
  %v36 = vld [vmem:[%s1 + $0x8] sm:$0xf]
  %v37 = vld [vmem:[%s1 + $0xc] sm:$0x3]
  %v54 = vunpack.c.l.b16 %v18
  %v55 = vunpack.c.l.b16 %v19
  %v56 = vunpack.c.l.b16 %v20
  %v57 = vunpack.c.l.b16 %v21
  %v58 = vunpack.c.l.b16 %v22
  %v59 = vunpack.c.l.b16 %v23
  %v60 = vunpack.c.l.b16 %v24
  %v61 = vunpack.c.l.b16 %v25
  %v62 = vunpack.c.l.b16 %v26
  %v63 = vunpack.c.l.b16 %v27
  %v64 = vunpack.c.l.b16 %v28
  %v65 = vunpack.c.l.b16 %v29
  %v66 = vunpack.c.l.b16 %v30
  %v67 = vunpack.c.l.b16 %v31
  %v68 = vunpack.c.l.b16 %v32
  %v69 = vunpack.c.l.b16 %v33
  %v70 = vpack.c.b16 %v55, %v54
  %v71 = vpack.c.b16 %v57, %v56
  %v72 = vpack.c.b16 %v59, %v58
  %v73 = vpack.c.b16 %v61, %v60
  %v74 = vpack.c.b16 %v63, %v62
  %v75 = vpack.c.b16 %v65, %v64
  %v76 = vpack.c.b16 %v67, %v66
  %v77 = vpack.c.b16 %v69, %v68
  %v82 = vunpack.c.l.b16 %v34
  %v83 = vunpack.c.l.b16 %v35
  %v84 = vunpack.c.l.b16 %v36
  %v85 = vunpack.c.l.b16 %v37
  %v86 = vpack.c.b16 %v83, %v82
  %v87 = vpack.c.b16 %v85, %v84
  %vm89 = vcmask 220160
  %v91 = vsel %vm89, %v70, 0
  %v94 = vsel %vm89, %v71, 0
  %v97 = vsel %vm89, %v72, 0
  %v100 = vsel %vm89, %v73, 0
  %v103 = vsel %vm89, %v74, 0
  %v106 = vsel %vm89, %v75, 0
  %v109 = vsel %vm89, %v76, 0
  %v112 = vsel %vm89, %v77, 0
  %vm114 = vcmask 1044480
  %vm115 = vcmask 1045504
  %v116 = vsel %vm114, 4294967295, 65535
  %v117 = vsel %vm115, %v116, 0
  %v119 = vand.u32 %v87, %v117
  %121 = vmatprep.subr.bf16.mxu0 0
  %122 = vmatpush1.bf16.msra.mxu0 0
  %123 = vmatprep.subr.bf16.mxu0 0
  %124 = vmatpush1.bf16.msra.mxu0 0
  %125 = vmatprep.subr.bf16.mxu0 0
  %126 = vmatpush1.bf16.msra.mxu0 0
  %127 = vmatprep.subr.bf16.mxu0 0
  %128 = vmatpush1.bf16.msra.mxu0 0
  %129 = vmatprep.subr.bf16.mxu0 0
  %130 = vmatpush1.bf16.msra.mxu0 0
  %131 = vmatprep.subr.bf16.mxu0 0
  %132 = vmatpush1.bf16.msra.mxu0 0
  %133 = vmatprep.subr.bf16.mxu0 0
  %134 = vmatpush1.bf16.msra.mxu0 %v119
  %135 = vmatprep.subr.bf16.mxu0 0
  %136 = vmatpush1.bf16.msra.mxu0 %v86
  %137 = vmatprep.subr.bf16.mxu0 0
  %138 = vmatpush2.bf16.msra.mxu0 0
  %139 = vmatprep.subr.bf16.mxu0 0
  %140 = vmatpush2.bf16.msra.mxu0 0
  %141 = vmatprep.subr.bf16.mxu0 0
  %142 = vmatpush2.bf16.msra.mxu0 0
  %143 = vmatprep.subr.bf16.mxu0 0
  %144 = vmatpush2.bf16.msra.mxu0 0
  %145 = vmatprep.subr.bf16.mxu0 0
  %146 = vmatpush2.bf16.msra.mxu0 0
  %147 = vmatprep.subr.bf16.mxu0 0
  %148 = vmatpush2.bf16.msra.mxu0 0
  %149 = vmatprep.subr.bf16.mxu0 0
  %150 = vmatpush2.bf16.msra.mxu0 0
  %151 = vmatprep.subr.bf16.mxu0 0
  %152 = vmatpush2.bf16.msra.mxu0 0
  %153 = vmatprep.mubr.bf16.mxu0 0
  %154 = vmatmul.mubr.bf16.gmra.mxu0 %v91
  %v155 = vpop.f32.mrf.mxu0
  %v156 = vadd.f32 0.0, %v155
  %v157 = vpop.f32.mrf.mxu0
  %v158 = vpop.f32.mrf.mxu0
  %v159 = vadd.f32 0.0, %v158
  %v160 = vpop.f32.mrf.mxu0
  %161 = vmatprep.mubr.bf16.mxu0 0
  %162 = vmatmul.mubr.bf16.gmra.mxu0 %v94
  %v163 = vpop.f32.mrf.mxu0
  %v164 = vadd.f32 0.0, %v163
  %v165 = vpop.f32.mrf.mxu0
  %v166 = vpop.f32.mrf.mxu0
  %v167 = vadd.f32 0.0, %v166
  %v168 = vpop.f32.mrf.mxu0
  %169 = vmatprep.mubr.bf16.mxu0 0
  %170 = vmatmul.mubr.bf16.gmra.mxu0 %v97
  %v171 = vpop.f32.mrf.mxu0
  %v172 = vadd.f32 0.0, %v171
  %v173 = vpop.f32.mrf.mxu0
  %v174 = vpop.f32.mrf.mxu0
  %v175 = vadd.f32 0.0, %v174
  %v176 = vpop.f32.mrf.mxu0
  %177 = vmatprep.mubr.bf16.mxu0 0
  %178 = vmatmul.mubr.bf16.gmra.mxu0 %v100
  %v179 = vpop.f32.mrf.mxu0
  %v180 = vadd.f32 0.0, %v179
  %v181 = vpop.f32.mrf.mxu0
  %v182 = vpop.f32.mrf.mxu0
  %v183 = vadd.f32 0.0, %v182
  %v184 = vpop.f32.mrf.mxu0
  %185 = vmatprep.mubr.bf16.mxu0 0
  %186 = vmatmul.mubr.bf16.gmra.mxu0 %v103
  %v187 = vpop.f32.mrf.mxu0
  %v188 = vadd.f32 0.0, %v187
  %v189 = vpop.f32.mrf.mxu0
  %v190 = vpop.f32.mrf.mxu0
  %v191 = vadd.f32 0.0, %v190
  %v192 = vpop.f32.mrf.mxu0
  %193 = vmatprep.mubr.bf16.mxu0 0
  %194 = vmatmul.mubr.bf16.gmra.mxu0 %v106
  %v195 = vpop.f32.mrf.mxu0
  %v196 = vadd.f32 0.0, %v195
  %v197 = vpop.f32.mrf.mxu0
  %v198 = vpop.f32.mrf.mxu0
  %v199 = vadd.f32 0.0, %v198
  %v200 = vpop.f32.mrf.mxu0
  %201 = vmatprep.mubr.bf16.mxu0 0
  %202 = vmatmul.mubr.bf16.gmra.mxu0 %v109
  %v203 = vpop.f32.mrf.mxu0
  %v204 = vadd.f32 0.0, %v203
  %v205 = vpop.f32.mrf.mxu0
  %v206 = vpop.f32.mrf.mxu0
  %v207 = vadd.f32 0.0, %v206
  %v208 = vpop.f32.mrf.mxu0
  %209 = vmatprep.mubr.bf16.mxu0 0
  %210 = vmatmul.mubr.bf16.gmra.mxu0 %v112
  %v211 = vpop.f32.mrf.mxu0
  %v212 = vadd.f32 0.0, %v211
  %v213 = vpop.f32.mrf.mxu0
  %v214 = vpop.f32.mrf.mxu0
  %v215 = vadd.f32 0.0, %v214
  %v216 = vpop.f32.mrf.mxu0
  %217 = vdwg.mxu0
  %v218 = vld [vmem:[%s2] sm:$0x1]
  %v220 = vlaneseq
  %v221 = vshrl.u32 %v220, 7
  %v222 = vsub.s32 0, %v221
  %v223 = vrot.slane %v218, %v222
  %v225 = vmul.f32 %v156, %v223
  %v226 = vmul.f32 %v159, %v223
  %v227 = vmul.f32 %v164, %v223
  %v228 = vmul.f32 %v167, %v223
  %v229 = vmul.f32 %v172, %v223
  %v230 = vmul.f32 %v175, %v223
  %v231 = vmul.f32 %v180, %v223
  %v232 = vmul.f32 %v183, %v223
  %v233 = vmul.f32 %v188, %v223
  %v234 = vmul.f32 %v191, %v223
  %v235 = vmul.f32 %v196, %v223
  %v236 = vmul.f32 %v199, %v223
  %v237 = vmul.f32 %v204, %v223
  %v238 = vmul.f32 %v207, %v223
  %v239 = vmul.f32 %v212, %v223
  %v240 = vmul.f32 %v215, %v223
  %v241 = vld [vmem:[%s3] sm:$0x1]
  %v243 = vlaneseq
  %v244 = vshrl.u32 %v243, 7
  %v245 = vsub.s32 0, %v244
  %v246 = vrot.slane %v241, %v245
  %v248 = vadd.f32 %v225, %v246
  %v249 = vadd.f32 %v226, %v246
  %v250 = vadd.f32 %v227, %v246
  %v251 = vadd.f32 %v228, %v246
  %v252 = vadd.f32 %v229, %v246
  %v253 = vadd.f32 %v230, %v246
  %v254 = vadd.f32 %v231, %v246
  %v255 = vadd.f32 %v232, %v246
  %v256 = vadd.f32 %v233, %v246
  %v257 = vadd.f32 %v234, %v246
  %v258 = vadd.f32 %v235, %v246
  %v259 = vadd.f32 %v236, %v246
  %v260 = vadd.f32 %v237, %v246
  %v261 = vadd.f32 %v238, %v246
  %v262 = vadd.f32 %v239, %v246
  %v263 = vadd.f32 %v240, %v246
  %v264 = vmax.f32 %v248, 0.0
  %v265 = vmax.f32 %v249, 0.0
  %v266 = vmax.f32 %v250, 0.0
  %v267 = vmax.f32 %v251, 0.0
  %v268 = vmax.f32 %v252, 0.0
  %v269 = vmax.f32 %v253, 0.0
  %v270 = vmax.f32 %v254, 0.0
  %v271 = vmax.f32 %v255, 0.0
  %v272 = vmax.f32 %v256, 0.0
  %v273 = vmax.f32 %v257, 0.0
  %v274 = vmax.f32 %v258, 0.0
  %v275 = vmax.f32 %v259, 0.0
  %v276 = vmax.f32 %v260, 0.0
  %v277 = vmax.f32 %v261, 0.0
  %v278 = vmax.f32 %v262, 0.0
  %v279 = vmax.f32 %v263, 0.0
  %vm280 = vcmask 130048
  %281 = vst.msk [vmem:[%s4] sm:$0xff] %vm280, %v264
  %282 = vst.msk [vmem:[%s4 + $0x8] sm:$0xff] %vm280, %v265
  %283 = vst.msk [vmem:[%s4 + $0x10] sm:$0xff] %vm280, %v266
  %284 = vst.msk [vmem:[%s4 + $0x18] sm:$0xff] %vm280, %v267
  %285 = vst.msk [vmem:[%s4 + $0x20] sm:$0xff] %vm280, %v268
  %286 = vst.msk [vmem:[%s4 + $0x28] sm:$0xff] %vm280, %v269
  %287 = vst.msk [vmem:[%s4 + $0x30] sm:$0xff] %vm280, %v270
  %288 = vst.msk [vmem:[%s4 + $0x38] sm:$0xff] %vm280, %v271
  %289 = vst.msk [vmem:[%s4 + $0x40] sm:$0xff] %vm280, %v272
  %290 = vst.msk [vmem:[%s4 + $0x48] sm:$0xff] %vm280, %v273
  %291 = vst.msk [vmem:[%s4 + $0x50] sm:$0xff] %vm280, %v274
  %292 = vst.msk [vmem:[%s4 + $0x58] sm:$0xff] %vm280, %v275
  %293 = vst.msk [vmem:[%s4 + $0x60] sm:$0xff] %vm280, %v276
  %294 = vst.msk [vmem:[%s4 + $0x68] sm:$0xff] %vm280, %v277
  %295 = vst.msk [vmem:[%s4 + $0x70] sm:$0xff] %vm280, %v278
  %296 = vst.msk [vmem:[%s4 + $0x78] sm:$0xff] %vm280, %v279
  // Predicated region
  $region18: #{detector_forward.17} parent=0 // pred_check
    _
  $region19: #{detector_forward.17} parent=0 // pred_check_branch
    %298 = sbr.rel (0) target = $region21
  $region20: #{detector_forward.17} parent=0 // pred_region
    _
  $region21: #{detector_forward.17} parent=0 // pred_fallthru
    _
  // Predicated region
  $region22: #{detector_forward.17} parent=0 // pred_check
    _
  $region23: #{detector_forward.17} parent=0 // pred_check_branch
    %300 = sbr.rel (0) target = $region25
  $region24: #{detector_forward.17} parent=0 // pred_region
    _
  $region25: #{detector_forward.17} parent=0 // pred_fallthru
    _

// kernel: detector_forward.18
$region0: #{detector_forward.18}
  #allocation0 [shape = 'u32[]', space=smem, size = 0x4, offset = 0x4, fixed_abs, tag = 'smem constant byte address 0x4 - core index']
  #allocation1 [shape = 'u32[144,128]{1,0:T(1,128)}', space=vmem, size = 0x12000, scoped, tag = 'internal scratch']
  %s0 = inlined_call_operand.vmem [shape: bf16[128,3], index: 0, kind: input, shape index: {}]
  %s1 = inlined_call_operand.vmem [shape: bf16[3,16], index: 1, kind: input, shape index: {}]
  %s2 = inlined_call_operand.vmem [shape: f32[1,16], index: 2, kind: input, shape index: {}]
  %s3 = inlined_call_operand.vmem [shape: f32[1,16], index: 3, kind: input, shape index: {}]
  %s4 = inlined_call_operand.vmem [shape: f32[128,16], index: 4, kind: output, shape index: {}]
  %s5 = sld [smem:[#allocation0]]
  $region26: #{detector_forward.18} parent=0
    _
  %s7 = ssub.s32 1, %s5
  %s8 = scalar_select 0, %s7, %s5
  // Predicated region
  $region2: #{detector_forward.18} parent=0 // pred_check
    _
  $region3: #{detector_forward.18} parent=0 // pred_check_branch
    %10 = sbr.rel (0) target = $region5
  $region4: #{detector_forward.18} parent=0 // pred_region
    _
  $region5: #{detector_forward.18} parent=0 // pred_fallthru
    _
  // Predicated region
  $region6: #{detector_forward.18} parent=0 // pred_check
    _
  $region7: #{detector_forward.18} parent=0 // pred_check_branch
    %12 = sbr.rel (0) target = $region9
  $region8: #{detector_forward.18} parent=0 // pred_region
    _
  $region9: #{detector_forward.18} parent=0 // pred_fallthru
    _
  // Predicated region
  $region10: #{detector_forward.18} parent=0 // pred_check
    _
  $region11: #{detector_forward.18} parent=0 // pred_check_branch
    %14 = sbr.rel (0) target = $region13
  $region12: #{detector_forward.18} parent=0 // pred_region
    _
  $region13: #{detector_forward.18} parent=0 // pred_fallthru
    _
  // Predicated region
  $region14: #{detector_forward.18} parent=0 // pred_check
    _
  $region15: #{detector_forward.18} parent=0 // pred_check_branch
    %16 = sbr.rel (0) target = $region17
  $region16: #{detector_forward.18} parent=0 // pred_region
    _
  $region17: #{detector_forward.18} parent=0 // pred_fallthru
    _
  %v18 = vld [vmem:[%s0] sm:$0xf]
  %v19 = vld [vmem:[%s0 + $0x4] sm:$0xf]
  %v20 = vld [vmem:[%s0 + $0x8] sm:$0xf]
  %v21 = vld [vmem:[%s0 + $0xc] sm:$0xf]
  %v22 = vld [vmem:[%s0 + $0x10] sm:$0xf]
  %v23 = vld [vmem:[%s0 + $0x14] sm:$0xf]
  %v24 = vld [vmem:[%s0 + $0x18] sm:$0xf]
  %v25 = vld [vmem:[%s0 + $0x1c] sm:$0xf]
  %v26 = vld [vmem:[%s0 + $0x20] sm:$0xf]
  %v27 = vld [vmem:[%s0 + $0x24] sm:$0xf]
  %v28 = vld [vmem:[%s0 + $0x28] sm:$0xf]
  %v29 = vld [vmem:[%s0 + $0x2c] sm:$0xf]
  %v30 = vld [vmem:[%s0 + $0x30] sm:$0xf]
  %v31 = vld [vmem:[%s0 + $0x34] sm:$0xf]
  %v32 = vld [vmem:[%s0 + $0x38] sm:$0xf]
  %v33 = vld [vmem:[%s0 + $0x3c] sm:$0xf]
  %v34 = vld [vmem:[%s1] sm:$0x3]
  %v51 = vunpack.c.l.b16 %v18
  %v52 = vunpack.c.l.b16 %v19
  %v53 = vunpack.c.l.b16 %v20
  %v54 = vunpack.c.l.b16 %v21
  %v55 = vunpack.c.l.b16 %v22
  %v56 = vunpack.c.l.b16 %v23
  %v57 = vunpack.c.l.b16 %v24
  %v58 = vunpack.c.l.b16 %v25
  %v59 = vunpack.c.l.b16 %v26
  %v60 = vunpack.c.l.b16 %v27
  %v61 = vunpack.c.l.b16 %v28
  %v62 = vunpack.c.l.b16 %v29
  %v63 = vunpack.c.l.b16 %v30
  %v64 = vunpack.c.l.b16 %v31
  %v65 = vunpack.c.l.b16 %v32
  %v66 = vunpack.c.l.b16 %v33
  %v67 = vpack.c.b16 %v52, %v51
  %v68 = vpack.c.b16 %v54, %v53
  %v69 = vpack.c.b16 %v56, %v55
  %v70 = vpack.c.b16 %v58, %v57
  %v71 = vpack.c.b16 %v60, %v59
  %v72 = vpack.c.b16 %v62, %v61
  %v73 = vpack.c.b16 %v64, %v63
  %v74 = vpack.c.b16 %v66, %v65
  %vm75 = vcmask 23552
  %v77 = vsel %vm75, %v67, 0
  %v80 = vsel %vm75, %v68, 0
  %v83 = vsel %vm75, %v69, 0
  %v86 = vsel %vm75, %v70, 0
  %v89 = vsel %vm75, %v71, 0
  %v92 = vsel %vm75, %v72, 0
  %v95 = vsel %vm75, %v73, 0
  %v98 = vsel %vm75, %v74, 0
  %vm100 = vcmask 1040384
  %vm101 = vcmask 1041408
  %v102 = vsel %vm100, 4294967295, 65535
  %v103 = vsel %vm101, %v102, 0
  %v105 = vand.u32 %v34, %v103
  %107 = vmatprep.subr.bf16.mxu0 0
  %108 = vmatpush1.bf16.msra.mxu0 0
  %109 = vmatprep.subr.bf16.mxu0 0
  %110 = vmatpush1.bf16.msra.mxu0 0
  %111 = vmatprep.subr.bf16.mxu0 0
  %112 = vmatpush1.bf16.msra.mxu0 0
  %113 = vmatprep.subr.bf16.mxu0 0
  %114 = vmatpush1.bf16.msra.mxu0 0
  %115 = vmatprep.subr.bf16.mxu0 0
  %116 = vmatpush1.bf16.msra.mxu0 0
  %117 = vmatprep.subr.bf16.mxu0 0
  %118 = vmatpush1.bf16.msra.mxu0 0
  %119 = vmatprep.subr.bf16.mxu0 0
  %120 = vmatpush1.bf16.msra.mxu0 0
  %121 = vmatprep.subr.bf16.mxu0 0
  %122 = vmatpush1.bf16.msra.mxu0 %v105
  %123 = vmatprep.subr.bf16.mxu0 0
  %124 = vmatpush2.bf16.msra.mxu0 0
  %125 = vmatprep.subr.bf16.mxu0 0
  %126 = vmatpush2.bf16.msra.mxu0 0
  %127 = vmatprep.subr.bf16.mxu0 0
  %128 = vmatpush2.bf16.msra.mxu0 0
  %129 = vmatprep.subr.bf16.mxu0 0
  %130 = vmatpush2.bf16.msra.mxu0 0
  %131 = vmatprep.subr.bf16.mxu0 0
  %132 = vmatpush2.bf16.msra.mxu0 0
  %133 = vmatprep.subr.bf16.mxu0 0
  %134 = vmatpush2.bf16.msra.mxu0 0
  %135 = vmatprep.subr.bf16.mxu0 0
  %136 = vmatpush2.bf16.msra.mxu0 0
  %137 = vmatprep.subr.bf16.mxu0 0
  %138 = vmatpush2.bf16.msra.mxu0 0
  %139 = vmatprep.mubr.bf16.mxu0 0
  %140 = vmatmul.mubr.bf16.gmra.mxu0 %v77
  %v141 = vpop.f32.mrf.mxu0
  %v142 = vadd.f32 0.0, %v141
  %v143 = vpop.f32.mrf.mxu0
  %v144 = vpop.f32.mrf.mxu0
  %v145 = vadd.f32 0.0, %v144
  %v146 = vpop.f32.mrf.mxu0
  %147 = vmatprep.mubr.bf16.mxu0 0
  %148 = vmatmul.mubr.bf16.gmra.mxu0 %v80
  %v149 = vpop.f32.mrf.mxu0
  %v150 = vadd.f32 0.0, %v149
  %v151 = vpop.f32.mrf.mxu0
  %v152 = vpop.f32.mrf.mxu0
  %v153 = vadd.f32 0.0, %v152
  %v154 = vpop.f32.mrf.mxu0
  %155 = vmatprep.mubr.bf16.mxu0 0
  %156 = vmatmul.mubr.bf16.gmra.mxu0 %v83
  %v157 = vpop.f32.mrf.mxu0
  %v158 = vadd.f32 0.0, %v157
  %v159 = vpop.f32.mrf.mxu0
  %v160 = vpop.f32.mrf.mxu0
  %v161 = vadd.f32 0.0, %v160
  %v162 = vpop.f32.mrf.mxu0
  %163 = vmatprep.mubr.bf16.mxu0 0
  %164 = vmatmul.mubr.bf16.gmra.mxu0 %v86
  %v165 = vpop.f32.mrf.mxu0
  %v166 = vadd.f32 0.0, %v165
  %v167 = vpop.f32.mrf.mxu0
  %v168 = vpop.f32.mrf.mxu0
  %v169 = vadd.f32 0.0, %v168
  %v170 = vpop.f32.mrf.mxu0
  %171 = vmatprep.mubr.bf16.mxu0 0
  %172 = vmatmul.mubr.bf16.gmra.mxu0 %v89
  %v173 = vpop.f32.mrf.mxu0
  %v174 = vadd.f32 0.0, %v173
  %v175 = vpop.f32.mrf.mxu0
  %v176 = vpop.f32.mrf.mxu0
  %v177 = vadd.f32 0.0, %v176
  %v178 = vpop.f32.mrf.mxu0
  %179 = vmatprep.mubr.bf16.mxu0 0
  %180 = vmatmul.mubr.bf16.gmra.mxu0 %v92
  %v181 = vpop.f32.mrf.mxu0
  %v182 = vadd.f32 0.0, %v181
  %v183 = vpop.f32.mrf.mxu0
  %v184 = vpop.f32.mrf.mxu0
  %v185 = vadd.f32 0.0, %v184
  %v186 = vpop.f32.mrf.mxu0
  %187 = vmatprep.mubr.bf16.mxu0 0
  %188 = vmatmul.mubr.bf16.gmra.mxu0 %v95
  %v189 = vpop.f32.mrf.mxu0
  %v190 = vadd.f32 0.0, %v189
  %v191 = vpop.f32.mrf.mxu0
  %v192 = vpop.f32.mrf.mxu0
  %v193 = vadd.f32 0.0, %v192
  %v194 = vpop.f32.mrf.mxu0
  %195 = vmatprep.mubr.bf16.mxu0 0
  %196 = vmatmul.mubr.bf16.gmra.mxu0 %v98
  %v197 = vpop.f32.mrf.mxu0
  %v198 = vadd.f32 0.0, %v197
  %v199 = vpop.f32.mrf.mxu0
  %v200 = vpop.f32.mrf.mxu0
  %v201 = vadd.f32 0.0, %v200
  %v202 = vpop.f32.mrf.mxu0
  %203 = vdwg.mxu0
  %v204 = vld [vmem:[%s2] sm:$0x1]
  %v206 = vlaneseq
  %v207 = vshrl.u32 %v206, 7
  %v208 = vsub.s32 0, %v207
  %v209 = vrot.slane %v204, %v208
  %v211 = vmul.f32 %v142, %v209
  %v212 = vmul.f32 %v145, %v209
  %v213 = vmul.f32 %v150, %v209
  %v214 = vmul.f32 %v153, %v209
  %v215 = vmul.f32 %v158, %v209
  %v216 = vmul.f32 %v161, %v209
  %v217 = vmul.f32 %v166, %v209
  %v218 = vmul.f32 %v169, %v209
  %v219 = vmul.f32 %v174, %v209
  %v220 = vmul.f32 %v177, %v209
  %v221 = vmul.f32 %v182, %v209
  %v222 = vmul.f32 %v185, %v209
  %v223 = vmul.f32 %v190, %v209
  %v224 = vmul.f32 %v193, %v209
  %v225 = vmul.f32 %v198, %v209
  %v226 = vmul.f32 %v201, %v209
  %v227 = vld [vmem:[%s3] sm:$0x1]
  %v229 = vlaneseq
  %v230 = vshrl.u32 %v229, 7
  %v231 = vsub.s32 0, %v230
  %v232 = vrot.slane %v227, %v231
  %v234 = vadd.f32 %v211, %v232
  %v235 = vadd.f32 %v212, %v232
  %v236 = vadd.f32 %v213, %v232
  %v237 = vadd.f32 %v214, %v232
  %v238 = vadd.f32 %v215, %v232
  %v239 = vadd.f32 %v216, %v232
  %v240 = vadd.f32 %v217, %v232
  %v241 = vadd.f32 %v218, %v232
  %v242 = vadd.f32 %v219, %v232
  %v243 = vadd.f32 %v220, %v232
  %v244 = vadd.f32 %v221, %v232
  %v245 = vadd.f32 %v222, %v232
  %v246 = vadd.f32 %v223, %v232
  %v247 = vadd.f32 %v224, %v232
  %v248 = vadd.f32 %v225, %v232
  %v249 = vadd.f32 %v226, %v232
  %vm250 = vcmask 130048
  %251 = vst.msk [vmem:[%s4] sm:$0xff] %vm250, %v234
  %252 = vst.msk [vmem:[%s4 + $0x8] sm:$0xff] %vm250, %v235
  %253 = vst.msk [vmem:[%s4 + $0x10] sm:$0xff] %vm250, %v236
  %254 = vst.msk [vmem:[%s4 + $0x18] sm:$0xff] %vm250, %v237
  %255 = vst.msk [vmem:[%s4 + $0x20] sm:$0xff] %vm250, %v238
  %256 = vst.msk [vmem:[%s4 + $0x28] sm:$0xff] %vm250, %v239
  %257 = vst.msk [vmem:[%s4 + $0x30] sm:$0xff] %vm250, %v240
  %258 = vst.msk [vmem:[%s4 + $0x38] sm:$0xff] %vm250, %v241
  %259 = vst.msk [vmem:[%s4 + $0x40] sm:$0xff] %vm250, %v242
  %260 = vst.msk [vmem:[%s4 + $0x48] sm:$0xff] %vm250, %v243
  %261 = vst.msk [vmem:[%s4 + $0x50] sm:$0xff] %vm250, %v244
  %262 = vst.msk [vmem:[%s4 + $0x58] sm:$0xff] %vm250, %v245
  %263 = vst.msk [vmem:[%s4 + $0x60] sm:$0xff] %vm250, %v246
  %264 = vst.msk [vmem:[%s4 + $0x68] sm:$0xff] %vm250, %v247
  %265 = vst.msk [vmem:[%s4 + $0x70] sm:$0xff] %vm250, %v248
  %266 = vst.msk [vmem:[%s4 + $0x78] sm:$0xff] %vm250, %v249
  // Predicated region
  $region18: #{detector_forward.18} parent=0 // pred_check
    _
  $region19: #{detector_forward.18} parent=0 // pred_check_branch
    %268 = sbr.rel (0) target = $region21
  $region20: #{detector_forward.18} parent=0 // pred_region
    _
  $region21: #{detector_forward.18} parent=0 // pred_fallthru
    _
  // Predicated region
  $region22: #{detector_forward.18} parent=0 // pred_check
    _
  $region23: #{detector_forward.18} parent=0 // pred_check_branch
    %270 = sbr.rel (0) target = $region25
  $region24: #{detector_forward.18} parent=0 // pred_region
    _
  $region25: #{detector_forward.18} parent=0 // pred_fallthru
    _

// kernel: detector_forward.19
$region0: #{detector_forward.19}
  #allocation0 [shape = 'u32[]', space=smem, size = 0x4, offset = 0x4, fixed_abs, tag = 'smem constant byte address 0x4 - core index']
  #allocation1 [shape = 'u32[144,128]{1,0:T(1,128)}', space=vmem, size = 0x12000, scoped, tag = 'internal scratch']
  %s0 = inlined_call_operand.vmem [shape: bf16[128,144], index: 0, kind: input, shape index: {}]
  %s1 = inlined_call_operand.vmem [shape: bf16[144,16], index: 1, kind: input, shape index: {}]
  %s2 = inlined_call_operand.vmem [shape: f32[1,16], index: 2, kind: input, shape index: {}]
  %s3 = inlined_call_operand.vmem [shape: f32[1,16], index: 3, kind: input, shape index: {}]
  %s4 = inlined_call_operand.vmem [shape: f32[128,16], index: 4, kind: input, shape index: {}]
  %s5 = inlined_call_operand.vmem [shape: f32[128,16], index: 5, kind: output, shape index: {}]
  %s6 = sld [smem:[#allocation0]]
  $region30: #{detector_forward.19} parent=0
    _
  %s8 = ssub.s32 1, %s6
  %s9 = scalar_select 0, %s8, %s6
  // Predicated region
  $region2: #{detector_forward.19} parent=0 // pred_check
    _
  $region3: #{detector_forward.19} parent=0 // pred_check_branch
    %11 = sbr.rel (0) target = $region5
  $region4: #{detector_forward.19} parent=0 // pred_region
    _
  $region5: #{detector_forward.19} parent=0 // pred_fallthru
    _
  // Predicated region
  $region6: #{detector_forward.19} parent=0 // pred_check
    _
  $region7: #{detector_forward.19} parent=0 // pred_check_branch
    %13 = sbr.rel (0) target = $region9
  $region8: #{detector_forward.19} parent=0 // pred_region
    _
  $region9: #{detector_forward.19} parent=0 // pred_fallthru
    _
  // Predicated region
  $region10: #{detector_forward.19} parent=0 // pred_check
    _
  $region11: #{detector_forward.19} parent=0 // pred_check_branch
    %15 = sbr.rel (0) target = $region13
  $region12: #{detector_forward.19} parent=0 // pred_region
    _
  $region13: #{detector_forward.19} parent=0 // pred_fallthru
    _
  // Predicated region
  $region14: #{detector_forward.19} parent=0 // pred_check
    _
  $region15: #{detector_forward.19} parent=0 // pred_check_branch
    %17 = sbr.rel (0) target = $region17
  $region16: #{detector_forward.19} parent=0 // pred_region
    _
  $region17: #{detector_forward.19} parent=0 // pred_fallthru
    _
  // Predicated region
  $region18: #{detector_forward.19} parent=0 // pred_check
    _
  $region19: #{detector_forward.19} parent=0 // pred_check_branch
    %19 = sbr.rel (0) target = $region21
  $region20: #{detector_forward.19} parent=0 // pred_region
    _
  $region21: #{detector_forward.19} parent=0 // pred_fallthru
    _
  %v21 = vld [vmem:[%s0] sm:$0xff]
  %v22 = vld [vmem:[%s0 + $0x8] sm:$0xff]
  %v23 = vld [vmem:[%s0 + $0x10] sm:$0xff]
  %v24 = vld [vmem:[%s0 + $0x18] sm:$0xff]
  %v25 = vld [vmem:[%s0 + $0x20] sm:$0xff]
  %v26 = vld [vmem:[%s0 + $0x28] sm:$0xff]
  %v27 = vld [vmem:[%s0 + $0x30] sm:$0xff]
  %v28 = vld [vmem:[%s0 + $0x38] sm:$0xff]
  %v29 = vld [vmem:[%s0 + $0x40] sm:$0xff]
  %v30 = vld [vmem:[%s0 + $0x48] sm:$0xff]
  %v31 = vld [vmem:[%s0 + $0x50] sm:$0xff]
  %v32 = vld [vmem:[%s0 + $0x58] sm:$0xff]
  %v33 = vld [vmem:[%s0 + $0x60] sm:$0xff]
  %v34 = vld [vmem:[%s0 + $0x68] sm:$0xff]
  %v35 = vld [vmem:[%s0 + $0x70] sm:$0xff]
  %v36 = vld [vmem:[%s0 + $0x78] sm:$0xff]
  %v37 = vld [vmem:[%s1] sm:$0xf]
  %v38 = vld [vmem:[%s1 + $0x4] sm:$0xf]
  %v39 = vld [vmem:[%s1 + $0x8] sm:$0xf]
  %v40 = vld [vmem:[%s1 + $0xc] sm:$0xf]
  %v41 = vld [vmem:[%s1 + $0x10] sm:$0xf]
  %v42 = vld [vmem:[%s1 + $0x14] sm:$0xf]
  %v43 = vld [vmem:[%s1 + $0x18] sm:$0xf]
  %v44 = vld [vmem:[%s1 + $0x1c] sm:$0xf]
  %v45 = vld [vmem:[%s1 + $0x20] sm:$0xf]
  %v46 = vld [vmem:[%s1 + $0x24] sm:$0xf]
  %v47 = vld [vmem:[%s1 + $0x28] sm:$0xf]
  %v48 = vld [vmem:[%s1 + $0x2c] sm:$0xf]
  %v49 = vld [vmem:[%s1 + $0x30] sm:$0xf]
  %v50 = vld [vmem:[%s1 + $0x34] sm:$0xf]
  %v51 = vld [vmem:[%s1 + $0x38] sm:$0xf]
  %v52 = vld [vmem:[%s1 + $0x3c] sm:$0xf]
  %v53 = vld [vmem:[%s1 + $0x40] sm:$0xf]
  %v54 = vld [vmem:[%s1 + $0x44] sm:$0xf]
  %v71 = vunpack.c.l.b16 %v21
  %v72 = vunpack.c.h.b16 %v21
  %v73 = vunpack.c.l.b16 %v22
  %v74 = vunpack.c.h.b16 %v22
  %v75 = vunpack.c.l.b16 %v23
  %v76 = vunpack.c.h.b16 %v23
  %v77 = vunpack.c.l.b16 %v24
  %v78 = vunpack.c.h.b16 %v24
  %v79 = vunpack.c.l.b16 %v25
  %v80 = vunpack.c.h.b16 %v25
  %v81 = vunpack.c.l.b16 %v26
  %v82 = vunpack.c.h.b16 %v26
  %v83 = vunpack.c.l.b16 %v27
  %v84 = vunpack.c.h.b16 %v27
  %v85 = vunpack.c.l.b16 %v28
  %v86 = vunpack.c.h.b16 %v28
  %v87 = vunpack.c.l.b16 %v29
  %v88 = vunpack.c.h.b16 %v29
  %v89 = vunpack.c.l.b16 %v30
  %v90 = vunpack.c.h.b16 %v30
  %v91 = vunpack.c.l.b16 %v31
  %v92 = vunpack.c.h.b16 %v31
  %v93 = vunpack.c.l.b16 %v32
  %v94 = vunpack.c.h.b16 %v32
  %v95 = vunpack.c.l.b16 %v33
  %v96 = vunpack.c.h.b16 %v33
  %v97 = vunpack.c.l.b16 %v34
  %v98 = vunpack.c.h.b16 %v34
  %v99 = vunpack.c.l.b16 %v35
  %v100 = vunpack.c.h.b16 %v35
  %v101 = vunpack.c.l.b16 %v36
  %v102 = vunpack.c.h.b16 %v36
  %v103 = vpack.c.b16 %v73, %v71
  %v104 = vpack.c.b16 %v74, %v72
  %v105 = vpack.c.b16 %v77, %v75
  %v106 = vpack.c.b16 %v78, %v76
  %v107 = vpack.c.b16 %v81, %v79
  %v108 = vpack.c.b16 %v82, %v80
  %v109 = vpack.c.b16 %v85, %v83
  %v110 = vpack.c.b16 %v86, %v84
  %v111 = vpack.c.b16 %v89, %v87
  %v112 = vpack.c.b16 %v90, %v88
  %v113 = vpack.c.b16 %v93, %v91
  %v114 = vpack.c.b16 %v94, %v92
  %v115 = vpack.c.b16 %v97, %v95
  %v116 = vpack.c.b16 %v98, %v96
  %v117 = vpack.c.b16 %v101, %v99
  %v118 = vpack.c.b16 %v102, %v100
  %v145 = vunpack.c.l.b16 %v37
  %v146 = vunpack.c.l.b16 %v38
  %v147 = vunpack.c.l.b16 %v39
  %v148 = vunpack.c.l.b16 %v40
  %v149 = vunpack.c.l.b16 %v41
  %v150 = vunpack.c.l.b16 %v42
  %v151 = vunpack.c.l.b16 %v43
  %v152 = vunpack.c.l.b16 %v44
  %v153 = vunpack.c.l.b16 %v45
  %v154 = vunpack.c.l.b16 %v46
  %v155 = vunpack.c.l.b16 %v47
  %v156 = vunpack.c.l.b16 %v48
  %v157 = vunpack.c.l.b16 %v49
  %v158 = vunpack.c.l.b16 %v50
  %v159 = vunpack.c.l.b16 %v51
  %v160 = vunpack.c.l.b16 %v52
  %v161 = vunpack.c.l.b16 %v53
  %v162 = vunpack.c.l.b16 %v54
  %v163 = vpack.c.b16 %v146, %v145
  %v164 = vpack.c.b16 %v148, %v147
  %v165 = vpack.c.b16 %v150, %v149
  %v166 = vpack.c.b16 %v152, %v151
  %v167 = vpack.c.b16 %v154, %v153
  %v168 = vpack.c.b16 %v156, %v155
  %v169 = vpack.c.b16 %v158, %v157
  %v170 = vpack.c.b16 %v160, %v159
  %v171 = vpack.c.b16 %v162, %v161
  %vm181 = vcmask 130048
  %v183 = vsel %vm181, %v104, 0
  %v186 = vsel %vm181, %v106, 0
  %v189 = vsel %vm181, %v108, 0
  %v192 = vsel %vm181, %v110, 0
  %v195 = vsel %vm181, %v112, 0
  %v198 = vsel %vm181, %v114, 0
  %v201 = vsel %vm181, %v116, 0
  %v204 = vsel %vm181, %v118, 0
  %206 = vmatprep.subr.bf16.mxu0 0
  %207 = vmatpush1.bf16.msra.mxu0 %v170
  %208 = vmatprep.subr.bf16.mxu0 0
  %209 = vmatpush1.bf16.msra.mxu0 %v169
  %210 = vmatprep.subr.bf16.mxu0 0
  %211 = vmatpush1.bf16.msra.mxu0 %v168
  %212 = vmatprep.subr.bf16.mxu0 0
  %213 = vmatpush1.bf16.msra.mxu0 %v167
  %214 = vmatprep.subr.bf16.mxu0 0
  %215 = vmatpush1.bf16.msra.mxu0 %v166
  %216 = vmatprep.subr.bf16.mxu0 0
  %217 = vmatpush1.bf16.msra.mxu0 %v165
  %218 = vmatprep.subr.bf16.mxu0 0
  %219 = vmatpush1.bf16.msra.mxu0 %v164
  %220 = vmatprep.subr.bf16.mxu0 0
  %221 = vmatpush1.bf16.msra.mxu0 %v163
  %222 = vmatprep.subr.bf16.mxu0 0
  %223 = vmatpush2.bf16.msra.mxu0 0
  %224 = vmatprep.subr.bf16.mxu0 0
  %225 = vmatpush2.bf16.msra.mxu0 0
  %226 = vmatprep.subr.bf16.mxu0 0
  %227 = vmatpush2.bf16.msra.mxu0 0
  %228 = vmatprep.subr.bf16.mxu0 0
  %229 = vmatpush2.bf16.msra.mxu0 0
  %230 = vmatprep.subr.bf16.mxu0 0
  %231 = vmatpush2.bf16.msra.mxu0 0
  %232 = vmatprep.subr.bf16.mxu0 0
  %233 = vmatpush2.bf16.msra.mxu0 0
  %234 = vmatprep.subr.bf16.mxu0 0
  %235 = vmatpush2.bf16.msra.mxu0 0
  %236 = vmatprep.subr.bf16.mxu0 0
  %237 = vmatpush2.bf16.msra.mxu0 %v171
  %238 = vmatprep.mubr.bf16.mxu0 %v183
  %239 = vmatmul.mubr.bf16.gmra.mxu0 %v103
  %v240 = vpop.f32.mrf.mxu0
  %v241 = vadd.f32 0.0, %v240
  %v242 = vpop.f32.mrf.mxu0
  %v243 = vpop.f32.mrf.mxu0
  %v244 = vadd.f32 0.0, %v243
  %v245 = vpop.f32.mrf.mxu0
  %246 = vmatprep.mubr.bf16.mxu0 %v186
  %247 = vmatmul.mubr.bf16.gmra.mxu0 %v105
  %v248 = vpop.f32.mrf.mxu0
  %v249 = vadd.f32 0.0, %v248
  %v250 = vpop.f32.mrf.mxu0
  %v251 = vpop.f32.mrf.mxu0
  %v252 = vadd.f32 0.0, %v251
  %v253 = vpop.f32.mrf.mxu0
  %254 = vmatprep.mubr.bf16.mxu0 %v189
  %255 = vmatmul.mubr.bf16.gmra.mxu0 %v107
  %v256 = vpop.f32.mrf.mxu0
  %v257 = vadd.f32 0.0, %v256
  %v258 = vpop.f32.mrf.mxu0
  %v259 = vpop.f32.mrf.mxu0
  %v260 = vadd.f32 0.0, %v259
  %v261 = vpop.f32.mrf.mxu0
  %262 = vmatprep.mubr.bf16.mxu0 %v192
  %263 = vmatmul.mubr.bf16.gmra.mxu0 %v109
  %v264 = vpop.f32.mrf.mxu0
  %v265 = vadd.f32 0.0, %v264
  %v266 = vpop.f32.mrf.mxu0
  %v267 = vpop.f32.mrf.mxu0
  %v268 = vadd.f32 0.0, %v267
  %v269 = vpop.f32.mrf.mxu0
  %270 = vmatprep.mubr.bf16.mxu0 %v195
  %271 = vmatmul.mubr.bf16.gmra.mxu0 %v111
  %v272 = vpop.f32.mrf.mxu0
  %v273 = vadd.f32 0.0, %v272
  %v274 = vpop.f32.mrf.mxu0
  %v275 = vpop.f32.mrf.mxu0
  %v276 = vadd.f32 0.0, %v275
  %v277 = vpop.f32.mrf.mxu0
  %278 = vmatprep.mubr.bf16.mxu0 %v198
  %279 = vmatmul.mubr.bf16.gmra.mxu0 %v113
  %v280 = vpop.f32.mrf.mxu0
  %v281 = vadd.f32 0.0, %v280
  %v282 = vpop.f32.mrf.mxu0
  %v283 = vpop.f32.mrf.mxu0
  %v284 = vadd.f32 0.0, %v283
  %v285 = vpop.f32.mrf.mxu0
  %286 = vmatprep.mubr.bf16.mxu0 %v201
  %287 = vmatmul.mubr.bf16.gmra.mxu0 %v115
  %v288 = vpop.f32.mrf.mxu0
  %v289 = vadd.f32 0.0, %v288
  %v290 = vpop.f32.mrf.mxu0
  %v291 = vpop.f32.mrf.mxu0
  %v292 = vadd.f32 0.0, %v291
  %v293 = vpop.f32.mrf.mxu0
  %294 = vmatprep.mubr.bf16.mxu0 %v204
  %295 = vmatmul.mubr.bf16.gmra.mxu0 %v117
  %v296 = vpop.f32.mrf.mxu0
  %v297 = vadd.f32 0.0, %v296
  %v298 = vpop.f32.mrf.mxu0
  %v299 = vpop.f32.mrf.mxu0
  %v300 = vadd.f32 0.0, %v299
  %v301 = vpop.f32.mrf.mxu0
  %302 = vdwg.mxu0
  %v303 = vld [vmem:[%s2] sm:$0x1]
  %v305 = vlaneseq
  %v306 = vshrl.u32 %v305, 7
  %v307 = vsub.s32 0, %v306
  %v308 = vrot.slane %v303, %v307
  %v310 = vmul.f32 %v241, %v308
  %v311 = vmul.f32 %v244, %v308
  %v312 = vmul.f32 %v249, %v308
  %v313 = vmul.f32 %v252, %v308
  %v314 = vmul.f32 %v257, %v308
  %v315 = vmul.f32 %v260, %v308
  %v316 = vmul.f32 %v265, %v308
  %v317 = vmul.f32 %v268, %v308
  %v318 = vmul.f32 %v273, %v308
  %v319 = vmul.f32 %v276, %v308
  %v320 = vmul.f32 %v281, %v308
  %v321 = vmul.f32 %v284, %v308
  %v322 = vmul.f32 %v289, %v308
  %v323 = vmul.f32 %v292, %v308
  %v324 = vmul.f32 %v297, %v308
  %v325 = vmul.f32 %v300, %v308
  %v326 = vld [vmem:[%s3] sm:$0x1]
  %v328 = vlaneseq
  %v329 = vshrl.u32 %v328, 7
  %v330 = vsub.s32 0, %v329
  %v331 = vrot.slane %v326, %v330
  %v333 = vadd.f32 %v310, %v331
  %v334 = vadd.f32 %v311, %v331
  %v335 = vadd.f32 %v312, %v331
  %v336 = vadd.f32 %v313, %v331
  %v337 = vadd.f32 %v314, %v331
  %v338 = vadd.f32 %v315, %v331
  %v339 = vadd.f32 %v316, %v331
  %v340 = vadd.f32 %v317, %v331
  %v341 = vadd.f32 %v318, %v331
  %v342 = vadd.f32 %v319, %v331
  %v343 = vadd.f32 %v320, %v331
  %v344 = vadd.f32 %v321, %v331
  %v345 = vadd.f32 %v322, %v331
  %v346 = vadd.f32 %v323, %v331
  %v347 = vadd.f32 %v324, %v331
  %v348 = vadd.f32 %v325, %v331
  %v349 = vld [vmem:[%s4] sm:$0xff]
  %v350 = vld [vmem:[%s4 + $0x8] sm:$0xff]
  %v351 = vld [vmem:[%s4 + $0x10] sm:$0xff]
  %v352 = vld [vmem:[%s4 + $0x18] sm:$0xff]
  %v353 = vld [vmem:[%s4 + $0x20] sm:$0xff]
  %v354 = vld [vmem:[%s4 + $0x28] sm:$0xff]
  %v355 = vld [vmem:[%s4 + $0x30] sm:$0xff]
  %v356 = vld [vmem:[%s4 + $0x38] sm:$0xff]
  %v357 = vld [vmem:[%s4 + $0x40] sm:$0xff]
  %v358 = vld [vmem:[%s4 + $0x48] sm:$0xff]
  %v359 = vld [vmem:[%s4 + $0x50] sm:$0xff]
  %v360 = vld [vmem:[%s4 + $0x58] sm:$0xff]
  %v361 = vld [vmem:[%s4 + $0x60] sm:$0xff]
  %v362 = vld [vmem:[%s4 + $0x68] sm:$0xff]
  %v363 = vld [vmem:[%s4 + $0x70] sm:$0xff]
  %v364 = vld [vmem:[%s4 + $0x78] sm:$0xff]
  %v365 = vadd.f32 %v333, %v349
  %v366 = vadd.f32 %v334, %v350
  %v367 = vadd.f32 %v335, %v351
  %v368 = vadd.f32 %v336, %v352
  %v369 = vadd.f32 %v337, %v353
  %v370 = vadd.f32 %v338, %v354
  %v371 = vadd.f32 %v339, %v355
  %v372 = vadd.f32 %v340, %v356
  %v373 = vadd.f32 %v341, %v357
  %v374 = vadd.f32 %v342, %v358
  %v375 = vadd.f32 %v343, %v359
  %v376 = vadd.f32 %v344, %v360
  %v377 = vadd.f32 %v345, %v361
  %v378 = vadd.f32 %v346, %v362
  %v379 = vadd.f32 %v347, %v363
  %v380 = vadd.f32 %v348, %v364
  %v381 = vmax.f32 %v365, 0.0
  %v382 = vmax.f32 %v366, 0.0
  %v383 = vmax.f32 %v367, 0.0
  %v384 = vmax.f32 %v368, 0.0
  %v385 = vmax.f32 %v369, 0.0
  %v386 = vmax.f32 %v370, 0.0
  %v387 = vmax.f32 %v371, 0.0
  %v388 = vmax.f32 %v372, 0.0
  %v389 = vmax.f32 %v373, 0.0
  %v390 = vmax.f32 %v374, 0.0
  %v391 = vmax.f32 %v375, 0.0
  %v392 = vmax.f32 %v376, 0.0
  %v393 = vmax.f32 %v377, 0.0
  %v394 = vmax.f32 %v378, 0.0
  %v395 = vmax.f32 %v379, 0.0
  %v396 = vmax.f32 %v380, 0.0
  %397 = vst.msk [vmem:[%s5] sm:$0xff] %vm181, %v381
  %398 = vst.msk [vmem:[%s5 + $0x8] sm:$0xff] %vm181, %v382
  %399 = vst.msk [vmem:[%s5 + $0x10] sm:$0xff] %vm181, %v383
  %400 = vst.msk [vmem:[%s5 + $0x18] sm:$0xff] %vm181, %v384
  %401 = vst.msk [vmem:[%s5 + $0x20] sm:$0xff] %vm181, %v385
  %402 = vst.msk [vmem:[%s5 + $0x28] sm:$0xff] %vm181, %v386
  %403 = vst.msk [vmem:[%s5 + $0x30] sm:$0xff] %vm181, %v387
  %404 = vst.msk [vmem:[%s5 + $0x38] sm:$0xff] %vm181, %v388
  %405 = vst.msk [vmem:[%s5 + $0x40] sm:$0xff] %vm181, %v389
  %406 = vst.msk [vmem:[%s5 + $0x48] sm:$0xff] %vm181, %v390
  %407 = vst.msk [vmem:[%s5 + $0x50] sm:$0xff] %vm181, %v391
  %408 = vst.msk [vmem:[%s5 + $0x58] sm:$0xff] %vm181, %v392
  %409 = vst.msk [vmem:[%s5 + $0x60] sm:$0xff] %vm181, %v393
  %410 = vst.msk [vmem:[%s5 + $0x68] sm:$0xff] %vm181, %v394
  %411 = vst.msk [vmem:[%s5 + $0x70] sm:$0xff] %vm181, %v395
  %412 = vst.msk [vmem:[%s5 + $0x78] sm:$0xff] %vm181, %v396
  // Predicated region
  $region22: #{detector_forward.19} parent=0 // pred_check
    _
  $region23: #{detector_forward.19} parent=0 // pred_check_branch
    %414 = sbr.rel (0) target = $region25
  $region24: #{detector_forward.19} parent=0 // pred_region
    _
  $region25: #{detector_forward.19} parent=0 // pred_fallthru
    _
  // Predicated region
  $region26: #{detector_forward.19} parent=0 // pred_check
    _
  $region27: #{detector_forward.19} parent=0 // pred_check_branch
    %416 = sbr.rel (0) target = $region29
  $region28: #{detector_forward.19} parent=0 // pred_region
    _
  $region29: #{detector_forward.19} parent=0 // pred_fallthru
    _

// kernel: detector_forward.20
$region0: #{detector_forward.20}
  #allocation0 [shape = 'u32[]', space=smem, size = 0x4, offset = 0x4, fixed_abs, tag = 'smem constant byte address 0x4 - core index']
  #allocation1 [shape = 'u32[144,128]{1,0:T(1,128)}', space=vmem, size = 0x12000, scoped, tag = 'internal scratch']
  %s0 = inlined_call_operand.vmem [shape: bf16[32,144], index: 0, kind: input, shape index: {}]
  %s1 = inlined_call_operand.vmem [shape: bf16[144,16], index: 1, kind: input, shape index: {}]
  %s2 = inlined_call_operand.vmem [shape: f32[1,16], index: 2, kind: input, shape index: {}]
  %s3 = inlined_call_operand.vmem [shape: f32[1,16], index: 3, kind: input, shape index: {}]
  %s4 = inlined_call_operand.vmem [shape: f32[32,16], index: 4, kind: output, shape index: {}]
  %s5 = sld [smem:[#allocation0]]
  $region26: #{detector_forward.20} parent=0
    _
  %s7 = ssub.s32 1, %s5
  %s8 = scalar_select 0, %s7, %s5
  // Predicated region
  $region2: #{detector_forward.20} parent=0 // pred_check
    _
  $region3: #{detector_forward.20} parent=0 // pred_check_branch
    %10 = sbr.rel (0) target = $region5
  $region4: #{detector_forward.20} parent=0 // pred_region
    _
  $region5: #{detector_forward.20} parent=0 // pred_fallthru
    _
  // Predicated region
  $region6: #{detector_forward.20} parent=0 // pred_check
    _
  $region7: #{detector_forward.20} parent=0 // pred_check_branch
    %12 = sbr.rel (0) target = $region9
  $region8: #{detector_forward.20} parent=0 // pred_region
    _
  $region9: #{detector_forward.20} parent=0 // pred_fallthru
    _
  // Predicated region
  $region10: #{detector_forward.20} parent=0 // pred_check
    _
  $region11: #{detector_forward.20} parent=0 // pred_check_branch
    %14 = sbr.rel (0) target = $region13
  $region12: #{detector_forward.20} parent=0 // pred_region
    _
  $region13: #{detector_forward.20} parent=0 // pred_fallthru
    _
  // Predicated region
  $region14: #{detector_forward.20} parent=0 // pred_check
    _
  $region15: #{detector_forward.20} parent=0 // pred_check_branch
    %16 = sbr.rel (0) target = $region17
  $region16: #{detector_forward.20} parent=0 // pred_region
    _
  $region17: #{detector_forward.20} parent=0 // pred_fallthru
    _
  %v18 = vld [vmem:[%s0] sm:$0xff]
  %v19 = vld [vmem:[%s0 + $0x8] sm:$0xff]
  %v20 = vld [vmem:[%s0 + $0x10] sm:$0xff]
  %v21 = vld [vmem:[%s0 + $0x18] sm:$0xff]
  %v22 = vld [vmem:[%s1] sm:$0xf]
  %v23 = vld [vmem:[%s1 + $0x4] sm:$0xf]
  %v24 = vld [vmem:[%s1 + $0x8] sm:$0xf]
  %v25 = vld [vmem:[%s1 + $0xc] sm:$0xf]
  %v26 = vld [vmem:[%s1 + $0x10] sm:$0xf]
  %v27 = vld [vmem:[%s1 + $0x14] sm:$0xf]
  %v28 = vld [vmem:[%s1 + $0x18] sm:$0xf]
  %v29 = vld [vmem:[%s1 + $0x1c] sm:$0xf]
  %v30 = vld [vmem:[%s1 + $0x20] sm:$0xf]
  %v31 = vld [vmem:[%s1 + $0x24] sm:$0xf]
  %v32 = vld [vmem:[%s1 + $0x28] sm:$0xf]
  %v33 = vld [vmem:[%s1 + $0x2c] sm:$0xf]
  %v34 = vld [vmem:[%s1 + $0x30] sm:$0xf]
  %v35 = vld [vmem:[%s1 + $0x34] sm:$0xf]
  %v36 = vld [vmem:[%s1 + $0x38] sm:$0xf]
  %v37 = vld [vmem:[%s1 + $0x3c] sm:$0xf]
  %v38 = vld [vmem:[%s1 + $0x40] sm:$0xf]
  %v39 = vld [vmem:[%s1 + $0x44] sm:$0xf]
  %v44 = vunpack.c.l.b16 %v18
  %v45 = vunpack.c.h.b16 %v18
  %v46 = vunpack.c.l.b16 %v19
  %v47 = vunpack.c.h.b16 %v19
  %v48 = vunpack.c.l.b16 %v20
  %v49 = vunpack.c.h.b16 %v20
  %v50 = vunpack.c.l.b16 %v21
  %v51 = vunpack.c.h.b16 %v21
  %v52 = vpack.c.b16 %v46, %v44
  %v53 = vpack.c.b16 %v47, %v45
  %v54 = vpack.c.b16 %v50, %v48
  %v55 = vpack.c.b16 %v51, %v49
  %v76 = vunpack.c.l.b16 %v22
  %v77 = vunpack.c.l.b16 %v23
  %v78 = vunpack.c.l.b16 %v24
  %v79 = vunpack.c.l.b16 %v25
  %v80 = vunpack.c.l.b16 %v26
  %v81 = vunpack.c.l.b16 %v27
  %v82 = vunpack.c.l.b16 %v28
  %v83 = vunpack.c.l.b16 %v29
  %v84 = vunpack.c.l.b16 %v30
  %v85 = vunpack.c.l.b16 %v31
  %v86 = vunpack.c.l.b16 %v32
  %v87 = vunpack.c.l.b16 %v33
  %v88 = vunpack.c.l.b16 %v34
  %v89 = vunpack.c.l.b16 %v35
  %v90 = vunpack.c.l.b16 %v36
  %v91 = vunpack.c.l.b16 %v37
  %v92 = vunpack.c.l.b16 %v38
  %v93 = vunpack.c.l.b16 %v39
  %v94 = vpack.c.b16 %v77, %v76
  %v95 = vpack.c.b16 %v79, %v78
  %v96 = vpack.c.b16 %v81, %v80
  %v97 = vpack.c.b16 %v83, %v82
  %v98 = vpack.c.b16 %v85, %v84
  %v99 = vpack.c.b16 %v87, %v86
  %v100 = vpack.c.b16 %v89, %v88
  %v101 = vpack.c.b16 %v91, %v90
  %v102 = vpack.c.b16 %v93, %v92
  %vm112 = vcmask 130048
  %v114 = vsel %vm112, %v53, 0
  %v117 = vsel %vm112, %v55, 0
  %119 = vmatprep.subr.bf16.mxu0 0
  %120 = vmatpush1.bf16.msra.mxu0 %v101
  %121 = vmatprep.subr.bf16.mxu0 0
  %122 = vmatpush1.bf16.msra.mxu0 %v100
  %123 = vmatprep.subr.bf16.mxu0 0
  %124 = vmatpush1.bf16.msra.mxu0 %v99
  %125 = vmatprep.subr.bf16.mxu0 0
  %126 = vmatpush1.bf16.msra.mxu0 %v98
  %127 = vmatprep.subr.bf16.mxu0 0
  %128 = vmatpush1.bf16.msra.mxu0 %v97
  %129 = vmatprep.subr.bf16.mxu0 0
  %130 = vmatpush1.bf16.msra.mxu0 %v96
  %131 = vmatprep.subr.bf16.mxu0 0
  %132 = vmatpush1.bf16.msra.mxu0 %v95
  %133 = vmatprep.subr.bf16.mxu0 0
  %134 = vmatpush1.bf16.msra.mxu0 %v94
  %135 = vmatprep.subr.bf16.mxu0 0
  %136 = vmatpush2.bf16.msra.mxu0 0
  %137 = vmatprep.subr.bf16.mxu0 0
  %138 = vmatpush2.bf16.msra.mxu0 0
  %139 = vmatprep.subr.bf16.mxu0 0
  %140 = vmatpush2.bf16.msra.mxu0 0
  %141 = vmatprep.subr.bf16.mxu0 0
  %142 = vmatpush2.bf16.msra.mxu0 0
  %143 = vmatprep.subr.bf16.mxu0 0
  %144 = vmatpush2.bf16.msra.mxu0 0
  %145 = vmatprep.subr.bf16.mxu0 0
  %146 = vmatpush2.bf16.msra.mxu0 0
  %147 = vmatprep.subr.bf16.mxu0 0
  %148 = vmatpush2.bf16.msra.mxu0 0
  %149 = vmatprep.subr.bf16.mxu0 0
  %150 = vmatpush2.bf16.msra.mxu0 %v102
  %151 = vmatprep.mubr.bf16.mxu0 %v114
  %152 = vmatmul.mubr.bf16.gmra.mxu0 %v52
  %v153 = vpop.f32.mrf.mxu0
  %v154 = vadd.f32 0.0, %v153
  %v155 = vpop.f32.mrf.mxu0
  %v156 = vpop.f32.mrf.mxu0
  %v157 = vadd.f32 0.0, %v156
  %v158 = vpop.f32.mrf.mxu0
  %159 = vmatprep.mubr.bf16.mxu0 %v117
  %160 = vmatmul.mubr.bf16.gmra.mxu0 %v54
  %v161 = vpop.f32.mrf.mxu0
  %v162 = vadd.f32 0.0, %v161
  %v163 = vpop.f32.mrf.mxu0
  %v164 = vpop.f32.mrf.mxu0
  %v165 = vadd.f32 0.0, %v164
  %v166 = vpop.f32.mrf.mxu0
  %167 = vdwg.mxu0
  %v168 = vld [vmem:[%s2] sm:$0x1]
  %v170 = vlaneseq
  %v171 = vshrl.u32 %v170, 7
  %v172 = vsub.s32 0, %v171
  %v173 = vrot.slane %v168, %v172
  %v175 = vmul.f32 %v154, %v173
  %v176 = vmul.f32 %v157, %v173
  %v177 = vmul.f32 %v162, %v173
  %v178 = vmul.f32 %v165, %v173
  %v179 = vld [vmem:[%s3] sm:$0x1]
  %v181 = vlaneseq
  %v182 = vshrl.u32 %v181, 7
  %v183 = vsub.s32 0, %v182
  %v184 = vrot.slane %v179, %v183
  %v186 = vadd.f32 %v175, %v184
  %v187 = vadd.f32 %v176, %v184
  %v188 = vadd.f32 %v177, %v184
  %v189 = vadd.f32 %v178, %v184
  %v190 = vmax.f32 %v186, 0.0
  %v191 = vmax.f32 %v187, 0.0
  %v192 = vmax.f32 %v188, 0.0
  %v193 = vmax.f32 %v189, 0.0
  %194 = vst.msk [vmem:[%s4] sm:$0xff] %vm112, %v190
  %195 = vst.msk [vmem:[%s4 + $0x8] sm:$0xff] %vm112, %v191
  %196 = vst.msk [vmem:[%s4 + $0x10] sm:$0xff] %vm112, %v192
  %197 = vst.msk [vmem:[%s4 + $0x18] sm:$0xff] %vm112, %v193
  // Predicated region
  $region18: #{detector_forward.20} parent=0 // pred_check
    _
  $region19: #{detector_forward.20} parent=0 // pred_check_branch
    %199 = sbr.rel (0) target = $region21
  $region20: #{detector_forward.20} parent=0 // pred_region
    _
  $region21: #{detector_forward.20} parent=0 // pred_fallthru
    _
  // Predicated region
  $region22: #{detector_forward.20} parent=0 // pred_check
    _
  $region23: #{detector_forward.20} parent=0 // pred_check_branch
    %201 = sbr.rel (0) target = $region25
  $region24: #{detector_forward.20} parent=0 // pred_region
    _
  $region25: #{detector_forward.20} parent=0 // pred_fallthru
    _

// kernel: detector_forward.21
$region0: #{detector_forward.21}
  #allocation0 [shape = 'u32[]', space=smem, size = 0x4, offset = 0x4, fixed_abs, tag = 'smem constant byte address 0x4 - core index']
  #allocation1 [shape = 'u32[144,128]{1,0:T(1,128)}', space=vmem, size = 0x12000, scoped, tag = 'internal scratch']
  %s0 = inlined_call_operand.vmem [shape: bf16[32,16], index: 0, kind: input, shape index: {}]
  %s1 = inlined_call_operand.vmem [shape: bf16[16,16], index: 1, kind: input, shape index: {}]
  %s2 = inlined_call_operand.vmem [shape: f32[1,16], index: 2, kind: input, shape index: {}]
  %s3 = inlined_call_operand.vmem [shape: f32[1,16], index: 3, kind: input, shape index: {}]
  %s4 = inlined_call_operand.vmem [shape: f32[32,16], index: 4, kind: output, shape index: {}]
  %s5 = sld [smem:[#allocation0]]
  $region26: #{detector_forward.21} parent=0
    _
  %s7 = ssub.s32 1, %s5
  %s8 = scalar_select 0, %s7, %s5
  // Predicated region
  $region2: #{detector_forward.21} parent=0 // pred_check
    _
  $region3: #{detector_forward.21} parent=0 // pred_check_branch
    %10 = sbr.rel (0) target = $region5
  $region4: #{detector_forward.21} parent=0 // pred_region
    _
  $region5: #{detector_forward.21} parent=0 // pred_fallthru
    _
  // Predicated region
  $region6: #{detector_forward.21} parent=0 // pred_check
    _
  $region7: #{detector_forward.21} parent=0 // pred_check_branch
    %12 = sbr.rel (0) target = $region9
  $region8: #{detector_forward.21} parent=0 // pred_region
    _
  $region9: #{detector_forward.21} parent=0 // pred_fallthru
    _
  // Predicated region
  $region10: #{detector_forward.21} parent=0 // pred_check
    _
  $region11: #{detector_forward.21} parent=0 // pred_check_branch
    %14 = sbr.rel (0) target = $region13
  $region12: #{detector_forward.21} parent=0 // pred_region
    _
  $region13: #{detector_forward.21} parent=0 // pred_fallthru
    _
  // Predicated region
  $region14: #{detector_forward.21} parent=0 // pred_check
    _
  $region15: #{detector_forward.21} parent=0 // pred_check_branch
    %16 = sbr.rel (0) target = $region17
  $region16: #{detector_forward.21} parent=0 // pred_region
    _
  $region17: #{detector_forward.21} parent=0 // pred_fallthru
    _
  %v18 = vld [vmem:[%s0] sm:$0xf]
  %v19 = vld [vmem:[%s0 + $0x4] sm:$0xf]
  %v20 = vld [vmem:[%s0 + $0x8] sm:$0xf]
  %v21 = vld [vmem:[%s0 + $0xc] sm:$0xf]
  %v22 = vld [vmem:[%s1] sm:$0xf]
  %v23 = vld [vmem:[%s1 + $0x4] sm:$0xf]
  %v28 = vunpack.c.l.b16 %v18
  %v29 = vunpack.c.l.b16 %v19
  %v30 = vunpack.c.l.b16 %v20
  %v31 = vunpack.c.l.b16 %v21
  %v32 = vpack.c.b16 %v29, %v28
  %v33 = vpack.c.b16 %v31, %v30
  %v36 = vunpack.c.l.b16 %v22
  %v37 = vunpack.c.l.b16 %v23
  %v38 = vpack.c.b16 %v37, %v36
  %vm40 = vcmask 130048
  %v42 = vsel %vm40, %v32, 0
  %v45 = vsel %vm40, %v33, 0
  %47 = vmatprep.subr.bf16.mxu0 0
  %48 = vmatpush1.bf16.msra.mxu0 0
  %49 = vmatprep.subr.bf16.mxu0 0
  %50 = vmatpush1.bf16.msra.mxu0 0
  %51 = vmatprep.subr.bf16.mxu0 0
  %52 = vmatpush1.bf16.msra.mxu0 0
  %53 = vmatprep.subr.bf16.mxu0 0
  %54 = vmatpush1.bf16.msra.mxu0 0
  %55 = vmatprep.subr.bf16.mxu0 0
  %56 = vmatpush1.bf16.msra.mxu0 0
  %57 = vmatprep.subr.bf16.mxu0 0
  %58 = vmatpush1.bf16.msra.mxu0 0
  %59 = vmatprep.subr.bf16.mxu0 0
  %60 = vmatpush1.bf16.msra.mxu0 0
  %61 = vmatprep.subr.bf16.mxu0 0
  %62 = vmatpush1.bf16.msra.mxu0 %v38
  %63 = vmatprep.subr.bf16.mxu0 0
  %64 = vmatpush2.bf16.msra.mxu0 0
  %65 = vmatprep.subr.bf16.mxu0 0
  %66 = vmatpush2.bf16.msra.mxu0 0
  %67 = vmatprep.subr.bf16.mxu0 0
  %68 = vmatpush2.bf16.msra.mxu0 0
  %69 = vmatprep.subr.bf16.mxu0 0
  %70 = vmatpush2.bf16.msra.mxu0 0
  %71 = vmatprep.subr.bf16.mxu0 0
  %72 = vmatpush2.bf16.msra.mxu0 0
  %73 = vmatprep.subr.bf16.mxu0 0
  %74 = vmatpush2.bf16.msra.mxu0 0
  %75 = vmatprep.subr.bf16.mxu0 0
  %76 = vmatpush2.bf16.msra.mxu0 0
  %77 = vmatprep.subr.bf16.mxu0 0
  %78 = vmatpush2.bf16.msra.mxu0 0
  %79 = vmatprep.mubr.bf16.mxu0 0
  %80 = vmatmul.mubr.bf16.gmra.mxu0 %v42
  %v81 = vpop.f32.mrf.mxu0
  %v82 = vadd.f32 0.0, %v81
  %v83 = vpop.f32.mrf.mxu0
  %v84 = vpop.f32.mrf.mxu0
  %v85 = vadd.f32 0.0, %v84
  %v86 = vpop.f32.mrf.mxu0
  %87 = vmatprep.mubr.bf16.mxu0 0
  %88 = vmatmul.mubr.bf16.gmra.mxu0 %v45
  %v89 = vpop.f32.mrf.mxu0
  %v90 = vadd.f32 0.0, %v89
  %v91 = vpop.f32.mrf.mxu0
  %v92 = vpop.f32.mrf.mxu0
  %v93 = vadd.f32 0.0, %v92
  %v94 = vpop.f32.mrf.mxu0
  %95 = vdwg.mxu0
  %v96 = vld [vmem:[%s2] sm:$0x1]
  %v98 = vlaneseq
  %v99 = vshrl.u32 %v98, 7
  %v100 = vsub.s32 0, %v99
  %v101 = vrot.slane %v96, %v100
  %v103 = vmul.f32 %v82, %v101
  %v104 = vmul.f32 %v85, %v101
  %v105 = vmul.f32 %v90, %v101
  %v106 = vmul.f32 %v93, %v101
  %v107 = vld [vmem:[%s3] sm:$0x1]
  %v109 = vlaneseq
  %v110 = vshrl.u32 %v109, 7
  %v111 = vsub.s32 0, %v110
  %v112 = vrot.slane %v107, %v111
  %v114 = vadd.f32 %v103, %v112
  %v115 = vadd.f32 %v104, %v112
  %v116 = vadd.f32 %v105, %v112
  %v117 = vadd.f32 %v106, %v112
  %118 = vst.msk [vmem:[%s4] sm:$0xff] %vm40, %v114
  %119 = vst.msk [vmem:[%s4 + $0x8] sm:$0xff] %vm40, %v115
  %120 = vst.msk [vmem:[%s4 + $0x10] sm:$0xff] %vm40, %v116
  %121 = vst.msk [vmem:[%s4 + $0x18] sm:$0xff] %vm40, %v117
  // Predicated region
  $region18: #{detector_forward.21} parent=0 // pred_check
    _
  $region19: #{detector_forward.21} parent=0 // pred_check_branch
    %123 = sbr.rel (0) target = $region21
  $region20: #{detector_forward.21} parent=0 // pred_region
    _
  $region21: #{detector_forward.21} parent=0 // pred_fallthru
    _
  // Predicated region
  $region22: #{detector_forward.21} parent=0 // pred_check
    _
  $region23: #{detector_forward.21} parent=0 // pred_check_branch
    %125 = sbr.rel (0) target = $region25
  $region24: #{detector_forward.21} parent=0 // pred_region
    _
  $region25: #{detector_forward.21} parent=0 // pred_fallthru
    _

// kernel: detector_forward.22
$region0: #{detector_forward.22}
  #allocation0 [shape = 'u32[]', space=smem, size = 0x4, offset = 0x4, fixed_abs, tag = 'smem constant byte address 0x4 - core index']
  #allocation1 [shape = 'u32[144,128]{1,0:T(1,128)}', space=vmem, size = 0x12000, scoped, tag = 'internal scratch']
  %s0 = inlined_call_operand.vmem [shape: bf16[32,144], index: 0, kind: input, shape index: {}]
  %s1 = inlined_call_operand.vmem [shape: bf16[144,16], index: 1, kind: input, shape index: {}]
  %s2 = inlined_call_operand.vmem [shape: f32[1,16], index: 2, kind: input, shape index: {}]
  %s3 = inlined_call_operand.vmem [shape: f32[1,16], index: 3, kind: input, shape index: {}]
  %s4 = inlined_call_operand.vmem [shape: f32[32,16], index: 4, kind: input, shape index: {}]
  %s5 = inlined_call_operand.vmem [shape: f32[32,16], index: 5, kind: output, shape index: {}]
  %s6 = sld [smem:[#allocation0]]
  $region30: #{detector_forward.22} parent=0
    _
  %s8 = ssub.s32 1, %s6
  %s9 = scalar_select 0, %s8, %s6
  // Predicated region
  $region2: #{detector_forward.22} parent=0 // pred_check
    _
  $region3: #{detector_forward.22} parent=0 // pred_check_branch
    %11 = sbr.rel (0) target = $region5
  $region4: #{detector_forward.22} parent=0 // pred_region
    _
  $region5: #{detector_forward.22} parent=0 // pred_fallthru
    _
  // Predicated region
  $region6: #{detector_forward.22} parent=0 // pred_check
    _
  $region7: #{detector_forward.22} parent=0 // pred_check_branch
    %13 = sbr.rel (0) target = $region9
  $region8: #{detector_forward.22} parent=0 // pred_region
    _
  $region9: #{detector_forward.22} parent=0 // pred_fallthru
    _
  // Predicated region
  $region10: #{detector_forward.22} parent=0 // pred_check
    _
  $region11: #{detector_forward.22} parent=0 // pred_check_branch
    %15 = sbr.rel (0) target = $region13
  $region12: #{detector_forward.22} parent=0 // pred_region
    _
  $region13: #{detector_forward.22} parent=0 // pred_fallthru
    _
  // Predicated region
  $region14: #{detector_forward.22} parent=0 // pred_check
    _
  $region15: #{detector_forward.22} parent=0 // pred_check_branch
    %17 = sbr.rel (0) target = $region17
  $region16: #{detector_forward.22} parent=0 // pred_region
    _
  $region17: #{detector_forward.22} parent=0 // pred_fallthru
    _
  // Predicated region
  $region18: #{detector_forward.22} parent=0 // pred_check
    _
  $region19: #{detector_forward.22} parent=0 // pred_check_branch
    %19 = sbr.rel (0) target = $region21
  $region20: #{detector_forward.22} parent=0 // pred_region
    _
  $region21: #{detector_forward.22} parent=0 // pred_fallthru
    _
  %v21 = vld [vmem:[%s0] sm:$0xff]
  %v22 = vld [vmem:[%s0 + $0x8] sm:$0xff]
  %v23 = vld [vmem:[%s0 + $0x10] sm:$0xff]
  %v24 = vld [vmem:[%s0 + $0x18] sm:$0xff]
  %v25 = vld [vmem:[%s1] sm:$0xf]
  %v26 = vld [vmem:[%s1 + $0x4] sm:$0xf]
  %v27 = vld [vmem:[%s1 + $0x8] sm:$0xf]
  %v28 = vld [vmem:[%s1 + $0xc] sm:$0xf]
  %v29 = vld [vmem:[%s1 + $0x10] sm:$0xf]
  %v30 = vld [vmem:[%s1 + $0x14] sm:$0xf]
  %v31 = vld [vmem:[%s1 + $0x18] sm:$0xf]
  %v32 = vld [vmem:[%s1 + $0x1c] sm:$0xf]
  %v33 = vld [vmem:[%s1 + $0x20] sm:$0xf]
  %v34 = vld [vmem:[%s1 + $0x24] sm:$0xf]
  %v35 = vld [vmem:[%s1 + $0x28] sm:$0xf]
  %v36 = vld [vmem:[%s1 + $0x2c] sm:$0xf]
  %v37 = vld [vmem:[%s1 + $0x30] sm:$0xf]
  %v38 = vld [vmem:[%s1 + $0x34] sm:$0xf]
  %v39 = vld [vmem:[%s1 + $0x38] sm:$0xf]
  %v40 = vld [vmem:[%s1 + $0x3c] sm:$0xf]
  %v41 = vld [vmem:[%s1 + $0x40] sm:$0xf]
  %v42 = vld [vmem:[%s1 + $0x44] sm:$0xf]
  %v47 = vunpack.c.l.b16 %v21
  %v48 = vunpack.c.h.b16 %v21
  %v49 = vunpack.c.l.b16 %v22
  %v50 = vunpack.c.h.b16 %v22
  %v51 = vunpack.c.l.b16 %v23
  %v52 = vunpack.c.h.b16 %v23
  %v53 = vunpack.c.l.b16 %v24
  %v54 = vunpack.c.h.b16 %v24
  %v55 = vpack.c.b16 %v49, %v47
  %v56 = vpack.c.b16 %v50, %v48
  %v57 = vpack.c.b16 %v53, %v51
  %v58 = vpack.c.b16 %v54, %v52
  %v79 = vunpack.c.l.b16 %v25
  %v80 = vunpack.c.l.b16 %v26
  %v81 = vunpack.c.l.b16 %v27
  %v82 = vunpack.c.l.b16 %v28
  %v83 = vunpack.c.l.b16 %v29
  %v84 = vunpack.c.l.b16 %v30
  %v85 = vunpack.c.l.b16 %v31
  %v86 = vunpack.c.l.b16 %v32
  %v87 = vunpack.c.l.b16 %v33
  %v88 = vunpack.c.l.b16 %v34
  %v89 = vunpack.c.l.b16 %v35
  %v90 = vunpack.c.l.b16 %v36
  %v91 = vunpack.c.l.b16 %v37
  %v92 = vunpack.c.l.b16 %v38
  %v93 = vunpack.c.l.b16 %v39
  %v94 = vunpack.c.l.b16 %v40
  %v95 = vunpack.c.l.b16 %v41
  %v96 = vunpack.c.l.b16 %v42
  %v97 = vpack.c.b16 %v80, %v79
  %v98 = vpack.c.b16 %v82, %v81
  %v99 = vpack.c.b16 %v84, %v83
  %v100 = vpack.c.b16 %v86, %v85
  %v101 = vpack.c.b16 %v88, %v87
  %v102 = vpack.c.b16 %v90, %v89
  %v103 = vpack.c.b16 %v92, %v91
  %v104 = vpack.c.b16 %v94, %v93
  %v105 = vpack.c.b16 %v96, %v95
  %vm115 = vcmask 130048
  %v117 = vsel %vm115, %v56, 0
  %v120 = vsel %vm115, %v58, 0
  %122 = vmatprep.subr.bf16.mxu0 0
  %123 = vmatpush1.bf16.msra.mxu0 %v104
  %124 = vmatprep.subr.bf16.mxu0 0
  %125 = vmatpush1.bf16.msra.mxu0 %v103
  %126 = vmatprep.subr.bf16.mxu0 0
  %127 = vmatpush1.bf16.msra.mxu0 %v102
  %128 = vmatprep.subr.bf16.mxu0 0
  %129 = vmatpush1.bf16.msra.mxu0 %v101
  %130 = vmatprep.subr.bf16.mxu0 0
  %131 = vmatpush1.bf16.msra.mxu0 %v100
  %132 = vmatprep.subr.bf16.mxu0 0
  %133 = vmatpush1.bf16.msra.mxu0 %v99
  %134 = vmatprep.subr.bf16.mxu0 0
  %135 = vmatpush1.bf16.msra.mxu0 %v98
  %136 = vmatprep.subr.bf16.mxu0 0
  %137 = vmatpush1.bf16.msra.mxu0 %v97
  %138 = vmatprep.subr.bf16.mxu0 0
  %139 = vmatpush2.bf16.msra.mxu0 0
  %140 = vmatprep.subr.bf16.mxu0 0
  %141 = vmatpush2.bf16.msra.mxu0 0
  %142 = vmatprep.subr.bf16.mxu0 0
  %143 = vmatpush2.bf16.msra.mxu0 0
  %144 = vmatprep.subr.bf16.mxu0 0
  %145 = vmatpush2.bf16.msra.mxu0 0
  %146 = vmatprep.subr.bf16.mxu0 0
  %147 = vmatpush2.bf16.msra.mxu0 0
  %148 = vmatprep.subr.bf16.mxu0 0
  %149 = vmatpush2.bf16.msra.mxu0 0
  %150 = vmatprep.subr.bf16.mxu0 0
  %151 = vmatpush2.bf16.msra.mxu0 0
  %152 = vmatprep.subr.bf16.mxu0 0
  %153 = vmatpush2.bf16.msra.mxu0 %v105
  %154 = vmatprep.mubr.bf16.mxu0 %v117
  %155 = vmatmul.mubr.bf16.gmra.mxu0 %v55
  %v156 = vpop.f32.mrf.mxu0
  %v157 = vadd.f32 0.0, %v156
  %v158 = vpop.f32.mrf.mxu0
  %v159 = vpop.f32.mrf.mxu0
  %v160 = vadd.f32 0.0, %v159
  %v161 = vpop.f32.mrf.mxu0
  %162 = vmatprep.mubr.bf16.mxu0 %v120
  %163 = vmatmul.mubr.bf16.gmra.mxu0 %v57
  %v164 = vpop.f32.mrf.mxu0
  %v165 = vadd.f32 0.0, %v164
  %v166 = vpop.f32.mrf.mxu0
  %v167 = vpop.f32.mrf.mxu0
  %v168 = vadd.f32 0.0, %v167
  %v169 = vpop.f32.mrf.mxu0
  %170 = vdwg.mxu0
  %v171 = vld [vmem:[%s2] sm:$0x1]
  %v173 = vlaneseq
  %v174 = vshrl.u32 %v173, 7
  %v175 = vsub.s32 0, %v174
  %v176 = vrot.slane %v171, %v175
  %v178 = vmul.f32 %v157, %v176
  %v179 = vmul.f32 %v160, %v176
  %v180 = vmul.f32 %v165, %v176
  %v181 = vmul.f32 %v168, %v176
  %v182 = vld [vmem:[%s3] sm:$0x1]
  %v184 = vlaneseq
  %v185 = vshrl.u32 %v184, 7
  %v186 = vsub.s32 0, %v185
  %v187 = vrot.slane %v182, %v186
  %v189 = vadd.f32 %v178, %v187
  %v190 = vadd.f32 %v179, %v187
  %v191 = vadd.f32 %v180, %v187
  %v192 = vadd.f32 %v181, %v187
  %v193 = vld [vmem:[%s4] sm:$0xff]
  %v194 = vld [vmem:[%s4 + $0x8] sm:$0xff]
  %v195 = vld [vmem:[%s4 + $0x10] sm:$0xff]
  %v196 = vld [vmem:[%s4 + $0x18] sm:$0xff]
  %v197 = vadd.f32 %v189, %v193
  %v198 = vadd.f32 %v190, %v194
  %v199 = vadd.f32 %v191, %v195
  %v200 = vadd.f32 %v192, %v196
  %v201 = vmax.f32 %v197, 0.0
  %v202 = vmax.f32 %v198, 0.0
  %v203 = vmax.f32 %v199, 0.0
  %v204 = vmax.f32 %v200, 0.0
  %205 = vst.msk [vmem:[%s5] sm:$0xff] %vm115, %v201
  %206 = vst.msk [vmem:[%s5 + $0x8] sm:$0xff] %vm115, %v202
  %207 = vst.msk [vmem:[%s5 + $0x10] sm:$0xff] %vm115, %v203
  %208 = vst.msk [vmem:[%s5 + $0x18] sm:$0xff] %vm115, %v204
  // Predicated region
  $region22: #{detector_forward.22} parent=0 // pred_check
    _
  $region23: #{detector_forward.22} parent=0 // pred_check_branch
    %210 = sbr.rel (0) target = $region25
  $region24: #{detector_forward.22} parent=0 // pred_region
    _
  $region25: #{detector_forward.22} parent=0 // pred_fallthru
    _
  // Predicated region
  $region26: #{detector_forward.22} parent=0 // pred_check
    _
  $region27: #{detector_forward.22} parent=0 // pred_check_branch
    %212 = sbr.rel (0) target = $region29
  $region28: #{detector_forward.22} parent=0 // pred_region
    _
  $region29: #{detector_forward.22} parent=0 // pred_fallthru
    _

// kernel: detector_forward.23
$region0: #{detector_forward.23}
  #allocation0 [shape = 'u32[]', space=smem, size = 0x4, offset = 0x4, fixed_abs, tag = 'smem constant byte address 0x4 - core index']
  #allocation1 [shape = 'u32[144,128]{1,0:T(1,128)}', space=vmem, size = 0x12000, scoped, tag = 'internal scratch']
  %s0 = inlined_call_operand.vmem [shape: bf16[8,144], index: 0, kind: input, shape index: {}]
  %s1 = inlined_call_operand.vmem [shape: bf16[144,32], index: 1, kind: input, shape index: {}]
  %s2 = inlined_call_operand.vmem [shape: f32[1,32], index: 2, kind: input, shape index: {}]
  %s3 = inlined_call_operand.vmem [shape: f32[1,32], index: 3, kind: input, shape index: {}]
  %s4 = inlined_call_operand.vmem [shape: f32[8,32], index: 4, kind: output, shape index: {}]
  %s5 = sld [smem:[#allocation0]]
  $region26: #{detector_forward.23} parent=0
    _
  %s7 = ssub.s32 1, %s5
  %s8 = scalar_select 0, %s7, %s5
  // Predicated region
  $region2: #{detector_forward.23} parent=0 // pred_check
    _
  $region3: #{detector_forward.23} parent=0 // pred_check_branch
    %10 = sbr.rel (0) target = $region5
  $region4: #{detector_forward.23} parent=0 // pred_region
    _
  $region5: #{detector_forward.23} parent=0 // pred_fallthru
    _
  // Predicated region
  $region6: #{detector_forward.23} parent=0 // pred_check
    _
  $region7: #{detector_forward.23} parent=0 // pred_check_branch
    %12 = sbr.rel (0) target = $region9
  $region8: #{detector_forward.23} parent=0 // pred_region
    _
  $region9: #{detector_forward.23} parent=0 // pred_fallthru
    _
  // Predicated region
  $region10: #{detector_forward.23} parent=0 // pred_check
    _
  $region11: #{detector_forward.23} parent=0 // pred_check_branch
    %14 = sbr.rel (0) target = $region13
  $region12: #{detector_forward.23} parent=0 // pred_region
    _
  $region13: #{detector_forward.23} parent=0 // pred_fallthru
    _
  // Predicated region
  $region14: #{detector_forward.23} parent=0 // pred_check
    _
  $region15: #{detector_forward.23} parent=0 // pred_check_branch
    %16 = sbr.rel (0) target = $region17
  $region16: #{detector_forward.23} parent=0 // pred_region
    _
  $region17: #{detector_forward.23} parent=0 // pred_fallthru
    _
  %v18 = vld [vmem:[%s0] sm:$0xff]
  %v19 = vld [vmem:[%s1] sm:$0xf]
  %v20 = vld [vmem:[%s1 + $0x4] sm:$0xf]
  %v21 = vld [vmem:[%s1 + $0x8] sm:$0xf]
  %v22 = vld [vmem:[%s1 + $0xc] sm:$0xf]
  %v23 = vld [vmem:[%s1 + $0x10] sm:$0xf]
  %v24 = vld [vmem:[%s1 + $0x14] sm:$0xf]
  %v25 = vld [vmem:[%s1 + $0x18] sm:$0xf]
  %v26 = vld [vmem:[%s1 + $0x1c] sm:$0xf]
  %v27 = vld [vmem:[%s1 + $0x20] sm:$0xf]
  %v28 = vld [vmem:[%s1 + $0x24] sm:$0xf]
  %v29 = vld [vmem:[%s1 + $0x28] sm:$0xf]
  %v30 = vld [vmem:[%s1 + $0x2c] sm:$0xf]
  %v31 = vld [vmem:[%s1 + $0x30] sm:$0xf]
  %v32 = vld [vmem:[%s1 + $0x34] sm:$0xf]
  %v33 = vld [vmem:[%s1 + $0x38] sm:$0xf]
  %v34 = vld [vmem:[%s1 + $0x3c] sm:$0xf]
  %v35 = vld [vmem:[%s1 + $0x40] sm:$0xf]
  %v36 = vld [vmem:[%s1 + $0x44] sm:$0xf]
  %v38 = vunpack.c.l.b16 %v18
  %v39 = vunpack.c.h.b16 %v18
  %v40 = vpack.c.b16 %v38, %v38
  %v41 = vpack.c.b16 %v39, %v39
  %v61 = vunpack.c.l.b16 %v19
  %v62 = vunpack.c.l.b16 %v20
  %v63 = vunpack.c.l.b16 %v21
  %v64 = vunpack.c.l.b16 %v22
  %v65 = vunpack.c.l.b16 %v23
  %v66 = vunpack.c.l.b16 %v24
  %v67 = vunpack.c.l.b16 %v25
  %v68 = vunpack.c.l.b16 %v26
  %v69 = vunpack.c.l.b16 %v27
  %v70 = vunpack.c.l.b16 %v28
  %v71 = vunpack.c.l.b16 %v29
  %v72 = vunpack.c.l.b16 %v30
  %v73 = vunpack.c.l.b16 %v31
  %v74 = vunpack.c.l.b16 %v32
  %v75 = vunpack.c.l.b16 %v33
  %v76 = vunpack.c.l.b16 %v34
  %v77 = vunpack.c.l.b16 %v35
  %v78 = vunpack.c.l.b16 %v36
  %v79 = vpack.c.b16 %v62, %v61
  %v80 = vpack.c.b16 %v64, %v63
  %v81 = vpack.c.b16 %v66, %v65
  %v82 = vpack.c.b16 %v68, %v67
  %v83 = vpack.c.b16 %v70, %v69
  %v84 = vpack.c.b16 %v72, %v71
  %v85 = vpack.c.b16 %v74, %v73
  %v86 = vpack.c.b16 %v76, %v75
  %v87 = vpack.c.b16 %v78, %v77
  %vm97 = vcmask 130048
  %v99 = vsel %vm97, %v41, 0
  %101 = vmatprep.subr.bf16.mxu0 0
  %102 = vmatpush1.bf16.msra.mxu0 %v86
  %103 = vmatprep.subr.bf16.mxu0 0
  %104 = vmatpush1.bf16.msra.mxu0 %v85
  %105 = vmatprep.subr.bf16.mxu0 0
  %106 = vmatpush1.bf16.msra.mxu0 %v84
  %107 = vmatprep.subr.bf16.mxu0 0
  %108 = vmatpush1.bf16.msra.mxu0 %v83
  %109 = vmatprep.subr.bf16.mxu0 0
  %110 = vmatpush1.bf16.msra.mxu0 %v82
  %111 = vmatprep.subr.bf16.mxu0 0
  %112 = vmatpush1.bf16.msra.mxu0 %v81
  %113 = vmatprep.subr.bf16.mxu0 0
  %114 = vmatpush1.bf16.msra.mxu0 %v80
  %115 = vmatprep.subr.bf16.mxu0 0
  %116 = vmatpush1.bf16.msra.mxu0 %v79
  %117 = vmatprep.subr.bf16.mxu0 0
  %118 = vmatpush2.bf16.msra.mxu0 0
  %119 = vmatprep.subr.bf16.mxu0 0
  %120 = vmatpush2.bf16.msra.mxu0 0
  %121 = vmatprep.subr.bf16.mxu0 0
  %122 = vmatpush2.bf16.msra.mxu0 0
  %123 = vmatprep.subr.bf16.mxu0 0
  %124 = vmatpush2.bf16.msra.mxu0 0
  %125 = vmatprep.subr.bf16.mxu0 0
  %126 = vmatpush2.bf16.msra.mxu0 0
  %127 = vmatprep.subr.bf16.mxu0 0
  %128 = vmatpush2.bf16.msra.mxu0 0
  %129 = vmatprep.subr.bf16.mxu0 0
  %130 = vmatpush2.bf16.msra.mxu0 0
  %131 = vmatprep.subr.bf16.mxu0 0
  %132 = vmatpush2.bf16.msra.mxu0 %v87
  %133 = vmatprep.mubr.bf16.mxu0 %v99
  %134 = vmatmul.mubr.bf16.gmra.mxu0 %v40
  %v135 = vpop.f32.mrf.mxu0
  %v136 = vadd.f32 0.0, %v135
  %v137 = vpop.f32.mrf.mxu0
  %v138 = vpop.f32.mrf.mxu0
  %v139 = vpop.f32.mrf.mxu0
  %140 = vdwg.mxu0
  %v141 = vld [vmem:[%s2] sm:$0x1]
  %v143 = vlaneseq
  %v144 = vshrl.u32 %v143, 7
  %v145 = vsub.s32 0, %v144
  %v146 = vrot.slane %v141, %v145
  %v148 = vmul.f32 %v136, %v146
  %v149 = vld [vmem:[%s3] sm:$0x1]
  %v151 = vlaneseq
  %v152 = vshrl.u32 %v151, 7
  %v153 = vsub.s32 0, %v152
  %v154 = vrot.slane %v149, %v153
  %v156 = vadd.f32 %v148, %v154
  %v157 = vmax.f32 %v156, 0.0
  %vm158 = vcmask 261120
  %159 = vst.msk [vmem:[%s4] sm:$0xff] %vm158, %v157
  // Predicated region
  $region18: #{detector_forward.23} parent=0 // pred_check
    _
  $region19: #{detector_forward.23} parent=0 // pred_check_branch
    %161 = sbr.rel (0) target = $region21
  $region20: #{detector_forward.23} parent=0 // pred_region
    _
  $region21: #{detector_forward.23} parent=0 // pred_fallthru
    _
  // Predicated region
  $region22: #{detector_forward.23} parent=0 // pred_check
    _
  $region23: #{detector_forward.23} parent=0 // pred_check_branch
    %163 = sbr.rel (0) target = $region25
  $region24: #{detector_forward.23} parent=0 // pred_region
    _
  $region25: #{detector_forward.23} parent=0 // pred_fallthru
    _

// kernel: detector_forward.24
$region0: #{detector_forward.24}
  #allocation0 [shape = 'u32[]', space=smem, size = 0x4, offset = 0x4, fixed_abs, tag = 'smem constant byte address 0x4 - core index']
  #allocation1 [shape = 'u32[144,128]{1,0:T(1,128)}', space=vmem, size = 0x12000, scoped, tag = 'internal scratch']
  %s0 = inlined_call_operand.vmem [shape: bf16[8,16], index: 0, kind: input, shape index: {}]
  %s1 = inlined_call_operand.vmem [shape: bf16[16,32], index: 1, kind: input, shape index: {}]
  %s2 = inlined_call_operand.vmem [shape: f32[1,32], index: 2, kind: input, shape index: {}]
  %s3 = inlined_call_operand.vmem [shape: f32[1,32], index: 3, kind: input, shape index: {}]
  %s4 = inlined_call_operand.vmem [shape: f32[8,32], index: 4, kind: output, shape index: {}]
  %s5 = sld [smem:[#allocation0]]
  $region26: #{detector_forward.24} parent=0
    _
  %s7 = ssub.s32 1, %s5
  %s8 = scalar_select 0, %s7, %s5
  // Predicated region
  $region2: #{detector_forward.24} parent=0 // pred_check
    _
  $region3: #{detector_forward.24} parent=0 // pred_check_branch
    %10 = sbr.rel (0) target = $region5
  $region4: #{detector_forward.24} parent=0 // pred_region
    _
  $region5: #{detector_forward.24} parent=0 // pred_fallthru
    _
  // Predicated region
  $region6: #{detector_forward.24} parent=0 // pred_check
    _
  $region7: #{detector_forward.24} parent=0 // pred_check_branch
    %12 = sbr.rel (0) target = $region9
  $region8: #{detector_forward.24} parent=0 // pred_region
    _
  $region9: #{detector_forward.24} parent=0 // pred_fallthru
    _
  // Predicated region
  $region10: #{detector_forward.24} parent=0 // pred_check
    _
  $region11: #{detector_forward.24} parent=0 // pred_check_branch
    %14 = sbr.rel (0) target = $region13
  $region12: #{detector_forward.24} parent=0 // pred_region
    _
  $region13: #{detector_forward.24} parent=0 // pred_fallthru
    _
  // Predicated region
  $region14: #{detector_forward.24} parent=0 // pred_check
    _
  $region15: #{detector_forward.24} parent=0 // pred_check_branch
    %16 = sbr.rel (0) target = $region17
  $region16: #{detector_forward.24} parent=0 // pred_region
    _
  $region17: #{detector_forward.24} parent=0 // pred_fallthru
    _
  %v18 = vld [vmem:[%s0] sm:$0xf]
  %v19 = vld [vmem:[%s1] sm:$0xf]
  %v20 = vld [vmem:[%s1 + $0x4] sm:$0xf]
  %v23 = vunpack.c.l.b16 %v19
  %v24 = vunpack.c.l.b16 %v20
  %v25 = vpack.c.b16 %v24, %v23
  %vm27 = vcmask 130048
  %v29 = vsel %vm27, %v18, 0
  %31 = vmatprep.subr.bf16.mxu0 0
  %32 = vmatpush1.bf16.msra.mxu0 0
  %33 = vmatprep.subr.bf16.mxu0 0
  %34 = vmatpush1.bf16.msra.mxu0 0
  %35 = vmatprep.subr.bf16.mxu0 0
  %36 = vmatpush1.bf16.msra.mxu0 0
  %37 = vmatprep.subr.bf16.mxu0 0
  %38 = vmatpush1.bf16.msra.mxu0 0
  %39 = vmatprep.subr.bf16.mxu0 0
  %40 = vmatpush1.bf16.msra.mxu0 0
  %41 = vmatprep.subr.bf16.mxu0 0
  %42 = vmatpush1.bf16.msra.mxu0 0
  %43 = vmatprep.subr.bf16.mxu0 0
  %44 = vmatpush1.bf16.msra.mxu0 0
  %45 = vmatprep.subr.bf16.mxu0 0
  %46 = vmatpush1.bf16.msra.mxu0 %v25
  %47 = vmatprep.subr.bf16.mxu0 0
  %48 = vmatpush2.bf16.msra.mxu0 0
  %49 = vmatprep.subr.bf16.mxu0 0
  %50 = vmatpush2.bf16.msra.mxu0 0
  %51 = vmatprep.subr.bf16.mxu0 0
  %52 = vmatpush2.bf16.msra.mxu0 0
  %53 = vmatprep.subr.bf16.mxu0 0
  %54 = vmatpush2.bf16.msra.mxu0 0
  %55 = vmatprep.subr.bf16.mxu0 0
  %56 = vmatpush2.bf16.msra.mxu0 0
  %57 = vmatprep.subr.bf16.mxu0 0
  %58 = vmatpush2.bf16.msra.mxu0 0
  %59 = vmatprep.subr.bf16.mxu0 0
  %60 = vmatpush2.bf16.msra.mxu0 0
  %61 = vmatprep.subr.bf16.mxu0 0
  %62 = vmatpush2.bf16.msra.mxu0 0
  %63 = vmatprep.mubr.bf16.mxu0 0
  %64 = vmatmul.mubr.bf16.gmra.mxu0 %v29
  %v65 = vpop.f32.mrf.mxu0
  %v66 = vadd.f32 0.0, %v65
  %v67 = vpop.f32.mrf.mxu0
  %v68 = vpop.f32.mrf.mxu0
  %v69 = vpop.f32.mrf.mxu0
  %70 = vdwg.mxu0
  %v71 = vld [vmem:[%s2] sm:$0x1]
  %v73 = vlaneseq
  %v74 = vshrl.u32 %v73, 7
  %v75 = vsub.s32 0, %v74
  %v76 = vrot.slane %v71, %v75
  %v78 = vmul.f32 %v66, %v76
  %v79 = vld [vmem:[%s3] sm:$0x1]
  %v81 = vlaneseq
  %v82 = vshrl.u32 %v81, 7
  %v83 = vsub.s32 0, %v82
  %v84 = vrot.slane %v79, %v83
  %v86 = vadd.f32 %v78, %v84
  %vm87 = vcmask 261120
  %88 = vst.msk [vmem:[%s4] sm:$0xff] %vm87, %v86
  // Predicated region
  $region18: #{detector_forward.24} parent=0 // pred_check
    _
  $region19: #{detector_forward.24} parent=0 // pred_check_branch
    %90 = sbr.rel (0) target = $region21
  $region20: #{detector_forward.24} parent=0 // pred_region
    _
  $region21: #{detector_forward.24} parent=0 // pred_fallthru
    _
  // Predicated region
  $region22: #{detector_forward.24} parent=0 // pred_check
    _
  $region23: #{detector_forward.24} parent=0 // pred_check_branch
    %92 = sbr.rel (0) target = $region25
  $region24: #{detector_forward.24} parent=0 // pred_region
    _
  $region25: #{detector_forward.24} parent=0 // pred_fallthru
    _

// kernel: detector_forward.25
$region0: #{detector_forward.25}
  #allocation0 [shape = 'u32[]', space=smem, size = 0x4, offset = 0x4, fixed_abs, tag = 'smem constant byte address 0x4 - core index']
  #allocation1 [shape = 'u32[144,128]{1,0:T(1,128)}', space=vmem, size = 0x12000, scoped, tag = 'internal scratch']
  %s0 = inlined_call_operand.vmem [shape: bf16[8,288], index: 0, kind: input, shape index: {}]
  %s1 = inlined_call_operand.vmem [shape: bf16[288,32], index: 1, kind: input, shape index: {}]
  %s2 = inlined_call_operand.vmem [shape: f32[1,32], index: 2, kind: input, shape index: {}]
  %s3 = inlined_call_operand.vmem [shape: f32[1,32], index: 3, kind: input, shape index: {}]
  %s4 = inlined_call_operand.vmem [shape: f32[8,32], index: 4, kind: input, shape index: {}]
  %s5 = inlined_call_operand.vmem [shape: f32[8,32], index: 5, kind: output, shape index: {}]
  %s6 = sld [smem:[#allocation0]]
  $region30: #{detector_forward.25} parent=0
    _
  %s8 = ssub.s32 1, %s6
  %s9 = scalar_select 0, %s8, %s6
  // Predicated region
  $region2: #{detector_forward.25} parent=0 // pred_check
    _
  $region3: #{detector_forward.25} parent=0 // pred_check_branch
    %11 = sbr.rel (0) target = $region5
  $region4: #{detector_forward.25} parent=0 // pred_region
    _
  $region5: #{detector_forward.25} parent=0 // pred_fallthru
    _
  // Predicated region
  $region6: #{detector_forward.25} parent=0 // pred_check
    _
  $region7: #{detector_forward.25} parent=0 // pred_check_branch
    %13 = sbr.rel (0) target = $region9
  $region8: #{detector_forward.25} parent=0 // pred_region
    _
  $region9: #{detector_forward.25} parent=0 // pred_fallthru
    _
  // Predicated region
  $region10: #{detector_forward.25} parent=0 // pred_check
    _
  $region11: #{detector_forward.25} parent=0 // pred_check_branch
    %15 = sbr.rel (0) target = $region13
  $region12: #{detector_forward.25} parent=0 // pred_region
    _
  $region13: #{detector_forward.25} parent=0 // pred_fallthru
    _
  // Predicated region
  $region14: #{detector_forward.25} parent=0 // pred_check
    _
  $region15: #{detector_forward.25} parent=0 // pred_check_branch
    %17 = sbr.rel (0) target = $region17
  $region16: #{detector_forward.25} parent=0 // pred_region
    _
  $region17: #{detector_forward.25} parent=0 // pred_fallthru
    _
  // Predicated region
  $region18: #{detector_forward.25} parent=0 // pred_check
    _
  $region19: #{detector_forward.25} parent=0 // pred_check_branch
    %19 = sbr.rel (0) target = $region21
  $region20: #{detector_forward.25} parent=0 // pred_region
    _
  $region21: #{detector_forward.25} parent=0 // pred_fallthru
    _
  %v21 = vld [vmem:[%s0] sm:$0xff]
  %v22 = vld [vmem:[%s0 + $0x8] sm:$0xf]
  %v23 = vld [vmem:[%s1] sm:$0xf]
  %v24 = vld [vmem:[%s1 + $0x4] sm:$0xf]
  %v25 = vld [vmem:[%s1 + $0x8] sm:$0xf]
  %v26 = vld [vmem:[%s1 + $0xc] sm:$0xf]
  %v27 = vld [vmem:[%s1 + $0x10] sm:$0xf]
  %v28 = vld [vmem:[%s1 + $0x14] sm:$0xf]
  %v29 = vld [vmem:[%s1 + $0x18] sm:$0xf]
  %v30 = vld [vmem:[%s1 + $0x1c] sm:$0xf]
  %v31 = vld [vmem:[%s1 + $0x20] sm:$0xf]
  %v32 = vld [vmem:[%s1 + $0x24] sm:$0xf]
  %v33 = vld [vmem:[%s1 + $0x28] sm:$0xf]
  %v34 = vld [vmem:[%s1 + $0x2c] sm:$0xf]
  %v35 = vld [vmem:[%s1 + $0x30] sm:$0xf]
  %v36 = vld [vmem:[%s1 + $0x34] sm:$0xf]
  %v37 = vld [vmem:[%s1 + $0x38] sm:$0xf]
  %v38 = vld [vmem:[%s1 + $0x3c] sm:$0xf]
  %v39 = vld [vmem:[%s1 + $0x40] sm:$0xf]
  %v40 = vld [vmem:[%s1 + $0x44] sm:$0xf]
  %v41 = vld [vmem:[%s1 + $0x48] sm:$0xf]
  %v42 = vld [vmem:[%s1 + $0x4c] sm:$0xf]
  %v43 = vld [vmem:[%s1 + $0x50] sm:$0xf]
  %v44 = vld [vmem:[%s1 + $0x54] sm:$0xf]
  %v45 = vld [vmem:[%s1 + $0x58] sm:$0xf]
  %v46 = vld [vmem:[%s1 + $0x5c] sm:$0xf]
  %v47 = vld [vmem:[%s1 + $0x60] sm:$0xf]
  %v48 = vld [vmem:[%s1 + $0x64] sm:$0xf]
  %v49 = vld [vmem:[%s1 + $0x68] sm:$0xf]
  %v50 = vld [vmem:[%s1 + $0x6c] sm:$0xf]
  %v51 = vld [vmem:[%s1 + $0x70] sm:$0xf]
  %v52 = vld [vmem:[%s1 + $0x74] sm:$0xf]
  %v53 = vld [vmem:[%s1 + $0x78] sm:$0xf]
  %v54 = vld [vmem:[%s1 + $0x7c] sm:$0xf]
  %v55 = vld [vmem:[%s1 + $0x80] sm:$0xf]
  %v56 = vld [vmem:[%s1 + $0x84] sm:$0xf]
  %v57 = vld [vmem:[%s1 + $0x88] sm:$0xf]
  %v58 = vld [vmem:[%s1 + $0x8c] sm:$0xf]
  %v61 = vunpack.c.l.b16 %v21
  %v62 = vunpack.c.h.b16 %v21
  %v63 = vunpack.c.l.b16 %v22
  %v64 = vpack.c.b16 %v61, %v61
  %v65 = vpack.c.b16 %v62, %v62
  %v66 = vpack.c.b16 %v63, %v63
  %v105 = vunpack.c.l.b16 %v23
  %v106 = vunpack.c.l.b16 %v24
  %v107 = vunpack.c.l.b16 %v25
  %v108 = vunpack.c.l.b16 %v26
  %v109 = vunpack.c.l.b16 %v27
  %v110 = vunpack.c.l.b16 %v28
  %v111 = vunpack.c.l.b16 %v29
  %v112 = vunpack.c.l.b16 %v30
  %v113 = vunpack.c.l.b16 %v31
  %v114 = vunpack.c.l.b16 %v32
  %v115 = vunpack.c.l.b16 %v33
  %v116 = vunpack.c.l.b16 %v34
  %v117 = vunpack.c.l.b16 %v35
  %v118 = vunpack.c.l.b16 %v36
  %v119 = vunpack.c.l.b16 %v37
  %v120 = vunpack.c.l.b16 %v38
  %v121 = vunpack.c.l.b16 %v39
  %v122 = vunpack.c.l.b16 %v40
  %v123 = vunpack.c.l.b16 %v41
  %v124 = vunpack.c.l.b16 %v42
  %v125 = vunpack.c.l.b16 %v43
  %v126 = vunpack.c.l.b16 %v44
  %v127 = vunpack.c.l.b16 %v45
  %v128 = vunpack.c.l.b16 %v46
  %v129 = vunpack.c.l.b16 %v47
  %v130 = vunpack.c.l.b16 %v48
  %v131 = vunpack.c.l.b16 %v49
  %v132 = vunpack.c.l.b16 %v50
  %v133 = vunpack.c.l.b16 %v51
  %v134 = vunpack.c.l.b16 %v52
  %v135 = vunpack.c.l.b16 %v53
  %v136 = vunpack.c.l.b16 %v54
  %v137 = vunpack.c.l.b16 %v55
  %v138 = vunpack.c.l.b16 %v56
  %v139 = vunpack.c.l.b16 %v57
  %v140 = vunpack.c.l.b16 %v58
  %v141 = vpack.c.b16 %v106, %v105
  %v142 = vpack.c.b16 %v108, %v107
  %v143 = vpack.c.b16 %v110, %v109
  %v144 = vpack.c.b16 %v112, %v111
  %v145 = vpack.c.b16 %v114, %v113
  %v146 = vpack.c.b16 %v116, %v115
  %v147 = vpack.c.b16 %v118, %v117
  %v148 = vpack.c.b16 %v120, %v119
  %v149 = vpack.c.b16 %v122, %v121
  %v150 = vpack.c.b16 %v124, %v123
  %v151 = vpack.c.b16 %v126, %v125
  %v152 = vpack.c.b16 %v128, %v127
  %v153 = vpack.c.b16 %v130, %v129
  %v154 = vpack.c.b16 %v132, %v131
  %v155 = vpack.c.b16 %v134, %v133
  %v156 = vpack.c.b16 %v136, %v135
  %v157 = vpack.c.b16 %v138, %v137
  %v158 = vpack.c.b16 %v140, %v139
  %vm177 = vcmask 261120
  %v179 = vsel %vm177, %v66, 0
  %181 = vmatprep.subr.bf16.mxu0 0
  %182 = vmatpush1.bf16.msra.mxu0 %v148
  %183 = vmatprep.subr.bf16.mxu0 0
  %184 = vmatpush1.bf16.msra.mxu0 %v147
  %185 = vmatprep.subr.bf16.mxu0 0
  %186 = vmatpush1.bf16.msra.mxu0 %v146
  %187 = vmatprep.subr.bf16.mxu0 0
  %188 = vmatpush1.bf16.msra.mxu0 %v145
  %189 = vmatprep.subr.bf16.mxu0 0
  %190 = vmatpush1.bf16.msra.mxu0 %v144
  %191 = vmatprep.subr.bf16.mxu0 0
  %192 = vmatpush1.bf16.msra.mxu0 %v143
  %193 = vmatprep.subr.bf16.mxu0 0
  %194 = vmatpush1.bf16.msra.mxu0 %v142
  %195 = vmatprep.subr.bf16.mxu0 0
  %196 = vmatpush1.bf16.msra.mxu0 %v141
  %197 = vmatprep.subr.bf16.mxu0 0
  %198 = vmatpush2.bf16.msra.mxu0 %v156
  %199 = vmatprep.subr.bf16.mxu0 0
  %200 = vmatpush2.bf16.msra.mxu0 %v155
  %201 = vmatprep.subr.bf16.mxu0 0
  %202 = vmatpush2.bf16.msra.mxu0 %v154
  %203 = vmatprep.subr.bf16.mxu0 0
  %204 = vmatpush2.bf16.msra.mxu0 %v153
  %205 = vmatprep.subr.bf16.mxu0 0
  %206 = vmatpush2.bf16.msra.mxu0 %v152
  %207 = vmatprep.subr.bf16.mxu0 0
  %208 = vmatpush2.bf16.msra.mxu0 %v151
  %209 = vmatprep.subr.bf16.mxu0 0
  %210 = vmatpush2.bf16.msra.mxu0 %v150
  %211 = vmatprep.subr.bf16.mxu0 0
  %212 = vmatpush2.bf16.msra.mxu0 %v149
  %213 = vmatprep.mubr.bf16.mxu0 %v65
  %214 = vmatmul.mubr.bf16.gmra.mxu0 %v64
  %v215 = vpop.f32.mrf.mxu0
  %v216 = vadd.f32 0.0, %v215
  %v217 = vpop.f32.mrf.mxu0
  %v218 = vpop.f32.mrf.mxu0
  %v219 = vpop.f32.mrf.mxu0
  %220 = vdwg.mxu0
  %221 = vmatprep.subr.bf16.mxu0 0
  %222 = vmatpush1.bf16.msra.mxu0 0
  %223 = vmatprep.subr.bf16.mxu0 0
  %224 = vmatpush1.bf16.msra.mxu0 0
  %225 = vmatprep.subr.bf16.mxu0 0
  %226 = vmatpush1.bf16.msra.mxu0 0
  %227 = vmatprep.subr.bf16.mxu0 0
  %228 = vmatpush1.bf16.msra.mxu0 0
  %229 = vmatprep.subr.bf16.mxu0 0
  %230 = vmatpush1.bf16.msra.mxu0 0
  %231 = vmatprep.subr.bf16.mxu0 0
  %232 = vmatpush1.bf16.msra.mxu0 0
  %233 = vmatprep.subr.bf16.mxu0 0
  %234 = vmatpush1.bf16.msra.mxu0 %v158
  %235 = vmatprep.subr.bf16.mxu0 0
  %236 = vmatpush1.bf16.msra.mxu0 %v157
  %237 = vmatprep.subr.bf16.mxu0 0
  %238 = vmatpush2.bf16.msra.mxu0 0
  %239 = vmatprep.subr.bf16.mxu0 0
  %240 = vmatpush2.bf16.msra.mxu0 0
  %241 = vmatprep.subr.bf16.mxu0 0
  %242 = vmatpush2.bf16.msra.mxu0 0
  %243 = vmatprep.subr.bf16.mxu0 0
  %244 = vmatpush2.bf16.msra.mxu0 0
  %245 = vmatprep.subr.bf16.mxu0 0
  %246 = vmatpush2.bf16.msra.mxu0 0
  %247 = vmatprep.subr.bf16.mxu0 0
  %248 = vmatpush2.bf16.msra.mxu0 0
  %249 = vmatprep.subr.bf16.mxu0 0
  %250 = vmatpush2.bf16.msra.mxu0 0
  %251 = vmatprep.subr.bf16.mxu0 0
  %252 = vmatpush2.bf16.msra.mxu0 0
  %253 = vmatprep.mubr.bf16.mxu0 0
  %254 = vmatmul.mubr.bf16.gmra.mxu0 %v179
  %v255 = vpop.f32.mrf.mxu0
  %v256 = vadd.f32 %v216, %v255
  %v257 = vpop.f32.mrf.mxu0
  %v258 = vpop.f32.mrf.mxu0
  %v259 = vpop.f32.mrf.mxu0
  %260 = vdwg.mxu0
  %v261 = vld [vmem:[%s2] sm:$0x1]
  %v263 = vlaneseq
  %v264 = vshrl.u32 %v263, 7
  %v265 = vsub.s32 0, %v264
  %v266 = vrot.slane %v261, %v265
  %v268 = vmul.f32 %v256, %v266
  %v269 = vld [vmem:[%s3] sm:$0x1]
  %v271 = vlaneseq
  %v272 = vshrl.u32 %v271, 7
  %v273 = vsub.s32 0, %v272
  %v274 = vrot.slane %v269, %v273
  %v276 = vadd.f32 %v268, %v274
  %v277 = vld [vmem:[%s4] sm:$0xff]
  %v278 = vadd.f32 %v276, %v277
  %v279 = vmax.f32 %v278, 0.0
  %280 = vst.msk [vmem:[%s5] sm:$0xff] %vm177, %v279
  // Predicated region
  $region22: #{detector_forward.25} parent=0 // pred_check
    _
  $region23: #{detector_forward.25} parent=0 // pred_check_branch
    %282 = sbr.rel (0) target = $region25
  $region24: #{detector_forward.25} parent=0 // pred_region
    _
  $region25: #{detector_forward.25} parent=0 // pred_fallthru
    _
  // Predicated region
  $region26: #{detector_forward.25} parent=0 // pred_check
    _
  $region27: #{detector_forward.25} parent=0 // pred_check_branch
    %284 = sbr.rel (0) target = $region29
  $region28: #{detector_forward.25} parent=0 // pred_region
    _
  $region29: #{detector_forward.25} parent=0 // pred_fallthru
    _

// kernel: detector_forward.26
$region0: #{detector_forward.26}
  #allocation0 [shape = 'u32[]', space=smem, size = 0x4, offset = 0x4, fixed_abs, tag = 'smem constant byte address 0x4 - core index']
  #allocation1 [shape = 'u32[144,128]{1,0:T(1,128)}', space=vmem, size = 0x12000, scoped, tag = 'internal scratch']
  %s0 = inlined_call_operand.vmem [shape: bf16[8,288], index: 0, kind: input, shape index: {}]
  %s1 = inlined_call_operand.vmem [shape: bf16[288,32], index: 1, kind: input, shape index: {}]
  %s2 = inlined_call_operand.vmem [shape: f32[1,32], index: 2, kind: input, shape index: {}]
  %s3 = inlined_call_operand.vmem [shape: f32[1,32], index: 3, kind: input, shape index: {}]
  %s4 = inlined_call_operand.vmem [shape: f32[8,32], index: 4, kind: output, shape index: {}]
  %s5 = sld [smem:[#allocation0]]
  $region26: #{detector_forward.26} parent=0
    _
  %s7 = ssub.s32 1, %s5
  %s8 = scalar_select 0, %s7, %s5
  // Predicated region
  $region2: #{detector_forward.26} parent=0 // pred_check
    _
  $region3: #{detector_forward.26} parent=0 // pred_check_branch
    %10 = sbr.rel (0) target = $region5
  $region4: #{detector_forward.26} parent=0 // pred_region
    _
  $region5: #{detector_forward.26} parent=0 // pred_fallthru
    _
  // Predicated region
  $region6: #{detector_forward.26} parent=0 // pred_check
    _
  $region7: #{detector_forward.26} parent=0 // pred_check_branch
    %12 = sbr.rel (0) target = $region9
  $region8: #{detector_forward.26} parent=0 // pred_region
    _
  $region9: #{detector_forward.26} parent=0 // pred_fallthru
    _
  // Predicated region
  $region10: #{detector_forward.26} parent=0 // pred_check
    _
  $region11: #{detector_forward.26} parent=0 // pred_check_branch
    %14 = sbr.rel (0) target = $region13
  $region12: #{detector_forward.26} parent=0 // pred_region
    _
  $region13: #{detector_forward.26} parent=0 // pred_fallthru
    _
  // Predicated region
  $region14: #{detector_forward.26} parent=0 // pred_check
    _
  $region15: #{detector_forward.26} parent=0 // pred_check_branch
    %16 = sbr.rel (0) target = $region17
  $region16: #{detector_forward.26} parent=0 // pred_region
    _
  $region17: #{detector_forward.26} parent=0 // pred_fallthru
    _
  %v18 = vld [vmem:[%s0] sm:$0xff]
  %v19 = vld [vmem:[%s0 + $0x8] sm:$0xf]
  %v20 = vld [vmem:[%s1] sm:$0xf]
  %v21 = vld [vmem:[%s1 + $0x4] sm:$0xf]
  %v22 = vld [vmem:[%s1 + $0x8] sm:$0xf]
  %v23 = vld [vmem:[%s1 + $0xc] sm:$0xf]
  %v24 = vld [vmem:[%s1 + $0x10] sm:$0xf]
  %v25 = vld [vmem:[%s1 + $0x14] sm:$0xf]
  %v26 = vld [vmem:[%s1 + $0x18] sm:$0xf]
  %v27 = vld [vmem:[%s1 + $0x1c] sm:$0xf]
  %v28 = vld [vmem:[%s1 + $0x20] sm:$0xf]
  %v29 = vld [vmem:[%s1 + $0x24] sm:$0xf]
  %v30 = vld [vmem:[%s1 + $0x28] sm:$0xf]
  %v31 = vld [vmem:[%s1 + $0x2c] sm:$0xf]
  %v32 = vld [vmem:[%s1 + $0x30] sm:$0xf]
  %v33 = vld [vmem:[%s1 + $0x34] sm:$0xf]
  %v34 = vld [vmem:[%s1 + $0x38] sm:$0xf]
  %v35 = vld [vmem:[%s1 + $0x3c] sm:$0xf]
  %v36 = vld [vmem:[%s1 + $0x40] sm:$0xf]
  %v37 = vld [vmem:[%s1 + $0x44] sm:$0xf]
  %v38 = vld [vmem:[%s1 + $0x48] sm:$0xf]
  %v39 = vld [vmem:[%s1 + $0x4c] sm:$0xf]
  %v40 = vld [vmem:[%s1 + $0x50] sm:$0xf]
  %v41 = vld [vmem:[%s1 + $0x54] sm:$0xf]
  %v42 = vld [vmem:[%s1 + $0x58] sm:$0xf]
  %v43 = vld [vmem:[%s1 + $0x5c] sm:$0xf]
  %v44 = vld [vmem:[%s1 + $0x60] sm:$0xf]
  %v45 = vld [vmem:[%s1 + $0x64] sm:$0xf]
  %v46 = vld [vmem:[%s1 + $0x68] sm:$0xf]
  %v47 = vld [vmem:[%s1 + $0x6c] sm:$0xf]
  %v48 = vld [vmem:[%s1 + $0x70] sm:$0xf]
  %v49 = vld [vmem:[%s1 + $0x74] sm:$0xf]
  %v50 = vld [vmem:[%s1 + $0x78] sm:$0xf]
  %v51 = vld [vmem:[%s1 + $0x7c] sm:$0xf]
  %v52 = vld [vmem:[%s1 + $0x80] sm:$0xf]
  %v53 = vld [vmem:[%s1 + $0x84] sm:$0xf]
  %v54 = vld [vmem:[%s1 + $0x88] sm:$0xf]
  %v55 = vld [vmem:[%s1 + $0x8c] sm:$0xf]
  %v58 = vunpack.c.l.b16 %v18
  %v59 = vunpack.c.h.b16 %v18
  %v60 = vunpack.c.l.b16 %v19
  %v61 = vpack.c.b16 %v58, %v58
  %v62 = vpack.c.b16 %v59, %v59
  %v63 = vpack.c.b16 %v60, %v60
  %v102 = vunpack.c.l.b16 %v20
  %v103 = vunpack.c.l.b16 %v21
  %v104 = vunpack.c.l.b16 %v22
  %v105 = vunpack.c.l.b16 %v23
  %v106 = vunpack.c.l.b16 %v24
  %v107 = vunpack.c.l.b16 %v25
  %v108 = vunpack.c.l.b16 %v26
  %v109 = vunpack.c.l.b16 %v27
  %v110 = vunpack.c.l.b16 %v28
  %v111 = vunpack.c.l.b16 %v29
  %v112 = vunpack.c.l.b16 %v30
  %v113 = vunpack.c.l.b16 %v31
  %v114 = vunpack.c.l.b16 %v32
  %v115 = vunpack.c.l.b16 %v33
  %v116 = vunpack.c.l.b16 %v34
  %v117 = vunpack.c.l.b16 %v35
  %v118 = vunpack.c.l.b16 %v36
  %v119 = vunpack.c.l.b16 %v37
  %v120 = vunpack.c.l.b16 %v38
  %v121 = vunpack.c.l.b16 %v39
  %v122 = vunpack.c.l.b16 %v40
  %v123 = vunpack.c.l.b16 %v41
  %v124 = vunpack.c.l.b16 %v42
  %v125 = vunpack.c.l.b16 %v43
  %v126 = vunpack.c.l.b16 %v44
  %v127 = vunpack.c.l.b16 %v45
  %v128 = vunpack.c.l.b16 %v46
  %v129 = vunpack.c.l.b16 %v47
  %v130 = vunpack.c.l.b16 %v48
  %v131 = vunpack.c.l.b16 %v49
  %v132 = vunpack.c.l.b16 %v50
  %v133 = vunpack.c.l.b16 %v51
  %v134 = vunpack.c.l.b16 %v52
  %v135 = vunpack.c.l.b16 %v53
  %v136 = vunpack.c.l.b16 %v54
  %v137 = vunpack.c.l.b16 %v55
  %v138 = vpack.c.b16 %v103, %v102
  %v139 = vpack.c.b16 %v105, %v104
  %v140 = vpack.c.b16 %v107, %v106
  %v141 = vpack.c.b16 %v109, %v108
  %v142 = vpack.c.b16 %v111, %v110
  %v143 = vpack.c.b16 %v113, %v112
  %v144 = vpack.c.b16 %v115, %v114
  %v145 = vpack.c.b16 %v117, %v116
  %v146 = vpack.c.b16 %v119, %v118
  %v147 = vpack.c.b16 %v121, %v120
  %v148 = vpack.c.b16 %v123, %v122
  %v149 = vpack.c.b16 %v125, %v124
  %v150 = vpack.c.b16 %v127, %v126
  %v151 = vpack.c.b16 %v129, %v128
  %v152 = vpack.c.b16 %v131, %v130
  %v153 = vpack.c.b16 %v133, %v132
  %v154 = vpack.c.b16 %v135, %v134
  %v155 = vpack.c.b16 %v137, %v136
  %vm174 = vcmask 261120
  %v176 = vsel %vm174, %v63, 0
  %178 = vmatprep.subr.bf16.mxu0 0
  %179 = vmatpush1.bf16.msra.mxu0 %v145
  %180 = vmatprep.subr.bf16.mxu0 0
  %181 = vmatpush1.bf16.msra.mxu0 %v144
  %182 = vmatprep.subr.bf16.mxu0 0
  %183 = vmatpush1.bf16.msra.mxu0 %v143
  %184 = vmatprep.subr.bf16.mxu0 0
  %185 = vmatpush1.bf16.msra.mxu0 %v142
  %186 = vmatprep.subr.bf16.mxu0 0
  %187 = vmatpush1.bf16.msra.mxu0 %v141
  %188 = vmatprep.subr.bf16.mxu0 0
  %189 = vmatpush1.bf16.msra.mxu0 %v140
  %190 = vmatprep.subr.bf16.mxu0 0
  %191 = vmatpush1.bf16.msra.mxu0 %v139
  %192 = vmatprep.subr.bf16.mxu0 0
  %193 = vmatpush1.bf16.msra.mxu0 %v138
  %194 = vmatprep.subr.bf16.mxu0 0
  %195 = vmatpush2.bf16.msra.mxu0 %v153
  %196 = vmatprep.subr.bf16.mxu0 0
  %197 = vmatpush2.bf16.msra.mxu0 %v152
  %198 = vmatprep.subr.bf16.mxu0 0
  %199 = vmatpush2.bf16.msra.mxu0 %v151
  %200 = vmatprep.subr.bf16.mxu0 0
  %201 = vmatpush2.bf16.msra.mxu0 %v150
  %202 = vmatprep.subr.bf16.mxu0 0
  %203 = vmatpush2.bf16.msra.mxu0 %v149
  %204 = vmatprep.subr.bf16.mxu0 0
  %205 = vmatpush2.bf16.msra.mxu0 %v148
  %206 = vmatprep.subr.bf16.mxu0 0
  %207 = vmatpush2.bf16.msra.mxu0 %v147
  %208 = vmatprep.subr.bf16.mxu0 0
  %209 = vmatpush2.bf16.msra.mxu0 %v146
  %210 = vmatprep.mubr.bf16.mxu0 %v62
  %211 = vmatmul.mubr.bf16.gmra.mxu0 %v61
  %v212 = vpop.f32.mrf.mxu0
  %v213 = vadd.f32 0.0, %v212
  %v214 = vpop.f32.mrf.mxu0
  %v215 = vpop.f32.mrf.mxu0
  %v216 = vpop.f32.mrf.mxu0
  %217 = vdwg.mxu0
  %218 = vmatprep.subr.bf16.mxu0 0
  %219 = vmatpush1.bf16.msra.mxu0 0
  %220 = vmatprep.subr.bf16.mxu0 0
  %221 = vmatpush1.bf16.msra.mxu0 0
  %222 = vmatprep.subr.bf16.mxu0 0
  %223 = vmatpush1.bf16.msra.mxu0 0
  %224 = vmatprep.subr.bf16.mxu0 0
  %225 = vmatpush1.bf16.msra.mxu0 0
  %226 = vmatprep.subr.bf16.mxu0 0
  %227 = vmatpush1.bf16.msra.mxu0 0
  %228 = vmatprep.subr.bf16.mxu0 0
  %229 = vmatpush1.bf16.msra.mxu0 0
  %230 = vmatprep.subr.bf16.mxu0 0
  %231 = vmatpush1.bf16.msra.mxu0 %v155
  %232 = vmatprep.subr.bf16.mxu0 0
  %233 = vmatpush1.bf16.msra.mxu0 %v154
  %234 = vmatprep.subr.bf16.mxu0 0
  %235 = vmatpush2.bf16.msra.mxu0 0
  %236 = vmatprep.subr.bf16.mxu0 0
  %237 = vmatpush2.bf16.msra.mxu0 0
  %238 = vmatprep.subr.bf16.mxu0 0
  %239 = vmatpush2.bf16.msra.mxu0 0
  %240 = vmatprep.subr.bf16.mxu0 0
  %241 = vmatpush2.bf16.msra.mxu0 0
  %242 = vmatprep.subr.bf16.mxu0 0
  %243 = vmatpush2.bf16.msra.mxu0 0
  %244 = vmatprep.subr.bf16.mxu0 0
  %245 = vmatpush2.bf16.msra.mxu0 0
  %246 = vmatprep.subr.bf16.mxu0 0
  %247 = vmatpush2.bf16.msra.mxu0 0
  %248 = vmatprep.subr.bf16.mxu0 0
  %249 = vmatpush2.bf16.msra.mxu0 0
  %250 = vmatprep.mubr.bf16.mxu0 0
  %251 = vmatmul.mubr.bf16.gmra.mxu0 %v176
  %v252 = vpop.f32.mrf.mxu0
  %v253 = vadd.f32 %v213, %v252
  %v254 = vpop.f32.mrf.mxu0
  %v255 = vpop.f32.mrf.mxu0
  %v256 = vpop.f32.mrf.mxu0
  %257 = vdwg.mxu0
  %v258 = vld [vmem:[%s2] sm:$0x1]
  %v260 = vlaneseq
  %v261 = vshrl.u32 %v260, 7
  %v262 = vsub.s32 0, %v261
  %v263 = vrot.slane %v258, %v262
  %v265 = vmul.f32 %v253, %v263
  %v266 = vld [vmem:[%s3] sm:$0x1]
  %v268 = vlaneseq
  %v269 = vshrl.u32 %v268, 7
  %v270 = vsub.s32 0, %v269
  %v271 = vrot.slane %v266, %v270
  %v273 = vadd.f32 %v265, %v271
  %v274 = vmax.f32 %v273, 0.0
  %275 = vst.msk [vmem:[%s4] sm:$0xff] %vm174, %v274
  // Predicated region
  $region18: #{detector_forward.26} parent=0 // pred_check
    _
  $region19: #{detector_forward.26} parent=0 // pred_check_branch
    %277 = sbr.rel (0) target = $region21
  $region20: #{detector_forward.26} parent=0 // pred_region
    _
  $region21: #{detector_forward.26} parent=0 // pred_fallthru
    _
  // Predicated region
  $region22: #{detector_forward.26} parent=0 // pred_check
    _
  $region23: #{detector_forward.26} parent=0 // pred_check_branch
    %279 = sbr.rel (0) target = $region25
  $region24: #{detector_forward.26} parent=0 // pred_region
    _
  $region25: #{detector_forward.26} parent=0 // pred_fallthru
    _

// kernel: detector_forward.27
$region0: #{detector_forward.27}
  #allocation0 [shape = 'u32[]', space=smem, size = 0x4, offset = 0x4, fixed_abs, tag = 'smem constant byte address 0x4 - core index']
  #allocation1 [shape = 'u32[144,128]{1,0:T(1,128)}', space=vmem, size = 0x12000, scoped, tag = 'internal scratch']
  %s0 = inlined_call_operand.vmem [shape: bf16[8,32], index: 0, kind: input, shape index: {}]
  %s1 = inlined_call_operand.vmem [shape: bf16[32,32], index: 1, kind: input, shape index: {}]
  %s2 = inlined_call_operand.vmem [shape: f32[1,32], index: 2, kind: input, shape index: {}]
  %s3 = inlined_call_operand.vmem [shape: f32[1,32], index: 3, kind: input, shape index: {}]
  %s4 = inlined_call_operand.vmem [shape: f32[8,32], index: 4, kind: output, shape index: {}]
  %s5 = sld [smem:[#allocation0]]
  $region26: #{detector_forward.27} parent=0
    _
  %s7 = ssub.s32 1, %s5
  %s8 = scalar_select 0, %s7, %s5
  // Predicated region
  $region2: #{detector_forward.27} parent=0 // pred_check
    _
  $region3: #{detector_forward.27} parent=0 // pred_check_branch
    %10 = sbr.rel (0) target = $region5
  $region4: #{detector_forward.27} parent=0 // pred_region
    _
  $region5: #{detector_forward.27} parent=0 // pred_fallthru
    _
  // Predicated region
  $region6: #{detector_forward.27} parent=0 // pred_check
    _
  $region7: #{detector_forward.27} parent=0 // pred_check_branch
    %12 = sbr.rel (0) target = $region9
  $region8: #{detector_forward.27} parent=0 // pred_region
    _
  $region9: #{detector_forward.27} parent=0 // pred_fallthru
    _
  // Predicated region
  $region10: #{detector_forward.27} parent=0 // pred_check
    _
  $region11: #{detector_forward.27} parent=0 // pred_check_branch
    %14 = sbr.rel (0) target = $region13
  $region12: #{detector_forward.27} parent=0 // pred_region
    _
  $region13: #{detector_forward.27} parent=0 // pred_fallthru
    _
  // Predicated region
  $region14: #{detector_forward.27} parent=0 // pred_check
    _
  $region15: #{detector_forward.27} parent=0 // pred_check_branch
    %16 = sbr.rel (0) target = $region17
  $region16: #{detector_forward.27} parent=0 // pred_region
    _
  $region17: #{detector_forward.27} parent=0 // pred_fallthru
    _
  %v18 = vld [vmem:[%s0] sm:$0xf]
  %v19 = vld [vmem:[%s1] sm:$0xf]
  %v20 = vld [vmem:[%s1 + $0x4] sm:$0xf]
  %v21 = vld [vmem:[%s1 + $0x8] sm:$0xf]
  %v22 = vld [vmem:[%s1 + $0xc] sm:$0xf]
  %v27 = vunpack.c.l.b16 %v19
  %v28 = vunpack.c.l.b16 %v20
  %v29 = vunpack.c.l.b16 %v21
  %v30 = vunpack.c.l.b16 %v22
  %v31 = vpack.c.b16 %v28, %v27
  %v32 = vpack.c.b16 %v30, %v29
  %vm35 = vcmask 261120
  %v37 = vsel %vm35, %v18, 0
  %39 = vmatprep.subr.bf16.mxu0 0
  %40 = vmatpush1.bf16.msra.mxu0 0
  %41 = vmatprep.subr.bf16.mxu0 0
  %42 = vmatpush1.bf16.msra.mxu0 0
  %43 = vmatprep.subr.bf16.mxu0 0
  %44 = vmatpush1.bf16.msra.mxu0 0
  %45 = vmatprep.subr.bf16.mxu0 0
  %46 = vmatpush1.bf16.msra.mxu0 0
  %47 = vmatprep.subr.bf16.mxu0 0
  %48 = vmatpush1.bf16.msra.mxu0 0
  %49 = vmatprep.subr.bf16.mxu0 0
  %50 = vmatpush1.bf16.msra.mxu0 0
  %51 = vmatprep.subr.bf16.mxu0 0
  %52 = vmatpush1.bf16.msra.mxu0 %v32
  %53 = vmatprep.subr.bf16.mxu0 0
  %54 = vmatpush1.bf16.msra.mxu0 %v31
  %55 = vmatprep.subr.bf16.mxu0 0
  %56 = vmatpush2.bf16.msra.mxu0 0
  %57 = vmatprep.subr.bf16.mxu0 0
  %58 = vmatpush2.bf16.msra.mxu0 0
  %59 = vmatprep.subr.bf16.mxu0 0
  %60 = vmatpush2.bf16.msra.mxu0 0
  %61 = vmatprep.subr.bf16.mxu0 0
  %62 = vmatpush2.bf16.msra.mxu0 0
  %63 = vmatprep.subr.bf16.mxu0 0
  %64 = vmatpush2.bf16.msra.mxu0 0
  %65 = vmatprep.subr.bf16.mxu0 0
  %66 = vmatpush2.bf16.msra.mxu0 0
  %67 = vmatprep.subr.bf16.mxu0 0
  %68 = vmatpush2.bf16.msra.mxu0 0
  %69 = vmatprep.subr.bf16.mxu0 0
  %70 = vmatpush2.bf16.msra.mxu0 0
  %71 = vmatprep.mubr.bf16.mxu0 0
  %72 = vmatmul.mubr.bf16.gmra.mxu0 %v37
  %v73 = vpop.f32.mrf.mxu0
  %v74 = vadd.f32 0.0, %v73
  %v75 = vpop.f32.mrf.mxu0
  %v76 = vpop.f32.mrf.mxu0
  %v77 = vpop.f32.mrf.mxu0
  %78 = vdwg.mxu0
  %v79 = vld [vmem:[%s2] sm:$0x1]
  %v81 = vlaneseq
  %v82 = vshrl.u32 %v81, 7
  %v83 = vsub.s32 0, %v82
  %v84 = vrot.slane %v79, %v83
  %v86 = vmul.f32 %v74, %v84
  %v87 = vld [vmem:[%s3] sm:$0x1]
  %v89 = vlaneseq
  %v90 = vshrl.u32 %v89, 7
  %v91 = vsub.s32 0, %v90
  %v92 = vrot.slane %v87, %v91
  %v94 = vadd.f32 %v86, %v92
  %95 = vst.msk [vmem:[%s4] sm:$0xff] %vm35, %v94
  // Predicated region
  $region18: #{detector_forward.27} parent=0 // pred_check
    _
  $region19: #{detector_forward.27} parent=0 // pred_check_branch
    %97 = sbr.rel (0) target = $region21
  $region20: #{detector_forward.27} parent=0 // pred_region
    _
  $region21: #{detector_forward.27} parent=0 // pred_fallthru
    _
  // Predicated region
  $region22: #{detector_forward.27} parent=0 // pred_check
    _
  $region23: #{detector_forward.27} parent=0 // pred_check_branch
    %99 = sbr.rel (0) target = $region25
  $region24: #{detector_forward.27} parent=0 // pred_region
    _
  $region25: #{detector_forward.27} parent=0 // pred_fallthru
    _

// kernel: detector_forward.29
$region0: #{detector_forward.29}
  #allocation0 [shape = 'u32[]', space=smem, size = 0x4, offset = 0x4, fixed_abs, tag = 'smem constant byte address 0x4 - core index']
  #allocation1 [shape = 'u32[144,128]{1,0:T(1,128)}', space=vmem, size = 0x12000, scoped, tag = 'internal scratch']
  %s0 = inlined_call_operand.vmem [shape: bf16[8,128], index: 0, kind: input, shape index: {}]
  %s1 = inlined_call_operand.vmem [shape: bf16[128,128], index: 1, kind: input, shape index: {}]
  %s2 = inlined_call_operand.vmem [shape: f32[1,128], index: 2, kind: input, shape index: {}]
  %s3 = inlined_call_operand.vmem [shape: f32[1,128], index: 3, kind: input, shape index: {}]
  %s4 = inlined_call_operand.vmem [shape: f32[8,128], index: 4, kind: output, shape index: {}]
  %s5 = sld [smem:[#allocation0]]
  $region26: #{detector_forward.29} parent=0
    _
  %s7 = ssub.s32 1, %s5
  %s8 = scalar_select 0, %s7, %s5
  // Predicated region
  $region2: #{detector_forward.29} parent=0 // pred_check
    _
  $region3: #{detector_forward.29} parent=0 // pred_check_branch
    %10 = sbr.rel (0) target = $region5
  $region4: #{detector_forward.29} parent=0 // pred_region
    _
  $region5: #{detector_forward.29} parent=0 // pred_fallthru
    _
  // Predicated region
  $region6: #{detector_forward.29} parent=0 // pred_check
    _
  $region7: #{detector_forward.29} parent=0 // pred_check_branch
    %12 = sbr.rel (0) target = $region9
  $region8: #{detector_forward.29} parent=0 // pred_region
    _
  $region9: #{detector_forward.29} parent=0 // pred_fallthru
    _
  // Predicated region
  $region10: #{detector_forward.29} parent=0 // pred_check
    _
  $region11: #{detector_forward.29} parent=0 // pred_check_branch
    %14 = sbr.rel (0) target = $region13
  $region12: #{detector_forward.29} parent=0 // pred_region
    _
  $region13: #{detector_forward.29} parent=0 // pred_fallthru
    _
  // Predicated region
  $region14: #{detector_forward.29} parent=0 // pred_check
    _
  $region15: #{detector_forward.29} parent=0 // pred_check_branch
    %16 = sbr.rel (0) target = $region17
  $region16: #{detector_forward.29} parent=0 // pred_region
    _
  $region17: #{detector_forward.29} parent=0 // pred_fallthru
    _
  %v18 = vld [vmem:[%s0] sm:$0xf]
  %v19 = vld [vmem:[%s1] sm:$0xf]
  %v20 = vld [vmem:[%s1 + $0x4] sm:$0xf]
  %v21 = vld [vmem:[%s1 + $0x8] sm:$0xf]
  %v22 = vld [vmem:[%s1 + $0xc] sm:$0xf]
  %v23 = vld [vmem:[%s1 + $0x10] sm:$0xf]
  %v24 = vld [vmem:[%s1 + $0x14] sm:$0xf]
  %v25 = vld [vmem:[%s1 + $0x18] sm:$0xf]
  %v26 = vld [vmem:[%s1 + $0x1c] sm:$0xf]
  %v27 = vld [vmem:[%s1 + $0x20] sm:$0xf]
  %v28 = vld [vmem:[%s1 + $0x24] sm:$0xf]
  %v29 = vld [vmem:[%s1 + $0x28] sm:$0xf]
  %v30 = vld [vmem:[%s1 + $0x2c] sm:$0xf]
  %v31 = vld [vmem:[%s1 + $0x30] sm:$0xf]
  %v32 = vld [vmem:[%s1 + $0x34] sm:$0xf]
  %v33 = vld [vmem:[%s1 + $0x38] sm:$0xf]
  %v34 = vld [vmem:[%s1 + $0x3c] sm:$0xf]
  %v51 = vunpack.c.l.b16 %v19
  %v52 = vunpack.c.l.b16 %v20
  %v53 = vunpack.c.l.b16 %v21
  %v54 = vunpack.c.l.b16 %v22
  %v55 = vunpack.c.l.b16 %v23
  %v56 = vunpack.c.l.b16 %v24
  %v57 = vunpack.c.l.b16 %v25
  %v58 = vunpack.c.l.b16 %v26
  %v59 = vunpack.c.l.b16 %v27
  %v60 = vunpack.c.l.b16 %v28
  %v61 = vunpack.c.l.b16 %v29
  %v62 = vunpack.c.l.b16 %v30
  %v63 = vunpack.c.l.b16 %v31
  %v64 = vunpack.c.l.b16 %v32
  %v65 = vunpack.c.l.b16 %v33
  %v66 = vunpack.c.l.b16 %v34
  %v67 = vpack.c.b16 %v52, %v51
  %v68 = vpack.c.b16 %v54, %v53
  %v69 = vpack.c.b16 %v56, %v55
  %v70 = vpack.c.b16 %v58, %v57
  %v71 = vpack.c.b16 %v60, %v59
  %v72 = vpack.c.b16 %v62, %v61
  %v73 = vpack.c.b16 %v64, %v63
  %v74 = vpack.c.b16 %v66, %v65
  %83 = vmatprep.subr.bf16.mxu0 0
  %84 = vmatpush1.bf16.msra.mxu0 %v74
  %85 = vmatprep.subr.bf16.mxu0 0
  %86 = vmatpush1.bf16.msra.mxu0 %v73
  %87 = vmatprep.subr.bf16.mxu0 0
  %88 = vmatpush1.bf16.msra.mxu0 %v72
  %89 = vmatprep.subr.bf16.mxu0 0
  %90 = vmatpush1.bf16.msra.mxu0 %v71
  %91 = vmatprep.subr.bf16.mxu0 0
  %92 = vmatpush1.bf16.msra.mxu0 %v70
  %93 = vmatprep.subr.bf16.mxu0 0
  %94 = vmatpush1.bf16.msra.mxu0 %v69
  %95 = vmatprep.subr.bf16.mxu0 0
  %96 = vmatpush1.bf16.msra.mxu0 %v68
  %97 = vmatprep.subr.bf16.mxu0 0
  %98 = vmatpush1.bf16.msra.mxu0 %v67
  %99 = vmatprep.subr.bf16.mxu0 0
  %100 = vmatpush2.bf16.msra.mxu0 0
  %101 = vmatprep.subr.bf16.mxu0 0
  %102 = vmatpush2.bf16.msra.mxu0 0
  %103 = vmatprep.subr.bf16.mxu0 0
  %104 = vmatpush2.bf16.msra.mxu0 0
  %105 = vmatprep.subr.bf16.mxu0 0
  %106 = vmatpush2.bf16.msra.mxu0 0
  %107 = vmatprep.subr.bf16.mxu0 0
  %108 = vmatpush2.bf16.msra.mxu0 0
  %109 = vmatprep.subr.bf16.mxu0 0
  %110 = vmatpush2.bf16.msra.mxu0 0
  %111 = vmatprep.subr.bf16.mxu0 0
  %112 = vmatpush2.bf16.msra.mxu0 0
  %113 = vmatprep.subr.bf16.mxu0 0
  %114 = vmatpush2.bf16.msra.mxu0 0
  %115 = vmatprep.mubr.bf16.mxu0 0
  %116 = vmatmul.mubr.bf16.gmra.mxu0 %v18
  %v117 = vpop.f32.mrf.mxu0
  %v118 = vadd.f32 0.0, %v117
  %v119 = vpop.f32.mrf.mxu0
  %v120 = vpop.f32.mrf.mxu0
  %v121 = vpop.f32.mrf.mxu0
  %122 = vdwg.mxu0
  %v123 = vld [vmem:[%s2] sm:$0x1]
  %v125 = vlaneseq
  %v126 = vshrl.u32 %v125, 7
  %v127 = vsub.s32 0, %v126
  %v128 = vrot.slane %v123, %v127
  %v130 = vmul.f32 %v118, %v128
  %v131 = vld [vmem:[%s3] sm:$0x1]
  %v133 = vlaneseq
  %v134 = vshrl.u32 %v133, 7
  %v135 = vsub.s32 0, %v134
  %v136 = vrot.slane %v131, %v135
  %v138 = vadd.f32 %v130, %v136
  %v139 = vmax.f32 %v138, 0.0
  %140 = vst [vmem:[%s4] sm:$0xff] %v139
  // Predicated region
  $region18: #{detector_forward.29} parent=0 // pred_check
    _
  $region19: #{detector_forward.29} parent=0 // pred_check_branch
    %142 = sbr.rel (0) target = $region21
  $region20: #{detector_forward.29} parent=0 // pred_region
    _
  $region21: #{detector_forward.29} parent=0 // pred_fallthru
    _
  // Predicated region
  $region22: #{detector_forward.29} parent=0 // pred_check
    _
  $region23: #{detector_forward.29} parent=0 // pred_check_branch
    %144 = sbr.rel (0) target = $region25
  $region24: #{detector_forward.29} parent=0 // pred_region
    _
  $region25: #{detector_forward.29} parent=0 // pred_fallthru
    _

// kernel: detector_forward.30
$region0: #{detector_forward.30}
  #allocation0 [shape = 'u32[]', space=smem, size = 0x4, offset = 0x4, fixed_abs, tag = 'smem constant byte address 0x4 - core index']
  #allocation1 [shape = 'u32[144,128]{1,0:T(1,128)}', space=vmem, size = 0x12000, scoped, tag = 'internal scratch']
  %s0 = inlined_call_operand.vmem [shape: bf16[8,256], index: 0, kind: input, shape index: {}]
  %s1 = inlined_call_operand.vmem [shape: bf16[256,128], index: 1, kind: input, shape index: {}]
  %s2 = inlined_call_operand.vmem [shape: f32[1,128], index: 2, kind: input, shape index: {}]
  %s3 = inlined_call_operand.vmem [shape: f32[1,128], index: 3, kind: input, shape index: {}]
  %s4 = inlined_call_operand.vmem [shape: f32[8,128], index: 4, kind: output, shape index: {}]
  %s5 = sld [smem:[#allocation0]]
  $region26: #{detector_forward.30} parent=0
    _
  %s7 = ssub.s32 1, %s5
  %s8 = scalar_select 0, %s7, %s5
  // Predicated region
  $region2: #{detector_forward.30} parent=0 // pred_check
    _
  $region3: #{detector_forward.30} parent=0 // pred_check_branch
    %10 = sbr.rel (0) target = $region5
  $region4: #{detector_forward.30} parent=0 // pred_region
    _
  $region5: #{detector_forward.30} parent=0 // pred_fallthru
    _
  // Predicated region
  $region6: #{detector_forward.30} parent=0 // pred_check
    _
  $region7: #{detector_forward.30} parent=0 // pred_check_branch
    %12 = sbr.rel (0) target = $region9
  $region8: #{detector_forward.30} parent=0 // pred_region
    _
  $region9: #{detector_forward.30} parent=0 // pred_fallthru
    _
  // Predicated region
  $region10: #{detector_forward.30} parent=0 // pred_check
    _
  $region11: #{detector_forward.30} parent=0 // pred_check_branch
    %14 = sbr.rel (0) target = $region13
  $region12: #{detector_forward.30} parent=0 // pred_region
    _
  $region13: #{detector_forward.30} parent=0 // pred_fallthru
    _
  // Predicated region
  $region14: #{detector_forward.30} parent=0 // pred_check
    _
  $region15: #{detector_forward.30} parent=0 // pred_check_branch
    %16 = sbr.rel (0) target = $region17
  $region16: #{detector_forward.30} parent=0 // pred_region
    _
  $region17: #{detector_forward.30} parent=0 // pred_fallthru
    _
  %v18 = vld [vmem:[%s0] sm:$0xff]
  %v19 = vld [vmem:[%s1] sm:$0xf]
  %v20 = vld [vmem:[%s1 + $0x4] sm:$0xf]
  %v21 = vld [vmem:[%s1 + $0x8] sm:$0xf]
  %v22 = vld [vmem:[%s1 + $0xc] sm:$0xf]
  %v23 = vld [vmem:[%s1 + $0x10] sm:$0xf]
  %v24 = vld [vmem:[%s1 + $0x14] sm:$0xf]
  %v25 = vld [vmem:[%s1 + $0x18] sm:$0xf]
  %v26 = vld [vmem:[%s1 + $0x1c] sm:$0xf]
  %v27 = vld [vmem:[%s1 + $0x20] sm:$0xf]
  %v28 = vld [vmem:[%s1 + $0x24] sm:$0xf]
  %v29 = vld [vmem:[%s1 + $0x28] sm:$0xf]
  %v30 = vld [vmem:[%s1 + $0x2c] sm:$0xf]
  %v31 = vld [vmem:[%s1 + $0x30] sm:$0xf]
  %v32 = vld [vmem:[%s1 + $0x34] sm:$0xf]
  %v33 = vld [vmem:[%s1 + $0x38] sm:$0xf]
  %v34 = vld [vmem:[%s1 + $0x3c] sm:$0xf]
  %v35 = vld [vmem:[%s1 + $0x40] sm:$0xf]
  %v36 = vld [vmem:[%s1 + $0x44] sm:$0xf]
  %v37 = vld [vmem:[%s1 + $0x48] sm:$0xf]
  %v38 = vld [vmem:[%s1 + $0x4c] sm:$0xf]
  %v39 = vld [vmem:[%s1 + $0x50] sm:$0xf]
  %v40 = vld [vmem:[%s1 + $0x54] sm:$0xf]
  %v41 = vld [vmem:[%s1 + $0x58] sm:$0xf]
  %v42 = vld [vmem:[%s1 + $0x5c] sm:$0xf]
  %v43 = vld [vmem:[%s1 + $0x60] sm:$0xf]
  %v44 = vld [vmem:[%s1 + $0x64] sm:$0xf]
  %v45 = vld [vmem:[%s1 + $0x68] sm:$0xf]
  %v46 = vld [vmem:[%s1 + $0x6c] sm:$0xf]
  %v47 = vld [vmem:[%s1 + $0x70] sm:$0xf]
  %v48 = vld [vmem:[%s1 + $0x74] sm:$0xf]
  %v49 = vld [vmem:[%s1 + $0x78] sm:$0xf]
  %v50 = vld [vmem:[%s1 + $0x7c] sm:$0xf]
  %v52 = vunpack.c.l.b16 %v18
  %v53 = vunpack.c.h.b16 %v18
  %v54 = vpack.c.b16 %v52, %v52
  %v55 = vpack.c.b16 %v53, %v53
  %v90 = vunpack.c.l.b16 %v19
  %v91 = vunpack.c.l.b16 %v20
  %v92 = vunpack.c.l.b16 %v21
  %v93 = vunpack.c.l.b16 %v22
  %v94 = vunpack.c.l.b16 %v23
  %v95 = vunpack.c.l.b16 %v24
  %v96 = vunpack.c.l.b16 %v25
  %v97 = vunpack.c.l.b16 %v26
  %v98 = vunpack.c.l.b16 %v27
  %v99 = vunpack.c.l.b16 %v28
  %v100 = vunpack.c.l.b16 %v29
  %v101 = vunpack.c.l.b16 %v30
  %v102 = vunpack.c.l.b16 %v31
  %v103 = vunpack.c.l.b16 %v32
  %v104 = vunpack.c.l.b16 %v33
  %v105 = vunpack.c.l.b16 %v34
  %v106 = vunpack.c.l.b16 %v35
  %v107 = vunpack.c.l.b16 %v36
  %v108 = vunpack.c.l.b16 %v37
  %v109 = vunpack.c.l.b16 %v38
  %v110 = vunpack.c.l.b16 %v39
  %v111 = vunpack.c.l.b16 %v40
  %v112 = vunpack.c.l.b16 %v41
  %v113 = vunpack.c.l.b16 %v42
  %v114 = vunpack.c.l.b16 %v43
  %v115 = vunpack.c.l.b16 %v44
  %v116 = vunpack.c.l.b16 %v45
  %v117 = vunpack.c.l.b16 %v46
  %v118 = vunpack.c.l.b16 %v47
  %v119 = vunpack.c.l.b16 %v48
  %v120 = vunpack.c.l.b16 %v49
  %v121 = vunpack.c.l.b16 %v50
  %v122 = vpack.c.b16 %v91, %v90
  %v123 = vpack.c.b16 %v93, %v92
  %v124 = vpack.c.b16 %v95, %v94
  %v125 = vpack.c.b16 %v97, %v96
  %v126 = vpack.c.b16 %v99, %v98
  %v127 = vpack.c.b16 %v101, %v100
  %v128 = vpack.c.b16 %v103, %v102
  %v129 = vpack.c.b16 %v105, %v104
  %v130 = vpack.c.b16 %v107, %v106
  %v131 = vpack.c.b16 %v109, %v108
  %v132 = vpack.c.b16 %v111, %v110
  %v133 = vpack.c.b16 %v113, %v112
  %v134 = vpack.c.b16 %v115, %v114
  %v135 = vpack.c.b16 %v117, %v116
  %v136 = vpack.c.b16 %v119, %v118
  %v137 = vpack.c.b16 %v121, %v120
  %154 = vmatprep.subr.bf16.mxu0 0
  %155 = vmatpush1.bf16.msra.mxu0 %v129
  %156 = vmatprep.subr.bf16.mxu0 0
  %157 = vmatpush1.bf16.msra.mxu0 %v128
  %158 = vmatprep.subr.bf16.mxu0 0
  %159 = vmatpush1.bf16.msra.mxu0 %v127
  %160 = vmatprep.subr.bf16.mxu0 0
  %161 = vmatpush1.bf16.msra.mxu0 %v126
  %162 = vmatprep.subr.bf16.mxu0 0
  %163 = vmatpush1.bf16.msra.mxu0 %v125
  %164 = vmatprep.subr.bf16.mxu0 0
  %165 = vmatpush1.bf16.msra.mxu0 %v124
  %166 = vmatprep.subr.bf16.mxu0 0
  %167 = vmatpush1.bf16.msra.mxu0 %v123
  %168 = vmatprep.subr.bf16.mxu0 0
  %169 = vmatpush1.bf16.msra.mxu0 %v122
  %170 = vmatprep.subr.bf16.mxu0 0
  %171 = vmatpush2.bf16.msra.mxu0 %v137
  %172 = vmatprep.subr.bf16.mxu0 0
  %173 = vmatpush2.bf16.msra.mxu0 %v136
  %174 = vmatprep.subr.bf16.mxu0 0
  %175 = vmatpush2.bf16.msra.mxu0 %v135
  %176 = vmatprep.subr.bf16.mxu0 0
  %177 = vmatpush2.bf16.msra.mxu0 %v134
  %178 = vmatprep.subr.bf16.mxu0 0
  %179 = vmatpush2.bf16.msra.mxu0 %v133
  %180 = vmatprep.subr.bf16.mxu0 0
  %181 = vmatpush2.bf16.msra.mxu0 %v132
  %182 = vmatprep.subr.bf16.mxu0 0
  %183 = vmatpush2.bf16.msra.mxu0 %v131
  %184 = vmatprep.subr.bf16.mxu0 0
  %185 = vmatpush2.bf16.msra.mxu0 %v130
  %186 = vmatprep.mubr.bf16.mxu0 %v55
  %187 = vmatmul.mubr.bf16.gmra.mxu0 %v54
  %v188 = vpop.f32.mrf.mxu0
  %v189 = vadd.f32 0.0, %v188
  %v190 = vpop.f32.mrf.mxu0
  %v191 = vpop.f32.mrf.mxu0
  %v192 = vpop.f32.mrf.mxu0
  %193 = vdwg.mxu0
  %v194 = vld [vmem:[%s2] sm:$0x1]
  %v196 = vlaneseq
  %v197 = vshrl.u32 %v196, 7
  %v198 = vsub.s32 0, %v197
  %v199 = vrot.slane %v194, %v198
  %v201 = vmul.f32 %v189, %v199
  %v202 = vld [vmem:[%s3] sm:$0x1]
  %v204 = vlaneseq
  %v205 = vshrl.u32 %v204, 7
  %v206 = vsub.s32 0, %v205
  %v207 = vrot.slane %v202, %v206
  %v209 = vadd.f32 %v201, %v207
  %v210 = vmax.f32 %v209, 0.0
  %211 = vst [vmem:[%s4] sm:$0xff] %v210
  // Predicated region
  $region18: #{detector_forward.30} parent=0 // pred_check
    _
  $region19: #{detector_forward.30} parent=0 // pred_check_branch
    %213 = sbr.rel (0) target = $region21
  $region20: #{detector_forward.30} parent=0 // pred_region
    _
  $region21: #{detector_forward.30} parent=0 // pred_fallthru
    _
  // Predicated region
  $region22: #{detector_forward.30} parent=0 // pred_check
    _
  $region23: #{detector_forward.30} parent=0 // pred_check_branch
    %215 = sbr.rel (0) target = $region25
  $region24: #{detector_forward.30} parent=0 // pred_region
    _
  $region25: #{detector_forward.30} parent=0 // pred_fallthru
    _

// kernel: detector_forward.31
$region0: #{detector_forward.31}
  #allocation0 [shape = 'u32[]', space=smem, size = 0x4, offset = 0x4, fixed_abs, tag = 'smem constant byte address 0x4 - core index']
  #allocation1 [shape = 'u32[144,128]{1,0:T(1,128)}', space=vmem, size = 0x12000, scoped, tag = 'internal scratch']
  %s0 = inlined_call_operand.vmem [shape: bf16[32,192], index: 0, kind: input, shape index: {}]
  %s1 = inlined_call_operand.vmem [shape: bf16[192,64], index: 1, kind: input, shape index: {}]
  %s2 = inlined_call_operand.vmem [shape: f32[1,64], index: 2, kind: input, shape index: {}]
  %s3 = inlined_call_operand.vmem [shape: f32[1,64], index: 3, kind: input, shape index: {}]
  %s4 = inlined_call_operand.vmem [shape: f32[32,64], index: 4, kind: output, shape index: {}]
  %s5 = sld [smem:[#allocation0]]
  $region26: #{detector_forward.31} parent=0
    _
  %s7 = ssub.s32 1, %s5
  %s8 = scalar_select 0, %s7, %s5
  // Predicated region
  $region2: #{detector_forward.31} parent=0 // pred_check
    _
  $region3: #{detector_forward.31} parent=0 // pred_check_branch
    %10 = sbr.rel (0) target = $region5
  $region4: #{detector_forward.31} parent=0 // pred_region
    _
  $region5: #{detector_forward.31} parent=0 // pred_fallthru
    _
  // Predicated region
  $region6: #{detector_forward.31} parent=0 // pred_check
    _
  $region7: #{detector_forward.31} parent=0 // pred_check_branch
    %12 = sbr.rel (0) target = $region9
  $region8: #{detector_forward.31} parent=0 // pred_region
    _
  $region9: #{detector_forward.31} parent=0 // pred_fallthru
    _
  // Predicated region
  $region10: #{detector_forward.31} parent=0 // pred_check
    _
  $region11: #{detector_forward.31} parent=0 // pred_check_branch
    %14 = sbr.rel (0) target = $region13
  $region12: #{detector_forward.31} parent=0 // pred_region
    _
  $region13: #{detector_forward.31} parent=0 // pred_fallthru
    _
  // Predicated region
  $region14: #{detector_forward.31} parent=0 // pred_check
    _
  $region15: #{detector_forward.31} parent=0 // pred_check_branch
    %16 = sbr.rel (0) target = $region17
  $region16: #{detector_forward.31} parent=0 // pred_region
    _
  $region17: #{detector_forward.31} parent=0 // pred_fallthru
    _
  %v18 = vld [vmem:[%s0] sm:$0xff]
  %v19 = vld [vmem:[%s0 + $0x8] sm:$0xff]
  %v20 = vld [vmem:[%s0 + $0x10] sm:$0xff]
  %v21 = vld [vmem:[%s0 + $0x18] sm:$0xff]
  %v22 = vld [vmem:[%s1] sm:$0xf]
  %v23 = vld [vmem:[%s1 + $0x4] sm:$0xf]
  %v24 = vld [vmem:[%s1 + $0x8] sm:$0xf]
  %v25 = vld [vmem:[%s1 + $0xc] sm:$0xf]
  %v26 = vld [vmem:[%s1 + $0x10] sm:$0xf]
  %v27 = vld [vmem:[%s1 + $0x14] sm:$0xf]
  %v28 = vld [vmem:[%s1 + $0x18] sm:$0xf]
  %v29 = vld [vmem:[%s1 + $0x1c] sm:$0xf]
  %v30 = vld [vmem:[%s1 + $0x20] sm:$0xf]
  %v31 = vld [vmem:[%s1 + $0x24] sm:$0xf]
  %v32 = vld [vmem:[%s1 + $0x28] sm:$0xf]
  %v33 = vld [vmem:[%s1 + $0x2c] sm:$0xf]
  %v34 = vld [vmem:[%s1 + $0x30] sm:$0xf]
  %v35 = vld [vmem:[%s1 + $0x34] sm:$0xf]
  %v36 = vld [vmem:[%s1 + $0x38] sm:$0xf]
  %v37 = vld [vmem:[%s1 + $0x3c] sm:$0xf]
  %v38 = vld [vmem:[%s1 + $0x40] sm:$0xf]
  %v39 = vld [vmem:[%s1 + $0x44] sm:$0xf]
  %v40 = vld [vmem:[%s1 + $0x48] sm:$0xf]
  %v41 = vld [vmem:[%s1 + $0x4c] sm:$0xf]
  %v42 = vld [vmem:[%s1 + $0x50] sm:$0xf]
  %v43 = vld [vmem:[%s1 + $0x54] sm:$0xf]
  %v44 = vld [vmem:[%s1 + $0x58] sm:$0xf]
  %v45 = vld [vmem:[%s1 + $0x5c] sm:$0xf]
  %v50 = vunpack.c.l.b16 %v18
  %v51 = vunpack.c.h.b16 %v18
  %v52 = vunpack.c.l.b16 %v19
  %v53 = vunpack.c.h.b16 %v19
  %v54 = vunpack.c.l.b16 %v20
  %v55 = vunpack.c.h.b16 %v20
  %v56 = vunpack.c.l.b16 %v21
  %v57 = vunpack.c.h.b16 %v21
  %v58 = vpack.c.b16 %v52, %v50
  %v59 = vpack.c.b16 %v53, %v51
  %v60 = vpack.c.b16 %v56, %v54
  %v61 = vpack.c.b16 %v57, %v55
  %v88 = vunpack.c.l.b16 %v22
  %v89 = vunpack.c.l.b16 %v23
  %v90 = vunpack.c.l.b16 %v24
  %v91 = vunpack.c.l.b16 %v25
  %v92 = vunpack.c.l.b16 %v26
  %v93 = vunpack.c.l.b16 %v27
  %v94 = vunpack.c.l.b16 %v28
  %v95 = vunpack.c.l.b16 %v29
  %v96 = vunpack.c.l.b16 %v30
  %v97 = vunpack.c.l.b16 %v31
  %v98 = vunpack.c.l.b16 %v32
  %v99 = vunpack.c.l.b16 %v33
  %v100 = vunpack.c.l.b16 %v34
  %v101 = vunpack.c.l.b16 %v35
  %v102 = vunpack.c.l.b16 %v36
  %v103 = vunpack.c.l.b16 %v37
  %v104 = vunpack.c.l.b16 %v38
  %v105 = vunpack.c.l.b16 %v39
  %v106 = vunpack.c.l.b16 %v40
  %v107 = vunpack.c.l.b16 %v41
  %v108 = vunpack.c.l.b16 %v42
  %v109 = vunpack.c.l.b16 %v43
  %v110 = vunpack.c.l.b16 %v44
  %v111 = vunpack.c.l.b16 %v45
  %v112 = vpack.c.b16 %v89, %v88
  %v113 = vpack.c.b16 %v91, %v90
  %v114 = vpack.c.b16 %v93, %v92
  %v115 = vpack.c.b16 %v95, %v94
  %v116 = vpack.c.b16 %v97, %v96
  %v117 = vpack.c.b16 %v99, %v98
  %v118 = vpack.c.b16 %v101, %v100
  %v119 = vpack.c.b16 %v103, %v102
  %v120 = vpack.c.b16 %v105, %v104
  %v121 = vpack.c.b16 %v107, %v106
  %v122 = vpack.c.b16 %v109, %v108
  %v123 = vpack.c.b16 %v111, %v110
  %vm136 = vcmask 523264
  %v138 = vsel %vm136, %v59, 0
  %v141 = vsel %vm136, %v61, 0
  %143 = vmatprep.subr.bf16.mxu0 0
  %144 = vmatpush1.bf16.msra.mxu0 %v119
  %145 = vmatprep.subr.bf16.mxu0 0
  %146 = vmatpush1.bf16.msra.mxu0 %v118
  %147 = vmatprep.subr.bf16.mxu0 0
  %148 = vmatpush1.bf16.msra.mxu0 %v117
  %149 = vmatprep.subr.bf16.mxu0 0
  %150 = vmatpush1.bf16.msra.mxu0 %v116
  %151 = vmatprep.subr.bf16.mxu0 0
  %152 = vmatpush1.bf16.msra.mxu0 %v115
  %153 = vmatprep.subr.bf16.mxu0 0
  %154 = vmatpush1.bf16.msra.mxu0 %v114
  %155 = vmatprep.subr.bf16.mxu0 0
  %156 = vmatpush1.bf16.msra.mxu0 %v113
  %157 = vmatprep.subr.bf16.mxu0 0
  %158 = vmatpush1.bf16.msra.mxu0 %v112
  %159 = vmatprep.subr.bf16.mxu0 0
  %160 = vmatpush2.bf16.msra.mxu0 0
  %161 = vmatprep.subr.bf16.mxu0 0
  %162 = vmatpush2.bf16.msra.mxu0 0
  %163 = vmatprep.subr.bf16.mxu0 0
  %164 = vmatpush2.bf16.msra.mxu0 0
  %165 = vmatprep.subr.bf16.mxu0 0
  %166 = vmatpush2.bf16.msra.mxu0 0
  %167 = vmatprep.subr.bf16.mxu0 0
  %168 = vmatpush2.bf16.msra.mxu0 %v123
  %169 = vmatprep.subr.bf16.mxu0 0
  %170 = vmatpush2.bf16.msra.mxu0 %v122
  %171 = vmatprep.subr.bf16.mxu0 0
  %172 = vmatpush2.bf16.msra.mxu0 %v121
  %173 = vmatprep.subr.bf16.mxu0 0
  %174 = vmatpush2.bf16.msra.mxu0 %v120
  %175 = vmatprep.mubr.bf16.mxu0 %v138
  %176 = vmatmul.mubr.bf16.gmra.mxu0 %v58
  %v177 = vpop.f32.mrf.mxu0
  %v178 = vadd.f32 0.0, %v177
  %v179 = vpop.f32.mrf.mxu0
  %v180 = vpop.f32.mrf.mxu0
  %v181 = vadd.f32 0.0, %v180
  %v182 = vpop.f32.mrf.mxu0
  %183 = vmatprep.mubr.bf16.mxu0 %v141
  %184 = vmatmul.mubr.bf16.gmra.mxu0 %v60
  %v185 = vpop.f32.mrf.mxu0
  %v186 = vadd.f32 0.0, %v185
  %v187 = vpop.f32.mrf.mxu0
  %v188 = vpop.f32.mrf.mxu0
  %v189 = vadd.f32 0.0, %v188
  %v190 = vpop.f32.mrf.mxu0
  %191 = vdwg.mxu0
  %v192 = vld [vmem:[%s2] sm:$0x1]
  %v194 = vlaneseq
  %v195 = vshrl.u32 %v194, 7
  %v196 = vsub.s32 0, %v195
  %v197 = vrot.slane %v192, %v196
  %v199 = vmul.f32 %v178, %v197
  %v200 = vmul.f32 %v181, %v197
  %v201 = vmul.f32 %v186, %v197
  %v202 = vmul.f32 %v189, %v197
  %v203 = vld [vmem:[%s3] sm:$0x1]
  %v205 = vlaneseq
  %v206 = vshrl.u32 %v205, 7
  %v207 = vsub.s32 0, %v206
  %v208 = vrot.slane %v203, %v207
  %v210 = vadd.f32 %v199, %v208
  %v211 = vadd.f32 %v200, %v208
  %v212 = vadd.f32 %v201, %v208
  %v213 = vadd.f32 %v202, %v208
  %v214 = vmax.f32 %v210, 0.0
  %v215 = vmax.f32 %v211, 0.0
  %v216 = vmax.f32 %v212, 0.0
  %v217 = vmax.f32 %v213, 0.0
  %218 = vst.msk [vmem:[%s4] sm:$0xff] %vm136, %v214
  %219 = vst.msk [vmem:[%s4 + $0x8] sm:$0xff] %vm136, %v215
  %220 = vst.msk [vmem:[%s4 + $0x10] sm:$0xff] %vm136, %v216
  %221 = vst.msk [vmem:[%s4 + $0x18] sm:$0xff] %vm136, %v217
  // Predicated region
  $region18: #{detector_forward.31} parent=0 // pred_check
    _
  $region19: #{detector_forward.31} parent=0 // pred_check_branch
    %223 = sbr.rel (0) target = $region21
  $region20: #{detector_forward.31} parent=0 // pred_region
    _
  $region21: #{detector_forward.31} parent=0 // pred_fallthru
    _
  // Predicated region
  $region22: #{detector_forward.31} parent=0 // pred_check
    _
  $region23: #{detector_forward.31} parent=0 // pred_check_branch
    %225 = sbr.rel (0) target = $region25
  $region24: #{detector_forward.31} parent=0 // pred_region
    _
  $region25: #{detector_forward.31} parent=0 // pred_fallthru
    _

// kernel: detector_forward.32
$region0: #{detector_forward.32}
  #allocation0 [shape = 'u32[]', space=smem, size = 0x4, offset = 0x4, fixed_abs, tag = 'smem constant byte address 0x4 - core index']
  #allocation1 [shape = 'u32[144,128]{1,0:T(1,128)}', space=vmem, size = 0x12000, scoped, tag = 'internal scratch']
  %s0 = inlined_call_operand.vmem [shape: bf16[128,128], index: 0, kind: input, shape index: {}]
  %s1 = inlined_call_operand.vmem [shape: bf16[128,64], index: 1, kind: input, shape index: {}]
  %s2 = inlined_call_operand.vmem [shape: f32[1,64], index: 2, kind: input, shape index: {}]
  %s3 = inlined_call_operand.vmem [shape: f32[1,64], index: 3, kind: input, shape index: {}]
  %s4 = inlined_call_operand.vmem [shape: f32[128,64], index: 4, kind: output, shape index: {}]
  %s5 = sld [smem:[#allocation0]]
  $region26: #{detector_forward.32} parent=0
    _
  %s7 = ssub.s32 1, %s5
  %s8 = scalar_select 0, %s7, %s5
  // Predicated region
  $region2: #{detector_forward.32} parent=0 // pred_check
    _
  $region3: #{detector_forward.32} parent=0 // pred_check_branch
    %10 = sbr.rel (0) target = $region5
  $region4: #{detector_forward.32} parent=0 // pred_region
    _
  $region5: #{detector_forward.32} parent=0 // pred_fallthru
    _
  // Predicated region
  $region6: #{detector_forward.32} parent=0 // pred_check
    _
  $region7: #{detector_forward.32} parent=0 // pred_check_branch
    %12 = sbr.rel (0) target = $region9
  $region8: #{detector_forward.32} parent=0 // pred_region
    _
  $region9: #{detector_forward.32} parent=0 // pred_fallthru
    _
  // Predicated region
  $region10: #{detector_forward.32} parent=0 // pred_check
    _
  $region11: #{detector_forward.32} parent=0 // pred_check_branch
    %14 = sbr.rel (0) target = $region13
  $region12: #{detector_forward.32} parent=0 // pred_region
    _
  $region13: #{detector_forward.32} parent=0 // pred_fallthru
    _
  // Predicated region
  $region14: #{detector_forward.32} parent=0 // pred_check
    _
  $region15: #{detector_forward.32} parent=0 // pred_check_branch
    %16 = sbr.rel (0) target = $region17
  $region16: #{detector_forward.32} parent=0 // pred_region
    _
  $region17: #{detector_forward.32} parent=0 // pred_fallthru
    _
  %v18 = vld [vmem:[%s0] sm:$0xf]
  %v19 = vld [vmem:[%s0 + $0x4] sm:$0xf]
  %v20 = vld [vmem:[%s0 + $0x8] sm:$0xf]
  %v21 = vld [vmem:[%s0 + $0xc] sm:$0xf]
  %v22 = vld [vmem:[%s0 + $0x10] sm:$0xf]
  %v23 = vld [vmem:[%s0 + $0x14] sm:$0xf]
  %v24 = vld [vmem:[%s0 + $0x18] sm:$0xf]
  %v25 = vld [vmem:[%s0 + $0x1c] sm:$0xf]
  %v26 = vld [vmem:[%s0 + $0x20] sm:$0xf]
  %v27 = vld [vmem:[%s0 + $0x24] sm:$0xf]
  %v28 = vld [vmem:[%s0 + $0x28] sm:$0xf]
  %v29 = vld [vmem:[%s0 + $0x2c] sm:$0xf]
  %v30 = vld [vmem:[%s0 + $0x30] sm:$0xf]
  %v31 = vld [vmem:[%s0 + $0x34] sm:$0xf]
  %v32 = vld [vmem:[%s0 + $0x38] sm:$0xf]
  %v33 = vld [vmem:[%s0 + $0x3c] sm:$0xf]
  %v34 = vld [vmem:[%s1] sm:$0xf]
  %v35 = vld [vmem:[%s1 + $0x4] sm:$0xf]
  %v36 = vld [vmem:[%s1 + $0x8] sm:$0xf]
  %v37 = vld [vmem:[%s1 + $0xc] sm:$0xf]
  %v38 = vld [vmem:[%s1 + $0x10] sm:$0xf]
  %v39 = vld [vmem:[%s1 + $0x14] sm:$0xf]
  %v40 = vld [vmem:[%s1 + $0x18] sm:$0xf]
  %v41 = vld [vmem:[%s1 + $0x1c] sm:$0xf]
  %v42 = vld [vmem:[%s1 + $0x20] sm:$0xf]
  %v43 = vld [vmem:[%s1 + $0x24] sm:$0xf]
  %v44 = vld [vmem:[%s1 + $0x28] sm:$0xf]
  %v45 = vld [vmem:[%s1 + $0x2c] sm:$0xf]
  %v46 = vld [vmem:[%s1 + $0x30] sm:$0xf]
  %v47 = vld [vmem:[%s1 + $0x34] sm:$0xf]
  %v48 = vld [vmem:[%s1 + $0x38] sm:$0xf]
  %v49 = vld [vmem:[%s1 + $0x3c] sm:$0xf]
  %v66 = vunpack.c.l.b16 %v18
  %v67 = vunpack.c.l.b16 %v19
  %v68 = vunpack.c.l.b16 %v20
  %v69 = vunpack.c.l.b16 %v21
  %v70 = vunpack.c.l.b16 %v22
  %v71 = vunpack.c.l.b16 %v23
  %v72 = vunpack.c.l.b16 %v24
  %v73 = vunpack.c.l.b16 %v25
  %v74 = vunpack.c.l.b16 %v26
  %v75 = vunpack.c.l.b16 %v27
  %v76 = vunpack.c.l.b16 %v28
  %v77 = vunpack.c.l.b16 %v29
  %v78 = vunpack.c.l.b16 %v30
  %v79 = vunpack.c.l.b16 %v31
  %v80 = vunpack.c.l.b16 %v32
  %v81 = vunpack.c.l.b16 %v33
  %v82 = vpack.c.b16 %v67, %v66
  %v83 = vpack.c.b16 %v69, %v68
  %v84 = vpack.c.b16 %v71, %v70
  %v85 = vpack.c.b16 %v73, %v72
  %v86 = vpack.c.b16 %v75, %v74
  %v87 = vpack.c.b16 %v77, %v76
  %v88 = vpack.c.b16 %v79, %v78
  %v89 = vpack.c.b16 %v81, %v80
  %v114 = vunpack.c.l.b16 %v34
  %v115 = vunpack.c.l.b16 %v35
  %v116 = vunpack.c.l.b16 %v36
  %v117 = vunpack.c.l.b16 %v37
  %v118 = vunpack.c.l.b16 %v38
  %v119 = vunpack.c.l.b16 %v39
  %v120 = vunpack.c.l.b16 %v40
  %v121 = vunpack.c.l.b16 %v41
  %v122 = vunpack.c.l.b16 %v42
  %v123 = vunpack.c.l.b16 %v43
  %v124 = vunpack.c.l.b16 %v44
  %v125 = vunpack.c.l.b16 %v45
  %v126 = vunpack.c.l.b16 %v46
  %v127 = vunpack.c.l.b16 %v47
  %v128 = vunpack.c.l.b16 %v48
  %v129 = vunpack.c.l.b16 %v49
  %v130 = vpack.c.b16 %v115, %v114
  %v131 = vpack.c.b16 %v117, %v116
  %v132 = vpack.c.b16 %v119, %v118
  %v133 = vpack.c.b16 %v121, %v120
  %v134 = vpack.c.b16 %v123, %v122
  %v135 = vpack.c.b16 %v125, %v124
  %v136 = vpack.c.b16 %v127, %v126
  %v137 = vpack.c.b16 %v129, %v128
  %146 = vmatprep.subr.bf16.mxu0 0
  %147 = vmatpush1.bf16.msra.mxu0 %v137
  %148 = vmatprep.subr.bf16.mxu0 0
  %149 = vmatpush1.bf16.msra.mxu0 %v136
  %150 = vmatprep.subr.bf16.mxu0 0
  %151 = vmatpush1.bf16.msra.mxu0 %v135
  %152 = vmatprep.subr.bf16.mxu0 0
  %153 = vmatpush1.bf16.msra.mxu0 %v134
  %154 = vmatprep.subr.bf16.mxu0 0
  %155 = vmatpush1.bf16.msra.mxu0 %v133
  %156 = vmatprep.subr.bf16.mxu0 0
  %157 = vmatpush1.bf16.msra.mxu0 %v132
  %158 = vmatprep.subr.bf16.mxu0 0
  %159 = vmatpush1.bf16.msra.mxu0 %v131
  %160 = vmatprep.subr.bf16.mxu0 0
  %161 = vmatpush1.bf16.msra.mxu0 %v130
  %162 = vmatprep.subr.bf16.mxu0 0
  %163 = vmatpush2.bf16.msra.mxu0 0
  %164 = vmatprep.subr.bf16.mxu0 0
  %165 = vmatpush2.bf16.msra.mxu0 0
  %166 = vmatprep.subr.bf16.mxu0 0
  %167 = vmatpush2.bf16.msra.mxu0 0
  %168 = vmatprep.subr.bf16.mxu0 0
  %169 = vmatpush2.bf16.msra.mxu0 0
  %170 = vmatprep.subr.bf16.mxu0 0
  %171 = vmatpush2.bf16.msra.mxu0 0
  %172 = vmatprep.subr.bf16.mxu0 0
  %173 = vmatpush2.bf16.msra.mxu0 0
  %174 = vmatprep.subr.bf16.mxu0 0
  %175 = vmatpush2.bf16.msra.mxu0 0
  %176 = vmatprep.subr.bf16.mxu0 0
  %177 = vmatpush2.bf16.msra.mxu0 0
  %178 = vmatprep.mubr.bf16.mxu0 0
  %179 = vmatmul.mubr.bf16.gmra.mxu0 %v82
  %v180 = vpop.f32.mrf.mxu0
  %v181 = vadd.f32 0.0, %v180
  %v182 = vpop.f32.mrf.mxu0
  %v183 = vpop.f32.mrf.mxu0
  %v184 = vadd.f32 0.0, %v183
  %v185 = vpop.f32.mrf.mxu0
  %186 = vmatprep.mubr.bf16.mxu0 0
  %187 = vmatmul.mubr.bf16.gmra.mxu0 %v83
  %v188 = vpop.f32.mrf.mxu0
  %v189 = vadd.f32 0.0, %v188
  %v190 = vpop.f32.mrf.mxu0
  %v191 = vpop.f32.mrf.mxu0
  %v192 = vadd.f32 0.0, %v191
  %v193 = vpop.f32.mrf.mxu0
  %194 = vmatprep.mubr.bf16.mxu0 0
  %195 = vmatmul.mubr.bf16.gmra.mxu0 %v84
  %v196 = vpop.f32.mrf.mxu0
  %v197 = vadd.f32 0.0, %v196
  %v198 = vpop.f32.mrf.mxu0
  %v199 = vpop.f32.mrf.mxu0
  %v200 = vadd.f32 0.0, %v199
  %v201 = vpop.f32.mrf.mxu0
  %202 = vmatprep.mubr.bf16.mxu0 0
  %203 = vmatmul.mubr.bf16.gmra.mxu0 %v85
  %v204 = vpop.f32.mrf.mxu0
  %v205 = vadd.f32 0.0, %v204
  %v206 = vpop.f32.mrf.mxu0
  %v207 = vpop.f32.mrf.mxu0
  %v208 = vadd.f32 0.0, %v207
  %v209 = vpop.f32.mrf.mxu0
  %210 = vmatprep.mubr.bf16.mxu0 0
  %211 = vmatmul.mubr.bf16.gmra.mxu0 %v86
  %v212 = vpop.f32.mrf.mxu0
  %v213 = vadd.f32 0.0, %v212
  %v214 = vpop.f32.mrf.mxu0
  %v215 = vpop.f32.mrf.mxu0
  %v216 = vadd.f32 0.0, %v215
  %v217 = vpop.f32.mrf.mxu0
  %218 = vmatprep.mubr.bf16.mxu0 0
  %219 = vmatmul.mubr.bf16.gmra.mxu0 %v87
  %v220 = vpop.f32.mrf.mxu0
  %v221 = vadd.f32 0.0, %v220
  %v222 = vpop.f32.mrf.mxu0
  %v223 = vpop.f32.mrf.mxu0
  %v224 = vadd.f32 0.0, %v223
  %v225 = vpop.f32.mrf.mxu0
  %226 = vmatprep.mubr.bf16.mxu0 0
  %227 = vmatmul.mubr.bf16.gmra.mxu0 %v88
  %v228 = vpop.f32.mrf.mxu0
  %v229 = vadd.f32 0.0, %v228
  %v230 = vpop.f32.mrf.mxu0
  %v231 = vpop.f32.mrf.mxu0
  %v232 = vadd.f32 0.0, %v231
  %v233 = vpop.f32.mrf.mxu0
  %234 = vmatprep.mubr.bf16.mxu0 0
  %235 = vmatmul.mubr.bf16.gmra.mxu0 %v89
  %v236 = vpop.f32.mrf.mxu0
  %v237 = vadd.f32 0.0, %v236
  %v238 = vpop.f32.mrf.mxu0
  %v239 = vpop.f32.mrf.mxu0
  %v240 = vadd.f32 0.0, %v239
  %v241 = vpop.f32.mrf.mxu0
  %242 = vdwg.mxu0
  %v243 = vld [vmem:[%s2] sm:$0x1]
  %v245 = vlaneseq
  %v246 = vshrl.u32 %v245, 7
  %v247 = vsub.s32 0, %v246
  %v248 = vrot.slane %v243, %v247
  %v250 = vmul.f32 %v181, %v248
  %v251 = vmul.f32 %v184, %v248
  %v252 = vmul.f32 %v189, %v248
  %v253 = vmul.f32 %v192, %v248
  %v254 = vmul.f32 %v197, %v248
  %v255 = vmul.f32 %v200, %v248
  %v256 = vmul.f32 %v205, %v248
  %v257 = vmul.f32 %v208, %v248
  %v258 = vmul.f32 %v213, %v248
  %v259 = vmul.f32 %v216, %v248
  %v260 = vmul.f32 %v221, %v248
  %v261 = vmul.f32 %v224, %v248
  %v262 = vmul.f32 %v229, %v248
  %v263 = vmul.f32 %v232, %v248
  %v264 = vmul.f32 %v237, %v248
  %v265 = vmul.f32 %v240, %v248
  %v266 = vld [vmem:[%s3] sm:$0x1]
  %v268 = vlaneseq
  %v269 = vshrl.u32 %v268, 7
  %v270 = vsub.s32 0, %v269
  %v271 = vrot.slane %v266, %v270
  %v273 = vadd.f32 %v250, %v271
  %v274 = vadd.f32 %v251, %v271
  %v275 = vadd.f32 %v252, %v271
  %v276 = vadd.f32 %v253, %v271
  %v277 = vadd.f32 %v254, %v271
  %v278 = vadd.f32 %v255, %v271
  %v279 = vadd.f32 %v256, %v271
  %v280 = vadd.f32 %v257, %v271
  %v281 = vadd.f32 %v258, %v271
  %v282 = vadd.f32 %v259, %v271
  %v283 = vadd.f32 %v260, %v271
  %v284 = vadd.f32 %v261, %v271
  %v285 = vadd.f32 %v262, %v271
  %v286 = vadd.f32 %v263, %v271
  %v287 = vadd.f32 %v264, %v271
  %v288 = vadd.f32 %v265, %v271
  %v289 = vmax.f32 %v273, 0.0
  %v290 = vmax.f32 %v274, 0.0
  %v291 = vmax.f32 %v275, 0.0
  %v292 = vmax.f32 %v276, 0.0
  %v293 = vmax.f32 %v277, 0.0
  %v294 = vmax.f32 %v278, 0.0
  %v295 = vmax.f32 %v279, 0.0
  %v296 = vmax.f32 %v280, 0.0
  %v297 = vmax.f32 %v281, 0.0
  %v298 = vmax.f32 %v282, 0.0
  %v299 = vmax.f32 %v283, 0.0
  %v300 = vmax.f32 %v284, 0.0
  %v301 = vmax.f32 %v285, 0.0
  %v302 = vmax.f32 %v286, 0.0
  %v303 = vmax.f32 %v287, 0.0
  %v304 = vmax.f32 %v288, 0.0
  %vm305 = vcmask 523264
  %306 = vst.msk [vmem:[%s4] sm:$0xff] %vm305, %v289
  %307 = vst.msk [vmem:[%s4 + $0x8] sm:$0xff] %vm305, %v290
  %308 = vst.msk [vmem:[%s4 + $0x10] sm:$0xff] %vm305, %v291
  %309 = vst.msk [vmem:[%s4 + $0x18] sm:$0xff] %vm305, %v292
  %310 = vst.msk [vmem:[%s4 + $0x20] sm:$0xff] %vm305, %v293
  %311 = vst.msk [vmem:[%s4 + $0x28] sm:$0xff] %vm305, %v294
  %312 = vst.msk [vmem:[%s4 + $0x30] sm:$0xff] %vm305, %v295
  %313 = vst.msk [vmem:[%s4 + $0x38] sm:$0xff] %vm305, %v296
  %314 = vst.msk [vmem:[%s4 + $0x40] sm:$0xff] %vm305, %v297
  %315 = vst.msk [vmem:[%s4 + $0x48] sm:$0xff] %vm305, %v298
  %316 = vst.msk [vmem:[%s4 + $0x50] sm:$0xff] %vm305, %v299
  %317 = vst.msk [vmem:[%s4 + $0x58] sm:$0xff] %vm305, %v300
  %318 = vst.msk [vmem:[%s4 + $0x60] sm:$0xff] %vm305, %v301
  %319 = vst.msk [vmem:[%s4 + $0x68] sm:$0xff] %vm305, %v302
  %320 = vst.msk [vmem:[%s4 + $0x70] sm:$0xff] %vm305, %v303
  %321 = vst.msk [vmem:[%s4 + $0x78] sm:$0xff] %vm305, %v304
  // Predicated region
  $region18: #{detector_forward.32} parent=0 // pred_check
    _
  $region19: #{detector_forward.32} parent=0 // pred_check_branch
    %323 = sbr.rel (0) target = $region21
  $region20: #{detector_forward.32} parent=0 // pred_region
    _
  $region21: #{detector_forward.32} parent=0 // pred_fallthru
    _
  // Predicated region
  $region22: #{detector_forward.32} parent=0 // pred_check
    _
  $region23: #{detector_forward.32} parent=0 // pred_check_branch
    %325 = sbr.rel (0) target = $region25
  $region24: #{detector_forward.32} parent=0 // pred_region
    _
  $region25: #{detector_forward.32} parent=0 // pred_fallthru
    _

// kernel: detector_forward.33
$region0: #{detector_forward.33}
  #allocation0 [shape = 'u32[]', space=smem, size = 0x4, offset = 0x4, fixed_abs, tag = 'smem constant byte address 0x4 - core index']
  #allocation1 [shape = 'u32[144,128]{1,0:T(1,128)}', space=vmem, size = 0x12000, scoped, tag = 'internal scratch']
  #allocation2 [shape = 'f32[1,1]{1,0:T(1,128)S(1)}', space=vmem, size = 0x200, scoped, tag = 'scoped memory for detector_forward.33']
  #allocation3 [shape = 'f32[1,1]{1,0:T(1,128)S(1)}', space=vmem, size = 0x200, scoped, tag = 'scoped memory for detector_forward.33']
  %s0 = inlined_call_operand.vmem [shape: bf16[512,19], index: 0, kind: input, shape index: {}]
  %s1 = inlined_call_operand.vmem [shape: bf16[19,1], index: 1, kind: input, shape index: {}]
  %s2 = inlined_call_operand.<no memory space> [shape: f32[1,1], index: 2, kind: input, shape index: {}]
  %s3 = inlined_call_operand.<no memory space> [shape: f32[1,1], index: 3, kind: input, shape index: {}]
  %s4 = inlined_call_operand.vmem [shape: f32[512,1], index: 4, kind: output, shape index: {}]
  %s5 = sld [smem:[#allocation0]]
  $region26: #{detector_forward.33} parent=0
    _
  %s7 = ssub.s32 1, %s5
  %s8 = scalar_select 0, %s7, %s5
  %v9 = vstv %s2
  %10 = vst [vmem:[#allocation2] sm:$0x1] %v9
  %v11 = vstv %s3
  %12 = vst [vmem:[#allocation3] sm:$0x1] %v11
  // Predicated region
  $region2: #{detector_forward.33} parent=0 // pred_check
    _
  $region3: #{detector_forward.33} parent=0 // pred_check_branch
    %14 = sbr.rel (0) target = $region5
  $region4: #{detector_forward.33} parent=0 // pred_region
    _
  $region5: #{detector_forward.33} parent=0 // pred_fallthru
    _
  // Predicated region
  $region6: #{detector_forward.33} parent=0 // pred_check
    _
  $region7: #{detector_forward.33} parent=0 // pred_check_branch
    %16 = sbr.rel (0) target = $region9
  $region8: #{detector_forward.33} parent=0 // pred_region
    _
  $region9: #{detector_forward.33} parent=0 // pred_fallthru
    _
  // Predicated region
  $region10: #{detector_forward.33} parent=0 // pred_check
    _
  $region11: #{detector_forward.33} parent=0 // pred_check_branch
    %18 = sbr.rel (0) target = $region13
  $region12: #{detector_forward.33} parent=0 // pred_region
    _
  $region13: #{detector_forward.33} parent=0 // pred_fallthru
    _
  // Predicated region
  $region14: #{detector_forward.33} parent=0 // pred_check
    _
  $region15: #{detector_forward.33} parent=0 // pred_check_branch
    %20 = sbr.rel (0) target = $region17
  $region16: #{detector_forward.33} parent=0 // pred_region
    _
  $region17: #{detector_forward.33} parent=0 // pred_fallthru
    _
  %v22 = vld [vmem:[%s0] sm:$0xf]
  %v23 = vld [vmem:[%s0 + $0x4] sm:$0xf]
  %v24 = vld [vmem:[%s0 + $0x8] sm:$0xf]
  %v25 = vld [vmem:[%s0 + $0xc] sm:$0xf]
  %v26 = vld [vmem:[%s0 + $0x10] sm:$0xf]
  %v27 = vld [vmem:[%s0 + $0x14] sm:$0xf]
  %v28 = vld [vmem:[%s0 + $0x18] sm:$0xf]
  %v29 = vld [vmem:[%s0 + $0x1c] sm:$0xf]
  %v30 = vld [vmem:[%s0 + $0x20] sm:$0xf]
  %v31 = vld [vmem:[%s0 + $0x24] sm:$0xf]
  %v32 = vld [vmem:[%s0 + $0x28] sm:$0xf]
  %v33 = vld [vmem:[%s0 + $0x2c] sm:$0xf]
  %v34 = vld [vmem:[%s0 + $0x30] sm:$0xf]
  %v35 = vld [vmem:[%s0 + $0x34] sm:$0xf]
  %v36 = vld [vmem:[%s0 + $0x38] sm:$0xf]
  %v37 = vld [vmem:[%s0 + $0x3c] sm:$0xf]
  %v38 = vld [vmem:[%s0 + $0x40] sm:$0xf]
  %v39 = vld [vmem:[%s0 + $0x44] sm:$0xf]
  %v40 = vld [vmem:[%s0 + $0x48] sm:$0xf]
  %v41 = vld [vmem:[%s0 + $0x4c] sm:$0xf]
  %v42 = vld [vmem:[%s0 + $0x50] sm:$0xf]
  %v43 = vld [vmem:[%s0 + $0x54] sm:$0xf]
  %v44 = vld [vmem:[%s0 + $0x58] sm:$0xf]
  %v45 = vld [vmem:[%s0 + $0x5c] sm:$0xf]
  %v46 = vld [vmem:[%s0 + $0x60] sm:$0xf]
  %v47 = vld [vmem:[%s0 + $0x64] sm:$0xf]
  %v48 = vld [vmem:[%s0 + $0x68] sm:$0xf]
  %v49 = vld [vmem:[%s0 + $0x6c] sm:$0xf]
  %v50 = vld [vmem:[%s0 + $0x70] sm:$0xf]
  %v51 = vld [vmem:[%s0 + $0x74] sm:$0xf]
  %v52 = vld [vmem:[%s0 + $0x78] sm:$0xf]
  %v53 = vld [vmem:[%s0 + $0x7c] sm:$0xf]
  %v54 = vld [vmem:[%s0 + $0x80] sm:$0xf]
  %v55 = vld [vmem:[%s0 + $0x84] sm:$0xf]
  %v56 = vld [vmem:[%s0 + $0x88] sm:$0xf]
  %v57 = vld [vmem:[%s0 + $0x8c] sm:$0xf]
  %v58 = vld [vmem:[%s0 + $0x90] sm:$0xf]
  %v59 = vld [vmem:[%s0 + $0x94] sm:$0xf]
  %v60 = vld [vmem:[%s0 + $0x98] sm:$0xf]
  %v61 = vld [vmem:[%s0 + $0x9c] sm:$0xf]
  %v62 = vld [vmem:[%s0 + $0xa0] sm:$0xf]
  %v63 = vld [vmem:[%s0 + $0xa4] sm:$0xf]
  %v64 = vld [vmem:[%s0 + $0xa8] sm:$0xf]
  %v65 = vld [vmem:[%s0 + $0xac] sm:$0xf]
  %v66 = vld [vmem:[%s0 + $0xb0] sm:$0xf]
  %v67 = vld [vmem:[%s0 + $0xb4] sm:$0xf]
  %v68 = vld [vmem:[%s0 + $0xb8] sm:$0xf]
  %v69 = vld [vmem:[%s0 + $0xbc] sm:$0xf]
  %v70 = vld [vmem:[%s0 + $0xc0] sm:$0xf]
  %v71 = vld [vmem:[%s0 + $0xc4] sm:$0xf]
  %v72 = vld [vmem:[%s0 + $0xc8] sm:$0xf]
  %v73 = vld [vmem:[%s0 + $0xcc] sm:$0xf]
  %v74 = vld [vmem:[%s0 + $0xd0] sm:$0xf]
  %v75 = vld [vmem:[%s0 + $0xd4] sm:$0xf]
  %v76 = vld [vmem:[%s0 + $0xd8] sm:$0xf]
  %v77 = vld [vmem:[%s0 + $0xdc] sm:$0xf]
  %v78 = vld [vmem:[%s0 + $0xe0] sm:$0xf]
  %v79 = vld [vmem:[%s0 + $0xe4] sm:$0xf]
  %v80 = vld [vmem:[%s0 + $0xe8] sm:$0xf]
  %v81 = vld [vmem:[%s0 + $0xec] sm:$0xf]
  %v82 = vld [vmem:[%s0 + $0xf0] sm:$0xf]
  %v83 = vld [vmem:[%s0 + $0xf4] sm:$0xf]
  %v84 = vld [vmem:[%s0 + $0xf8] sm:$0xf]
  %v85 = vld [vmem:[%s0 + $0xfc] sm:$0xf]
  %v86 = vld [vmem:[%s1] sm:$0xf]
  %v87 = vld [vmem:[%s1 + $0x4] sm:$0xf]
  %v88 = vld [vmem:[%s1 + $0x8] sm:$0x3]
  %v153 = vunpack.c.l.b16 %v22
  %v154 = vunpack.c.l.b16 %v23
  %v155 = vunpack.c.l.b16 %v24
  %v156 = vunpack.c.l.b16 %v25
  %v157 = vunpack.c.l.b16 %v26
  %v158 = vunpack.c.l.b16 %v27
  %v159 = vunpack.c.l.b16 %v28
  %v160 = vunpack.c.l.b16 %v29
  %v161 = vunpack.c.l.b16 %v30
  %v162 = vunpack.c.l.b16 %v31
  %v163 = vunpack.c.l.b16 %v32
  %v164 = vunpack.c.l.b16 %v33
  %v165 = vunpack.c.l.b16 %v34
  %v166 = vunpack.c.l.b16 %v35
  %v167 = vunpack.c.l.b16 %v36
  %v168 = vunpack.c.l.b16 %v37
  %v169 = vunpack.c.l.b16 %v38
  %v170 = vunpack.c.l.b16 %v39
  %v171 = vunpack.c.l.b16 %v40
  %v172 = vunpack.c.l.b16 %v41
  %v173 = vunpack.c.l.b16 %v42
  %v174 = vunpack.c.l.b16 %v43
  %v175 = vunpack.c.l.b16 %v44
  %v176 = vunpack.c.l.b16 %v45
  %v177 = vunpack.c.l.b16 %v46
  %v178 = vunpack.c.l.b16 %v47
  %v179 = vunpack.c.l.b16 %v48
  %v180 = vunpack.c.l.b16 %v49
  %v181 = vunpack.c.l.b16 %v50
  %v182 = vunpack.c.l.b16 %v51
  %v183 = vunpack.c.l.b16 %v52
  %v184 = vunpack.c.l.b16 %v53
  %v185 = vunpack.c.l.b16 %v54
  %v186 = vunpack.c.l.b16 %v55
  %v187 = vunpack.c.l.b16 %v56
  %v188 = vunpack.c.l.b16 %v57
  %v189 = vunpack.c.l.b16 %v58
  %v190 = vunpack.c.l.b16 %v59
  %v191 = vunpack.c.l.b16 %v60
  %v192 = vunpack.c.l.b16 %v61
  %v193 = vunpack.c.l.b16 %v62
  %v194 = vunpack.c.l.b16 %v63
  %v195 = vunpack.c.l.b16 %v64
  %v196 = vunpack.c.l.b16 %v65
  %v197 = vunpack.c.l.b16 %v66
  %v198 = vunpack.c.l.b16 %v67
  %v199 = vunpack.c.l.b16 %v68
  %v200 = vunpack.c.l.b16 %v69
  %v201 = vunpack.c.l.b16 %v70
  %v202 = vunpack.c.l.b16 %v71
  %v203 = vunpack.c.l.b16 %v72
  %v204 = vunpack.c.l.b16 %v73
  %v205 = vunpack.c.l.b16 %v74
  %v206 = vunpack.c.l.b16 %v75
  %v207 = vunpack.c.l.b16 %v76
  %v208 = vunpack.c.l.b16 %v77
  %v209 = vunpack.c.l.b16 %v78
  %v210 = vunpack.c.l.b16 %v79
  %v211 = vunpack.c.l.b16 %v80
  %v212 = vunpack.c.l.b16 %v81
  %v213 = vunpack.c.l.b16 %v82
  %v214 = vunpack.c.l.b16 %v83
  %v215 = vunpack.c.l.b16 %v84
  %v216 = vunpack.c.l.b16 %v85
  %v217 = vpack.c.b16 %v154, %v153
  %v218 = vpack.c.b16 %v156, %v155
  %v219 = vpack.c.b16 %v158, %v157
  %v220 = vpack.c.b16 %v160, %v159
  %v221 = vpack.c.b16 %v162, %v161
  %v222 = vpack.c.b16 %v164, %v163
  %v223 = vpack.c.b16 %v166, %v165
  %v224 = vpack.c.b16 %v168, %v167
  %v225 = vpack.c.b16 %v170, %v169
  %v226 = vpack.c.b16 %v172, %v171
  %v227 = vpack.c.b16 %v174, %v173
  %v228 = vpack.c.b16 %v176, %v175
  %v229 = vpack.c.b16 %v178, %v177
  %v230 = vpack.c.b16 %v180, %v179
  %v231 = vpack.c.b16 %v182, %v181
  %v232 = vpack.c.b16 %v184, %v183
  %v233 = vpack.c.b16 %v186, %v185
  %v234 = vpack.c.b16 %v188, %v187
  %v235 = vpack.c.b16 %v190, %v189
  %v236 = vpack.c.b16 %v192, %v191
  %v237 = vpack.c.b16 %v194, %v193
  %v238 = vpack.c.b16 %v196, %v195
  %v239 = vpack.c.b16 %v198, %v197
  %v240 = vpack.c.b16 %v200, %v199
  %v241 = vpack.c.b16 %v202, %v201
  %v242 = vpack.c.b16 %v204, %v203
  %v243 = vpack.c.b16 %v206, %v205
  %v244 = vpack.c.b16 %v208, %v207
  %v245 = vpack.c.b16 %v210, %v209
  %v246 = vpack.c.b16 %v212, %v211
  %v247 = vpack.c.b16 %v214, %v213
  %v248 = vpack.c.b16 %v216, %v215
  %v252 = vunpack.c.l.b16 %v86
  %v253 = vunpack.c.l.b16 %v87
  %v254 = vunpack.c.l.b16 %v88
  %v255 = vpack.c.b16 %v253, %v252
  %v256 = vpack.c.b16 %v254, %v254
  %vm258 = vcmask 154624
  %v260 = vsel %vm258, %v217, 0
  %v263 = vsel %vm258, %v218, 0
  %v266 = vsel %vm258, %v219, 0
  %v269 = vsel %vm258, %v220, 0
  %v272 = vsel %vm258, %v221, 0
  %v275 = vsel %vm258, %v222, 0
  %v278 = vsel %vm258, %v223, 0
  %v281 = vsel %vm258, %v224, 0
  %v284 = vsel %vm258, %v225, 0
  %v287 = vsel %vm258, %v226, 0
  %v290 = vsel %vm258, %v227, 0
  %v293 = vsel %vm258, %v228, 0
  %v296 = vsel %vm258, %v229, 0
  %v299 = vsel %vm258, %v230, 0
  %v302 = vsel %vm258, %v231, 0
  %v305 = vsel %vm258, %v232, 0
  %v308 = vsel %vm258, %v233, 0
  %v311 = vsel %vm258, %v234, 0
  %v314 = vsel %vm258, %v235, 0
  %v317 = vsel %vm258, %v236, 0
  %v320 = vsel %vm258, %v237, 0
  %v323 = vsel %vm258, %v238, 0
  %v326 = vsel %vm258, %v239, 0
  %v329 = vsel %vm258, %v240, 0
  %v332 = vsel %vm258, %v241, 0
  %v335 = vsel %vm258, %v242, 0
  %v338 = vsel %vm258, %v243, 0
  %v341 = vsel %vm258, %v244, 0
  %v344 = vsel %vm258, %v245, 0
  %v347 = vsel %vm258, %v246, 0
  %v350 = vsel %vm258, %v247, 0
  %v353 = vsel %vm258, %v248, 0
  %vm355 = vcmask 1040384
  %vm356 = vcmask 1041408
  %v357 = vsel %vm355, 4294967295, 65535
  %v358 = vsel %vm356, %v357, 0
  %v360 = vand.u32 %v256, %v358
  %362 = vmatprep.subr.bf16.mxu0 0
  %363 = vmatpush1.bf16.msra.mxu0 0
  %364 = vmatprep.subr.bf16.mxu0 0
  %365 = vmatpush1.bf16.msra.mxu0 0
  %366 = vmatprep.subr.bf16.mxu0 0
  %367 = vmatpush1.bf16.msra.mxu0 0
  %368 = vmatprep.subr.bf16.mxu0 0
  %369 = vmatpush1.bf16.msra.mxu0 0
  %370 = vmatprep.subr.bf16.mxu0 0
  %371 = vmatpush1.bf16.msra.mxu0 0
  %372 = vmatprep.subr.bf16.mxu0 0
  %373 = vmatpush1.bf16.msra.mxu0 0
  %374 = vmatprep.subr.bf16.mxu0 0
  %375 = vmatpush1.bf16.msra.mxu0 %v360
  %376 = vmatprep.subr.bf16.mxu0 0
  %377 = vmatpush1.bf16.msra.mxu0 %v255
  %378 = vmatprep.subr.bf16.mxu0 0
  %379 = vmatpush2.bf16.msra.mxu0 0
  %380 = vmatprep.subr.bf16.mxu0 0
  %381 = vmatpush2.bf16.msra.mxu0 0
  %382 = vmatprep.subr.bf16.mxu0 0
  %383 = vmatpush2.bf16.msra.mxu0 0
  %384 = vmatprep.subr.bf16.mxu0 0
  %385 = vmatpush2.bf16.msra.mxu0 0
  %386 = vmatprep.subr.bf16.mxu0 0
  %387 = vmatpush2.bf16.msra.mxu0 0
  %388 = vmatprep.subr.bf16.mxu0 0
  %389 = vmatpush2.bf16.msra.mxu0 0
  %390 = vmatprep.subr.bf16.mxu0 0
  %391 = vmatpush2.bf16.msra.mxu0 0
  %392 = vmatprep.subr.bf16.mxu0 0
  %393 = vmatpush2.bf16.msra.mxu0 0
  %394 = vmatprep.mubr.bf16.mxu0 0
  %395 = vmatmul.mubr.bf16.gmra.mxu0 %v260
  %v396 = vpop.f32.mrf.mxu0
  %v397 = vadd.f32 0.0, %v396
  %v398 = vpop.f32.mrf.mxu0
  %v399 = vpop.f32.mrf.mxu0
  %v400 = vadd.f32 0.0, %v399
  %v401 = vpop.f32.mrf.mxu0
  %402 = vmatprep.mubr.bf16.mxu0 0
  %403 = vmatmul.mubr.bf16.gmra.mxu0 %v263
  %v404 = vpop.f32.mrf.mxu0
  %v405 = vadd.f32 0.0, %v404
  %v406 = vpop.f32.mrf.mxu0
  %v407 = vpop.f32.mrf.mxu0
  %v408 = vadd.f32 0.0, %v407
  %v409 = vpop.f32.mrf.mxu0
  %410 = vmatprep.mubr.bf16.mxu0 0
  %411 = vmatmul.mubr.bf16.gmra.mxu0 %v266
  %v412 = vpop.f32.mrf.mxu0
  %v413 = vadd.f32 0.0, %v412
  %v414 = vpop.f32.mrf.mxu0
  %v415 = vpop.f32.mrf.mxu0
  %v416 = vadd.f32 0.0, %v415
  %v417 = vpop.f32.mrf.mxu0
  %418 = vmatprep.mubr.bf16.mxu0 0
  %419 = vmatmul.mubr.bf16.gmra.mxu0 %v269
  %v420 = vpop.f32.mrf.mxu0
  %v421 = vadd.f32 0.0, %v420
  %v422 = vpop.f32.mrf.mxu0
  %v423 = vpop.f32.mrf.mxu0
  %v424 = vadd.f32 0.0, %v423
  %v425 = vpop.f32.mrf.mxu0
  %426 = vmatprep.mubr.bf16.mxu0 0
  %427 = vmatmul.mubr.bf16.gmra.mxu0 %v272
  %v428 = vpop.f32.mrf.mxu0
  %v429 = vadd.f32 0.0, %v428
  %v430 = vpop.f32.mrf.mxu0
  %v431 = vpop.f32.mrf.mxu0
  %v432 = vadd.f32 0.0, %v431
  %v433 = vpop.f32.mrf.mxu0
  %434 = vmatprep.mubr.bf16.mxu0 0
  %435 = vmatmul.mubr.bf16.gmra.mxu0 %v275
  %v436 = vpop.f32.mrf.mxu0
  %v437 = vadd.f32 0.0, %v436
  %v438 = vpop.f32.mrf.mxu0
  %v439 = vpop.f32.mrf.mxu0
  %v440 = vadd.f32 0.0, %v439
  %v441 = vpop.f32.mrf.mxu0
  %442 = vmatprep.mubr.bf16.mxu0 0
  %443 = vmatmul.mubr.bf16.gmra.mxu0 %v278
  %v444 = vpop.f32.mrf.mxu0
  %v445 = vadd.f32 0.0, %v444
  %v446 = vpop.f32.mrf.mxu0
  %v447 = vpop.f32.mrf.mxu0
  %v448 = vadd.f32 0.0, %v447
  %v449 = vpop.f32.mrf.mxu0
  %450 = vmatprep.mubr.bf16.mxu0 0
  %451 = vmatmul.mubr.bf16.gmra.mxu0 %v281
  %v452 = vpop.f32.mrf.mxu0
  %v453 = vadd.f32 0.0, %v452
  %v454 = vpop.f32.mrf.mxu0
  %v455 = vpop.f32.mrf.mxu0
  %v456 = vadd.f32 0.0, %v455
  %v457 = vpop.f32.mrf.mxu0
  %458 = vmatprep.mubr.bf16.mxu0 0
  %459 = vmatmul.mubr.bf16.gmra.mxu0 %v284
  %v460 = vpop.f32.mrf.mxu0
  %v461 = vadd.f32 0.0, %v460
  %v462 = vpop.f32.mrf.mxu0
  %v463 = vpop.f32.mrf.mxu0
  %v464 = vadd.f32 0.0, %v463
  %v465 = vpop.f32.mrf.mxu0
  %466 = vmatprep.mubr.bf16.mxu0 0
  %467 = vmatmul.mubr.bf16.gmra.mxu0 %v287
  %v468 = vpop.f32.mrf.mxu0
  %v469 = vadd.f32 0.0, %v468
  %v470 = vpop.f32.mrf.mxu0
  %v471 = vpop.f32.mrf.mxu0
  %v472 = vadd.f32 0.0, %v471
  %v473 = vpop.f32.mrf.mxu0
  %474 = vmatprep.mubr.bf16.mxu0 0
  %475 = vmatmul.mubr.bf16.gmra.mxu0 %v290
  %v476 = vpop.f32.mrf.mxu0
  %v477 = vadd.f32 0.0, %v476
  %v478 = vpop.f32.mrf.mxu0
  %v479 = vpop.f32.mrf.mxu0
  %v480 = vadd.f32 0.0, %v479
  %v481 = vpop.f32.mrf.mxu0
  %482 = vmatprep.mubr.bf16.mxu0 0
  %483 = vmatmul.mubr.bf16.gmra.mxu0 %v293
  %v484 = vpop.f32.mrf.mxu0
  %v485 = vadd.f32 0.0, %v484
  %v486 = vpop.f32.mrf.mxu0
  %v487 = vpop.f32.mrf.mxu0
  %v488 = vadd.f32 0.0, %v487
  %v489 = vpop.f32.mrf.mxu0
  %490 = vmatprep.mubr.bf16.mxu0 0
  %491 = vmatmul.mubr.bf16.gmra.mxu0 %v296
  %v492 = vpop.f32.mrf.mxu0
  %v493 = vadd.f32 0.0, %v492
  %v494 = vpop.f32.mrf.mxu0
  %v495 = vpop.f32.mrf.mxu0
  %v496 = vadd.f32 0.0, %v495
  %v497 = vpop.f32.mrf.mxu0
  %498 = vmatprep.mubr.bf16.mxu0 0
  %499 = vmatmul.mubr.bf16.gmra.mxu0 %v299
  %v500 = vpop.f32.mrf.mxu0
  %v501 = vadd.f32 0.0, %v500
  %v502 = vpop.f32.mrf.mxu0
  %v503 = vpop.f32.mrf.mxu0
  %v504 = vadd.f32 0.0, %v503
  %v505 = vpop.f32.mrf.mxu0
  %506 = vmatprep.mubr.bf16.mxu0 0
  %507 = vmatmul.mubr.bf16.gmra.mxu0 %v302
  %v508 = vpop.f32.mrf.mxu0
  %v509 = vadd.f32 0.0, %v508
  %v510 = vpop.f32.mrf.mxu0
  %v511 = vpop.f32.mrf.mxu0
  %v512 = vadd.f32 0.0, %v511
  %v513 = vpop.f32.mrf.mxu0
  %514 = vmatprep.mubr.bf16.mxu0 0
  %515 = vmatmul.mubr.bf16.gmra.mxu0 %v305
  %v516 = vpop.f32.mrf.mxu0
  %v517 = vadd.f32 0.0, %v516
  %v518 = vpop.f32.mrf.mxu0
  %v519 = vpop.f32.mrf.mxu0
  %v520 = vadd.f32 0.0, %v519
  %v521 = vpop.f32.mrf.mxu0
  %522 = vmatprep.mubr.bf16.mxu0 0
  %523 = vmatmul.mubr.bf16.gmra.mxu0 %v308
  %v524 = vpop.f32.mrf.mxu0
  %v525 = vadd.f32 0.0, %v524
  %v526 = vpop.f32.mrf.mxu0
  %v527 = vpop.f32.mrf.mxu0
  %v528 = vadd.f32 0.0, %v527
  %v529 = vpop.f32.mrf.mxu0
  %530 = vmatprep.mubr.bf16.mxu0 0
  %531 = vmatmul.mubr.bf16.gmra.mxu0 %v311
  %v532 = vpop.f32.mrf.mxu0
  %v533 = vadd.f32 0.0, %v532
  %v534 = vpop.f32.mrf.mxu0
  %v535 = vpop.f32.mrf.mxu0
  %v536 = vadd.f32 0.0, %v535
  %v537 = vpop.f32.mrf.mxu0
  %538 = vmatprep.mubr.bf16.mxu0 0
  %539 = vmatmul.mubr.bf16.gmra.mxu0 %v314
  %v540 = vpop.f32.mrf.mxu0
  %v541 = vadd.f32 0.0, %v540
  %v542 = vpop.f32.mrf.mxu0
  %v543 = vpop.f32.mrf.mxu0
  %v544 = vadd.f32 0.0, %v543
  %v545 = vpop.f32.mrf.mxu0
  %546 = vmatprep.mubr.bf16.mxu0 0
  %547 = vmatmul.mubr.bf16.gmra.mxu0 %v317
  %v548 = vpop.f32.mrf.mxu0
  %v549 = vadd.f32 0.0, %v548
  %v550 = vpop.f32.mrf.mxu0
  %v551 = vpop.f32.mrf.mxu0
  %v552 = vadd.f32 0.0, %v551
  %v553 = vpop.f32.mrf.mxu0
  %554 = vmatprep.mubr.bf16.mxu0 0
  %555 = vmatmul.mubr.bf16.gmra.mxu0 %v320
  %v556 = vpop.f32.mrf.mxu0
  %v557 = vadd.f32 0.0, %v556
  %v558 = vpop.f32.mrf.mxu0
  %v559 = vpop.f32.mrf.mxu0
  %v560 = vadd.f32 0.0, %v559
  %v561 = vpop.f32.mrf.mxu0
  %562 = vmatprep.mubr.bf16.mxu0 0
  %563 = vmatmul.mubr.bf16.gmra.mxu0 %v323
  %v564 = vpop.f32.mrf.mxu0
  %v565 = vadd.f32 0.0, %v564
  %v566 = vpop.f32.mrf.mxu0
  %v567 = vpop.f32.mrf.mxu0
  %v568 = vadd.f32 0.0, %v567
  %v569 = vpop.f32.mrf.mxu0
  %570 = vmatprep.mubr.bf16.mxu0 0
  %571 = vmatmul.mubr.bf16.gmra.mxu0 %v326
  %v572 = vpop.f32.mrf.mxu0
  %v573 = vadd.f32 0.0, %v572
  %v574 = vpop.f32.mrf.mxu0
  %v575 = vpop.f32.mrf.mxu0
  %v576 = vadd.f32 0.0, %v575
  %v577 = vpop.f32.mrf.mxu0
  %578 = vmatprep.mubr.bf16.mxu0 0
  %579 = vmatmul.mubr.bf16.gmra.mxu0 %v329
  %v580 = vpop.f32.mrf.mxu0
  %v581 = vadd.f32 0.0, %v580
  %v582 = vpop.f32.mrf.mxu0
  %v583 = vpop.f32.mrf.mxu0
  %v584 = vadd.f32 0.0, %v583
  %v585 = vpop.f32.mrf.mxu0
  %586 = vmatprep.mubr.bf16.mxu0 0
  %587 = vmatmul.mubr.bf16.gmra.mxu0 %v332
  %v588 = vpop.f32.mrf.mxu0
  %v589 = vadd.f32 0.0, %v588
  %v590 = vpop.f32.mrf.mxu0
  %v591 = vpop.f32.mrf.mxu0
  %v592 = vadd.f32 0.0, %v591
  %v593 = vpop.f32.mrf.mxu0
  %594 = vmatprep.mubr.bf16.mxu0 0
  %595 = vmatmul.mubr.bf16.gmra.mxu0 %v335
  %v596 = vpop.f32.mrf.mxu0
  %v597 = vadd.f32 0.0, %v596
  %v598 = vpop.f32.mrf.mxu0
  %v599 = vpop.f32.mrf.mxu0
  %v600 = vadd.f32 0.0, %v599
  %v601 = vpop.f32.mrf.mxu0
  %602 = vmatprep.mubr.bf16.mxu0 0
  %603 = vmatmul.mubr.bf16.gmra.mxu0 %v338
  %v604 = vpop.f32.mrf.mxu0
  %v605 = vadd.f32 0.0, %v604
  %v606 = vpop.f32.mrf.mxu0
  %v607 = vpop.f32.mrf.mxu0
  %v608 = vadd.f32 0.0, %v607
  %v609 = vpop.f32.mrf.mxu0
  %610 = vmatprep.mubr.bf16.mxu0 0
  %611 = vmatmul.mubr.bf16.gmra.mxu0 %v341
  %v612 = vpop.f32.mrf.mxu0
  %v613 = vadd.f32 0.0, %v612
  %v614 = vpop.f32.mrf.mxu0
  %v615 = vpop.f32.mrf.mxu0
  %v616 = vadd.f32 0.0, %v615
  %v617 = vpop.f32.mrf.mxu0
  %618 = vmatprep.mubr.bf16.mxu0 0
  %619 = vmatmul.mubr.bf16.gmra.mxu0 %v344
  %v620 = vpop.f32.mrf.mxu0
  %v621 = vadd.f32 0.0, %v620
  %v622 = vpop.f32.mrf.mxu0
  %v623 = vpop.f32.mrf.mxu0
  %v624 = vadd.f32 0.0, %v623
  %v625 = vpop.f32.mrf.mxu0
  %626 = vmatprep.mubr.bf16.mxu0 0
  %627 = vmatmul.mubr.bf16.gmra.mxu0 %v347
  %v628 = vpop.f32.mrf.mxu0
  %v629 = vadd.f32 0.0, %v628
  %v630 = vpop.f32.mrf.mxu0
  %v631 = vpop.f32.mrf.mxu0
  %v632 = vadd.f32 0.0, %v631
  %v633 = vpop.f32.mrf.mxu0
  %634 = vmatprep.mubr.bf16.mxu0 0
  %635 = vmatmul.mubr.bf16.gmra.mxu0 %v350
  %v636 = vpop.f32.mrf.mxu0
  %v637 = vadd.f32 0.0, %v636
  %v638 = vpop.f32.mrf.mxu0
  %v639 = vpop.f32.mrf.mxu0
  %v640 = vadd.f32 0.0, %v639
  %v641 = vpop.f32.mrf.mxu0
  %642 = vmatprep.mubr.bf16.mxu0 0
  %643 = vmatmul.mubr.bf16.gmra.mxu0 %v353
  %v644 = vpop.f32.mrf.mxu0
  %v645 = vadd.f32 0.0, %v644
  %v646 = vpop.f32.mrf.mxu0
  %v647 = vpop.f32.mrf.mxu0
  %v648 = vadd.f32 0.0, %v647
  %v649 = vpop.f32.mrf.mxu0
  %650 = vdwg.mxu0
  %v651 = vld [vmem:[#allocation2] sm:$0x1]
  %v653 = vlaneseq
  %v654 = vshrl.u32 %v653, 7
  %v655 = vsub.s32 0, %v654
  %v656 = vrot.slane %v651, %v655
  %v658 = vmul.f32 %v397, %v656
  %v659 = vmul.f32 %v400, %v656
  %v660 = vmul.f32 %v405, %v656
  %v661 = vmul.f32 %v408, %v656
  %v662 = vmul.f32 %v413, %v656
  %v663 = vmul.f32 %v416, %v656
  %v664 = vmul.f32 %v421, %v656
  %v665 = vmul.f32 %v424, %v656
  %v666 = vmul.f32 %v429, %v656
  %v667 = vmul.f32 %v432, %v656
  %v668 = vmul.f32 %v437, %v656
  %v669 = vmul.f32 %v440, %v656
  %v670 = vmul.f32 %v445, %v656
  %v671 = vmul.f32 %v448, %v656
  %v672 = vmul.f32 %v453, %v656
  %v673 = vmul.f32 %v456, %v656
  %v674 = vmul.f32 %v461, %v656
  %v675 = vmul.f32 %v464, %v656
  %v676 = vmul.f32 %v469, %v656
  %v677 = vmul.f32 %v472, %v656
  %v678 = vmul.f32 %v477, %v656
  %v679 = vmul.f32 %v480, %v656
  %v680 = vmul.f32 %v485, %v656
  %v681 = vmul.f32 %v488, %v656
  %v682 = vmul.f32 %v493, %v656
  %v683 = vmul.f32 %v496, %v656
  %v684 = vmul.f32 %v501, %v656
  %v685 = vmul.f32 %v504, %v656
  %v686 = vmul.f32 %v509, %v656
  %v687 = vmul.f32 %v512, %v656
  %v688 = vmul.f32 %v517, %v656
  %v689 = vmul.f32 %v520, %v656
  %v690 = vmul.f32 %v525, %v656
  %v691 = vmul.f32 %v528, %v656
  %v692 = vmul.f32 %v533, %v656
  %v693 = vmul.f32 %v536, %v656
  %v694 = vmul.f32 %v541, %v656
  %v695 = vmul.f32 %v544, %v656
  %v696 = vmul.f32 %v549, %v656
  %v697 = vmul.f32 %v552, %v656
  %v698 = vmul.f32 %v557, %v656
  %v699 = vmul.f32 %v560, %v656
  %v700 = vmul.f32 %v565, %v656
  %v701 = vmul.f32 %v568, %v656
  %v702 = vmul.f32 %v573, %v656
  %v703 = vmul.f32 %v576, %v656
  %v704 = vmul.f32 %v581, %v656
  %v705 = vmul.f32 %v584, %v656
  %v706 = vmul.f32 %v589, %v656
  %v707 = vmul.f32 %v592, %v656
  %v708 = vmul.f32 %v597, %v656
  %v709 = vmul.f32 %v600, %v656
  %v710 = vmul.f32 %v605, %v656
  %v711 = vmul.f32 %v608, %v656
  %v712 = vmul.f32 %v613, %v656
  %v713 = vmul.f32 %v616, %v656
  %v714 = vmul.f32 %v621, %v656
  %v715 = vmul.f32 %v624, %v656
  %v716 = vmul.f32 %v629, %v656
  %v717 = vmul.f32 %v632, %v656
  %v718 = vmul.f32 %v637, %v656
  %v719 = vmul.f32 %v640, %v656
  %v720 = vmul.f32 %v645, %v656
  %v721 = vmul.f32 %v648, %v656
  %v722 = vld [vmem:[#allocation3] sm:$0x1]
  %v724 = vlaneseq
  %v725 = vshrl.u32 %v724, 7
  %v726 = vsub.s32 0, %v725
  %v727 = vrot.slane %v722, %v726
  %v729 = vadd.f32 %v658, %v727
  %v730 = vadd.f32 %v659, %v727
  %v731 = vadd.f32 %v660, %v727
  %v732 = vadd.f32 %v661, %v727
  %v733 = vadd.f32 %v662, %v727
  %v734 = vadd.f32 %v663, %v727
  %v735 = vadd.f32 %v664, %v727
  %v736 = vadd.f32 %v665, %v727
  %v737 = vadd.f32 %v666, %v727
  %v738 = vadd.f32 %v667, %v727
  %v739 = vadd.f32 %v668, %v727
  %v740 = vadd.f32 %v669, %v727
  %v741 = vadd.f32 %v670, %v727
  %v742 = vadd.f32 %v671, %v727
  %v743 = vadd.f32 %v672, %v727
  %v744 = vadd.f32 %v673, %v727
  %v745 = vadd.f32 %v674, %v727
  %v746 = vadd.f32 %v675, %v727
  %v747 = vadd.f32 %v676, %v727
  %v748 = vadd.f32 %v677, %v727
  %v749 = vadd.f32 %v678, %v727
  %v750 = vadd.f32 %v679, %v727
  %v751 = vadd.f32 %v680, %v727
  %v752 = vadd.f32 %v681, %v727
  %v753 = vadd.f32 %v682, %v727
  %v754 = vadd.f32 %v683, %v727
  %v755 = vadd.f32 %v684, %v727
  %v756 = vadd.f32 %v685, %v727
  %v757 = vadd.f32 %v686, %v727
  %v758 = vadd.f32 %v687, %v727
  %v759 = vadd.f32 %v688, %v727
  %v760 = vadd.f32 %v689, %v727
  %v761 = vadd.f32 %v690, %v727
  %v762 = vadd.f32 %v691, %v727
  %v763 = vadd.f32 %v692, %v727
  %v764 = vadd.f32 %v693, %v727
  %v765 = vadd.f32 %v694, %v727
  %v766 = vadd.f32 %v695, %v727
  %v767 = vadd.f32 %v696, %v727
  %v768 = vadd.f32 %v697, %v727
  %v769 = vadd.f32 %v698, %v727
  %v770 = vadd.f32 %v699, %v727
  %v771 = vadd.f32 %v700, %v727
  %v772 = vadd.f32 %v701, %v727
  %v773 = vadd.f32 %v702, %v727
  %v774 = vadd.f32 %v703, %v727
  %v775 = vadd.f32 %v704, %v727
  %v776 = vadd.f32 %v705, %v727
  %v777 = vadd.f32 %v706, %v727
  %v778 = vadd.f32 %v707, %v727
  %v779 = vadd.f32 %v708, %v727
  %v780 = vadd.f32 %v709, %v727
  %v781 = vadd.f32 %v710, %v727
  %v782 = vadd.f32 %v711, %v727
  %v783 = vadd.f32 %v712, %v727
  %v784 = vadd.f32 %v713, %v727
  %v785 = vadd.f32 %v714, %v727
  %v786 = vadd.f32 %v715, %v727
  %v787 = vadd.f32 %v716, %v727
  %v788 = vadd.f32 %v717, %v727
  %v789 = vadd.f32 %v718, %v727
  %v790 = vadd.f32 %v719, %v727
  %v791 = vadd.f32 %v720, %v727
  %v792 = vadd.f32 %v721, %v727
  %vm793 = vcmask 7168
  %794 = vst.msk [vmem:[%s4] sm:$0xff] %vm793, %v729
  %795 = vst.msk [vmem:[%s4 + $0x8] sm:$0xff] %vm793, %v730
  %796 = vst.msk [vmem:[%s4 + $0x10] sm:$0xff] %vm793, %v731
  %797 = vst.msk [vmem:[%s4 + $0x18] sm:$0xff] %vm793, %v732
  %798 = vst.msk [vmem:[%s4 + $0x20] sm:$0xff] %vm793, %v733
  %799 = vst.msk [vmem:[%s4 + $0x28] sm:$0xff] %vm793, %v734
  %800 = vst.msk [vmem:[%s4 + $0x30] sm:$0xff] %vm793, %v735
  %801 = vst.msk [vmem:[%s4 + $0x38] sm:$0xff] %vm793, %v736
  %802 = vst.msk [vmem:[%s4 + $0x40] sm:$0xff] %vm793, %v737
  %803 = vst.msk [vmem:[%s4 + $0x48] sm:$0xff] %vm793, %v738
  %804 = vst.msk [vmem:[%s4 + $0x50] sm:$0xff] %vm793, %v739
  %805 = vst.msk [vmem:[%s4 + $0x58] sm:$0xff] %vm793, %v740
  %806 = vst.msk [vmem:[%s4 + $0x60] sm:$0xff] %vm793, %v741
  %807 = vst.msk [vmem:[%s4 + $0x68] sm:$0xff] %vm793, %v742
  %808 = vst.msk [vmem:[%s4 + $0x70] sm:$0xff] %vm793, %v743
  %809 = vst.msk [vmem:[%s4 + $0x78] sm:$0xff] %vm793, %v744
  %810 = vst.msk [vmem:[%s4 + $0x80] sm:$0xff] %vm793, %v745
  %811 = vst.msk [vmem:[%s4 + $0x88] sm:$0xff] %vm793, %v746
  %812 = vst.msk [vmem:[%s4 + $0x90] sm:$0xff] %vm793, %v747
  %813 = vst.msk [vmem:[%s4 + $0x98] sm:$0xff] %vm793, %v748
  %814 = vst.msk [vmem:[%s4 + $0xa0] sm:$0xff] %vm793, %v749
  %815 = vst.msk [vmem:[%s4 + $0xa8] sm:$0xff] %vm793, %v750
  %816 = vst.msk [vmem:[%s4 + $0xb0] sm:$0xff] %vm793, %v751
  %817 = vst.msk [vmem:[%s4 + $0xb8] sm:$0xff] %vm793, %v752
  %818 = vst.msk [vmem:[%s4 + $0xc0] sm:$0xff] %vm793, %v753
  %819 = vst.msk [vmem:[%s4 + $0xc8] sm:$0xff] %vm793, %v754
  %820 = vst.msk [vmem:[%s4 + $0xd0] sm:$0xff] %vm793, %v755
  %821 = vst.msk [vmem:[%s4 + $0xd8] sm:$0xff] %vm793, %v756
  %822 = vst.msk [vmem:[%s4 + $0xe0] sm:$0xff] %vm793, %v757
  %823 = vst.msk [vmem:[%s4 + $0xe8] sm:$0xff] %vm793, %v758
  %824 = vst.msk [vmem:[%s4 + $0xf0] sm:$0xff] %vm793, %v759
  %825 = vst.msk [vmem:[%s4 + $0xf8] sm:$0xff] %vm793, %v760
  %826 = vst.msk [vmem:[%s4 + $0x100] sm:$0xff] %vm793, %v761
  %827 = vst.msk [vmem:[%s4 + $0x108] sm:$0xff] %vm793, %v762
  %828 = vst.msk [vmem:[%s4 + $0x110] sm:$0xff] %vm793, %v763
  %829 = vst.msk [vmem:[%s4 + $0x118] sm:$0xff] %vm793, %v764
  %830 = vst.msk [vmem:[%s4 + $0x120] sm:$0xff] %vm793, %v765
  %831 = vst.msk [vmem:[%s4 + $0x128] sm:$0xff] %vm793, %v766
  %832 = vst.msk [vmem:[%s4 + $0x130] sm:$0xff] %vm793, %v767
  %833 = vst.msk [vmem:[%s4 + $0x138] sm:$0xff] %vm793, %v768
  %834 = vst.msk [vmem:[%s4 + $0x140] sm:$0xff] %vm793, %v769
  %835 = vst.msk [vmem:[%s4 + $0x148] sm:$0xff] %vm793, %v770
  %836 = vst.msk [vmem:[%s4 + $0x150] sm:$0xff] %vm793, %v771
  %837 = vst.msk [vmem:[%s4 + $0x158] sm:$0xff] %vm793, %v772
  %838 = vst.msk [vmem:[%s4 + $0x160] sm:$0xff] %vm793, %v773
  %839 = vst.msk [vmem:[%s4 + $0x168] sm:$0xff] %vm793, %v774
  %840 = vst.msk [vmem:[%s4 + $0x170] sm:$0xff] %vm793, %v775
  %841 = vst.msk [vmem:[%s4 + $0x178] sm:$0xff] %vm793, %v776
  %842 = vst.msk [vmem:[%s4 + $0x180] sm:$0xff] %vm793, %v777
  %843 = vst.msk [vmem:[%s4 + $0x188] sm:$0xff] %vm793, %v778
  %844 = vst.msk [vmem:[%s4 + $0x190] sm:$0xff] %vm793, %v779
  %845 = vst.msk [vmem:[%s4 + $0x198] sm:$0xff] %vm793, %v780
  %846 = vst.msk [vmem:[%s4 + $0x1a0] sm:$0xff] %vm793, %v781
  %847 = vst.msk [vmem:[%s4 + $0x1a8] sm:$0xff] %vm793, %v782
  %848 = vst.msk [vmem:[%s4 + $0x1b0] sm:$0xff] %vm793, %v783
  %849 = vst.msk [vmem:[%s4 + $0x1b8] sm:$0xff] %vm793, %v784
  %850 = vst.msk [vmem:[%s4 + $0x1c0] sm:$0xff] %vm793, %v785
  %851 = vst.msk [vmem:[%s4 + $0x1c8] sm:$0xff] %vm793, %v786
  %852 = vst.msk [vmem:[%s4 + $0x1d0] sm:$0xff] %vm793, %v787
  %853 = vst.msk [vmem:[%s4 + $0x1d8] sm:$0xff] %vm793, %v788
  %854 = vst.msk [vmem:[%s4 + $0x1e0] sm:$0xff] %vm793, %v789
  %855 = vst.msk [vmem:[%s4 + $0x1e8] sm:$0xff] %vm793, %v790
  %856 = vst.msk [vmem:[%s4 + $0x1f0] sm:$0xff] %vm793, %v791
  %857 = vst.msk [vmem:[%s4 + $0x1f8] sm:$0xff] %vm793, %v792
  // Predicated region
  $region18: #{detector_forward.33} parent=0 // pred_check
    _
  $region19: #{detector_forward.33} parent=0 // pred_check_branch
    %859 = sbr.rel (0) target = $region21
  $region20: #{detector_forward.33} parent=0 // pred_region
    _
  $region21: #{detector_forward.33} parent=0 // pred_fallthru
    _
  // Predicated region
  $region22: #{detector_forward.33} parent=0 // pred_check
    _
  $region23: #{detector_forward.33} parent=0 // pred_check_branch
    %861 = sbr.rel (0) target = $region25
  $region24: #{detector_forward.33} parent=0 // pred_region
    _
  $region25: #{detector_forward.33} parent=0 // pred_fallthru
    _

</llo_original>
